<compile_context>
chip_gen: v7x
topology: tpu7x:2x2x1
jax: 0.10.0
libtpu: 0.0.40
codegen_flags: <defaults>
</compile_context>

<pallas_src>
import jax
import jax.numpy as jnp
from jax.experimental import pallas as pl
from jax.experimental.pallas import tpu as pltpu

_EPS = 1e-5
_LANE = 128
_SUBLANE = 8

_CompilerParams = getattr(pltpu, "CompilerParams", None)


def _round_up(x, m):
    return (x + m - 1) // m * m


def _vmem_limit_bytes():
    # Generation-aware scoped-VMEM limit: ~3/4 of physical (v7x has only
    # 64 MiB per TensorCore), capped at 100 MiB on 128-MiB parts.
    try:
        cap = int(pltpu.get_tpu_info().vmem_capacity_bytes)
        return int(max(min(cap * 3 // 4, 100 * 1024 * 1024),
                       32 * 1024 * 1024))
    except Exception:
        return 48 * 1024 * 1024


def _pick_row_tile(h, n_batch, w, cout_p, k1p, budget_bytes=12 * 1024 * 1024):
    """Largest divisor of H whose double-buffered blocks + scratch fit a VMEM
    budget; keeps >=2 grid steps when N == 1 so both v7x TensorCores work."""
    per_row = 4 * w * (2 * k1p + 5 * cout_p) + 4 * (w + 2) * cout_p
    cap = max(1, budget_bytes // max(per_row, 1))
    divisors = [d for d in range(1, h + 1) if h % d == 0]
    fitting = [d for d in divisors if d <= cap]
    th = max(fitting) if fitting else min(divisors)
    if n_batch == 1 and h // th < 2:
        smaller = [d for d in divisors if h // d >= 2]
        if smaller:
            th = max(smaller)
    return th


def _cp_kwargs():
    if _CompilerParams is None:
        return {}
    return {
        "compiler_params": _CompilerParams(
            dimension_semantics=("parallel", "parallel"),
            vmem_limit_bytes=_vmem_limit_bytes(),
        )
    }


# --------------------------------------------------------------------------
# Kernel 1: conv1 (+bias) as a single matmul over wrapper-built im2col
# patches, plus fused BN1 partial statistics.
# --------------------------------------------------------------------------
def _conv1_kernel(p_ref, w_ref, b_ref, y_ref, s_ref):
    # p_ref: (TH, W, K1p) im2col patches   w_ref: (K1p, Coutp)
    # b_ref: (1, Coutp)                    y_ref: (TH, W, Coutp)
    # s_ref: (2, Coutp) per-tile [sum, sum_sq] of the pre-BN output
    th, w_out, k1p = p_ref.shape
    cout_p = y_ref.shape[-1]
    lhs = p_ref[...].reshape(th * w_out, k1p)
    y = jnp.dot(lhs, w_ref[...],
                preferred_element_type=jnp.float32) + b_ref[...]
    y_ref[...] = y.reshape(th, w_out, cout_p)
    s_ref[0:1, :] = jnp.sum(y, axis=0, keepdims=True)
    s_ref[1:2, :] = jnp.sum(y * y, axis=0, keepdims=True)


# --------------------------------------------------------------------------
# Kernel 2: folded BN1 + ReLU, 3x3 conv2 with dy taps fused along K
# (3 matmuls, K = 3*Coutp), plus fused BN2 partial statistics.
# --------------------------------------------------------------------------
def _bn_relu_conv2_kernel(y1_ref, top_ref, bot_ref, sc_ref, sh_ref, w_ref,
                          b_ref, y2_ref, s_ref, zp_ref):
    # y1_ref : (TH, W, Coutp)   pre-BN conv1 rows of this tile
    # top_ref: (1, W, Coutp)    pre-BN row just above the tile (clamped)
    # bot_ref: (1, W, Coutp)    pre-BN row just below the tile (clamped)
    # sc/sh  : (1, Coutp)       folded BN1 scale / shift
    # w_ref  : (3, 3*Coutp, Coutp)  dy-fused conv2 weights, one slab per dx
    # b_ref  : (1, Coutp)
    # y2_ref : (TH, W, Coutp)   pre-BN conv2 output
    # s_ref  : (2, Coutp)       per-tile [sum, sum_sq]
    # zp_ref : (TH+2, W+2, Coutp) VMEM scratch: BN1+ReLU activations + 0-pad
    th, w_out, cout_p = y1_ref.shape
    t = pl.program_id(1)
    last = pl.num_programs(1) - 1
    sc = sc_ref[...]
    sh = sh_ref[...]

    def bn_relu(a):
        return jnp.maximum(a * sc + sh, 0.0)

    # Assemble the zero-padded activation tile (halo rows outside the image
    # and the two border columns are conv2's zero padding).
    zp_ref[1:th + 1, 1:w_out + 1, :] = bn_relu(y1_ref[...])
    top_ok = (t > 0).astype(jnp.float32)
    bot_ok = (t < last).astype(jnp.float32)
    zp_ref[0:1, 1:w_out + 1, :] = bn_relu(top_ref[...]) * top_ok
    zp_ref[th + 1:th + 2, 1:w_out + 1, :] = bn_relu(bot_ref[...]) * bot_ok
    zcol = jnp.zeros((th + 2, 1, cout_p), jnp.float32)
    zp_ref[:, 0:1, :] = zcol
    zp_ref[:, w_out + 1:w_out + 2, :] = zcol

    # 3x3 conv: one matmul per dx, the 3 dy taps concatenated along K.
    rows_out = th * w_out
    acc = jnp.zeros((rows_out, cout_p), jnp.float32)
    for dx in range(3):
        zf = zp_ref[:, dx:dx + w_out, :].reshape((th + 2) * w_out, cout_p)
        lhs = jnp.concatenate(
            [zf[dy * w_out: dy * w_out + rows_out, :] for dy in range(3)],
            axis=1)
        acc = acc + jnp.dot(lhs, w_ref[dx],
                            preferred_element_type=jnp.float32)
    y2 = acc + b_ref[...]
    y2_ref[...] = y2.reshape(th, w_out, cout_p)
    s_ref[0:1, :] = jnp.sum(y2, axis=0, keepdims=True)
    s_ref[1:2, :] = jnp.sum(y2 * y2, axis=0, keepdims=True)


@jax.jit
def double_conv(x_nchw, w1, b1, g1, be1, w2, b2, g2, be2):
    """x_nchw: (N, Cin, H, W) f32; conv weights in HWIO.  Returns NCHW f32."""
    N, Cin, H, W = x_nchw.shape
    Cout = w1.shape[-1]
    cout_p = _round_up(max(Cout, _LANE), _LANE)
    k1 = 9 * Cin
    k1p = _round_up(max(k1, _SUBLANE), _SUBLANE)
    f32 = jnp.float32

    TH = _pick_row_tile(H, N, W, cout_p, k1p)
    nT = H // TH
    grid = (N, nT)
    cp = _cp_kwargs()

    # ---- conv1 im2col built in XLA (K = 9*Cin) -----------------------------
    x = jnp.transpose(x_nchw, (0, 2, 3, 1)).astype(f32)          # NHWC
    xp = jnp.pad(x, ((0, 0), (1, 1), (1, 1), (0, 0)))
    patches = jnp.concatenate(
        [xp[:, dy:dy + H, dx:dx + W, :]
         for dy in range(3) for dx in range(3)], axis=-1)
    patches = jnp.pad(patches, ((0, 0), (0, 0), (0, 0), (0, k1p - k1)))

    w1f = jnp.pad(w1.astype(f32).reshape(k1, Cout),
                  ((0, k1p - k1), (0, cout_p - Cout)))
    b1p = jnp.pad(b1.astype(f32), (0, cout_p - Cout)).reshape(1, cout_p)
    b2p = jnp.pad(b2.astype(f32), (0, cout_p - Cout)).reshape(1, cout_p)
    g1p = jnp.pad(g1.astype(f32), (0, cout_p - Cout))
    g2p = jnp.pad(g2.astype(f32), (0, cout_p - Cout))
    be1p = jnp.pad(be1.astype(f32), (0, cout_p - Cout))
    be2p = jnp.pad(be2.astype(f32), (0, cout_p - Cout))
    # conv2 weights (ky, kx, i, o) -> per-dx slab with dy fused along K.
    w2p = jnp.pad(w2.astype(f32),
                  ((0, 0), (0, 0), (0, cout_p - Cout), (0, cout_p - Cout)))
    w2cat = jnp.transpose(w2p, (1, 0, 2, 3)).reshape(3, 3 * cout_p, cout_p)

    # ---- pass 1: conv1 (+bias) and fused BN1 partial sums ------------------
    y1, stats1 = pl.pallas_call(
        _conv1_kernel,
        grid=grid,
        in_specs=[
            pl.BlockSpec((None, TH, W, k1p), lambda n, t: (n, t, 0, 0)),
            pl.BlockSpec((k1p, cout_p), lambda n, t: (0, 0)),
            pl.BlockSpec((1, cout_p), lambda n, t: (0, 0)),
        ],
        out_specs=[
            pl.BlockSpec((None, TH, W, cout_p), lambda n, t: (n, t, 0, 0)),
            pl.BlockSpec((None, None, 2, cout_p), lambda n, t: (n, t, 0, 0)),
        ],
        out_shape=[
            jax.ShapeDtypeStruct((N, H, W, cout_p), f32),
            jax.ShapeDtypeStruct((N, nT, 2, cout_p), f32),
        ],
        **cp,
    )(patches, w1f, b1p)

    # ---- fold training-mode BN (hierarchical f32 partial sums) -------------
    cnt = float(N * H * W)

    def fold_bn(stats, gamma, beta):
        s = jnp.sum(stats[:, :, 0, :], axis=(0, 1))
        ss = jnp.sum(stats[:, :, 1, :], axis=(0, 1))
        mean = s / cnt
        var = jnp.maximum(ss / cnt - mean * mean, 0.0)
        scale = gamma * jax.lax.rsqrt(var + _EPS)
        shift = beta - mean * scale
        return scale.reshape(1, -1), shift.reshape(1, -1)

    scale1, shift1 = fold_bn(stats1, g1p, be1p)

    # ---- pass 2: BN1+ReLU, conv2 (+bias), fused BN2 partial sums ------------
    y2, stats2 = pl.pallas_call(
        _bn_relu_conv2_kernel,
        grid=grid,
        in_specs=[
            pl.BlockSpec((None, TH, W, cout_p), lambda n, t: (n, t, 0, 0)),
            pl.BlockSpec((None, 1, W, cout_p),
                         lambda n, t: (n, jnp.maximum(t * TH - 1, 0), 0, 0)),
            pl.BlockSpec((None, 1, W, cout_p),
                         lambda n, t: (n, jnp.minimum(t * TH + TH, H - 1),
                                       0, 0)),
            pl.BlockSpec((1, cout_p), lambda n, t: (0, 0)),
            pl.BlockSpec((1, cout_p), lambda n, t: (0, 0)),
            pl.BlockSpec((3, 3 * cout_p, cout_p), lambda n, t: (0, 0, 0)),
            pl.BlockSpec((1, cout_p), lambda n, t: (0, 0)),
        ],
        out_specs=[
            pl.BlockSpec((None, TH, W, cout_p), lambda n, t: (n, t, 0, 0)),
            pl.BlockSpec((None, None, 2, cout_p), lambda n, t: (n, t, 0, 0)),
        ],
        out_shape=[
            jax.ShapeDtypeStruct((N, H, W, cout_p), f32),
            jax.ShapeDtypeStruct((N, nT, 2, cout_p), f32),
        ],
        scratch_shapes=[pltpu.VMEM((TH + 2, W + 2, cout_p), f32)],
        **cp,
    )(y1, y1, y1, scale1, shift1, w2cat, b2p)

    scale2, shift2 = fold_bn(stats2, g2p, be2p)

    # ---- fused XLA epilogue: BN2 + ReLU + channel un-pad + NCHW -------------
    out = jnp.maximum(y2 * scale2 + shift2, 0.0)[:, :, :, :Cout]
    return jnp.transpose(out, (0, 3, 1, 2))


def _reference(x_nchw, w1, b1, g1, be1, w2, b2, g2, be2):
    """Pure-JAX reference (NHWC conv + training-mode BN + ReLU)."""
    x = jnp.transpose(x_nchw, (0, 2, 3, 1))

    def conv_bn_relu(x, w, b, g, be):
        y = jax.lax.conv_general_dilated(
            x, w, window_strides=(1, 1), padding="SAME",
            dimension_numbers=("NHWC", "HWIO", "NHWC")) + b
        mean = jnp.mean(y, axis=(0, 1, 2), keepdims=True)
        var = jnp.mean((y - mean) ** 2, axis=(0, 1, 2), keepdims=True)
        y = (y - mean) * jax.lax.rsqrt(var + _EPS) * g + be
        return jnp.maximum(y, 0.0)

    y = conv_bn_relu(x, w1, b1, g1, be1)
    y = conv_bn_relu(y, w2, b2, g2, be2)
    return jnp.transpose(y, (0, 3, 1, 2))


if __name__ == "__main__":
    # Shapes consistent with DoubleConv(in_channels=4, out_channels=8).
    N, Cin, Cout, H, W = 2, 4, 8, 16, 16

    key = jax.random.PRNGKey(0)
    kx, kw1, kb1, kw2, kb2, kg1, kbe1, kg2, kbe2 = jax.random.split(key, 9)

    x = jax.random.normal(kx, (N, Cin, H, W), jnp.float32)

    w1 = jax.random.normal(kw1, (3, 3, Cin, Cout), jnp.float32) * 0.1
    b1 = jax.random.normal(kb1, (Cout,), jnp.float32) * 0.1
    g1 = 1.0 + 0.1 * jax.random.normal(kg1, (Cout,), jnp.float32)
    be1 = 0.1 * jax.random.normal(kbe1, (Cout,), jnp.float32)

    w2 = jax.random.normal(kw2, (3, 3, Cout, Cout), jnp.float32) * 0.1
    b2 = jax.random.normal(kb2, (Cout,), jnp.float32) * 0.1
    g2 = 1.0 + 0.1 * jax.random.normal(kg2, (Cout,), jnp.float32)
    be2 = 0.1 * jax.random.normal(kbe2, (Cout,), jnp.float32)

    out = double_conv(x, w1, b1, g1, be1, w2, b2, g2, be2)
    out = jax.block_until_ready(out)

    ref = _reference(x, w1, b1, g1, be1, w2, b2, g2, be2)
    assert out.shape == (N, Cout, H, W), out.shape
    assert jnp.allclose(out, ref, atol=1e-4, rtol=1e-4), (
        float(jnp.max(jnp.abs(out - ref))))

    print("KERNEL_OK")
</pallas_src>

<mosaic_0001>
module attributes {stable_mosaic.version = 11 : i64} {
  func.func @_conv1_kernel(%arg0: i32, %arg1: i32, %arg2: memref<1x16x16x40xf32, #tpu.memory_space<vmem>>, %arg3: memref<40x128xf32, #tpu.memory_space<vmem>>, %arg4: memref<1x128xf32, #tpu.memory_space<vmem>>, %arg5: memref<1x16x16x128xf32, #tpu.memory_space<vmem>>, %arg6: memref<1x1x2x128xf32, #tpu.memory_space<vmem>>) attributes {dimension_semantics = [#tpu.dimension_semantics<parallel>, #tpu.dimension_semantics<parallel>], iteration_bounds = array<i64: 2, 1>, scalar_prefetch = 0 : i64, scratch_operands = 0 : i64, tpu.core_type = #tpu.core_type<tc>, window_params = [{transform_indices = @transform_0, window_bounds = array<i64: 1, 16, 16, 40>}, {pipeline_mode = #tpu.pipeline_mode<synchronous>, transform_indices = @transform_1, window_bounds = array<i64: 40, 128>}, {pipeline_mode = #tpu.pipeline_mode<synchronous>, transform_indices = @transform_2, window_bounds = array<i64: 1, 128>}, {transform_indices = @transform_3, window_bounds = array<i64: 1, 16, 16, 128>}, {transform_indices = @transform_4, window_bounds = array<i64: 1, 1, 2, 128>}]} {
    %c0 = arith.constant 0 : index
    %c0_0 = arith.constant 0 : index
    %c0_1 = arith.constant 0 : index
    %c0_2 = arith.constant 0 : index
    %0 = vector.load %arg2[%c0, %c0_0, %c0_1, %c0_2] : memref<1x16x16x40xf32, #tpu.memory_space<vmem>>, vector<1x16x16x40xf32>
    %1 = vector.shape_cast %0 : vector<1x16x16x40xf32> to vector<16x16x40xf32>
    %2 = vector.shape_cast %1 : vector<16x16x40xf32> to vector<256x40xf32>
    %c0_3 = arith.constant 0 : index
    %c0_4 = arith.constant 0 : index
    %3 = vector.load %arg3[%c0_3, %c0_4] : memref<40x128xf32, #tpu.memory_space<vmem>>, vector<40x128xf32>
    %cst = arith.constant dense<0.000000e+00> : vector<256x128xf32>
    %4 = tpu.matmul %2, %3, %cst {dimension_numbers = #tpu.dot_dimension_numbers<[1], [0], [0], [1], [0, 0, 1, 1], [], []>} : vector<256x40xf32>, vector<40x128xf32>, vector<256x128xf32> -> vector<256x128xf32>
    %c0_5 = arith.constant 0 : index
    %c0_6 = arith.constant 0 : index
    %5 = vector.load %arg4[%c0_5, %c0_6] : memref<1x128xf32, #tpu.memory_space<vmem>>, vector<1x128xf32>
    %6 = vector.broadcast %5 : vector<1x128xf32> to vector<256x128xf32>
    %7 = arith.addf %4, %6 : vector<256x128xf32>
    %8 = vector.shape_cast %7 : vector<256x128xf32> to vector<16x16x128xf32>
    %c0_7 = arith.constant 0 : index
    %c0_8 = arith.constant 0 : index
    %c0_9 = arith.constant 0 : index
    %c0_10 = arith.constant 0 : index
    %9 = vector.load %arg5[%c0_7, %c0_8, %c0_9, %c0_10] : memref<1x16x16x128xf32, #tpu.memory_space<vmem>>, vector<1x16x16x128xf32>
    %10 = vector.shape_cast %9 : vector<1x16x16x128xf32> to vector<16x16x128xf32>
    %11 = vector.shape_cast %8 : vector<16x16x128xf32> to vector<1x16x16x128xf32>
    tpu.vector_store %arg5[%c0_7, %c0_8, %c0_9, %c0_10], %11 {strides = array<i32>} : memref<1x16x16x128xf32, #tpu.memory_space<vmem>>, vector<1x16x16x128xf32>,
    %cst_11 = arith.constant dense<0.000000e+00> : vector<128xf32>
    %12 = vector.multi_reduction <add>, %7, %cst_11 [0] : vector<256x128xf32> to vector<128xf32>
    %13 = vector.shape_cast %12 : vector<128xf32> to vector<1x128xf32>
    %c0_12 = arith.constant 0 : index
    %c0_13 = arith.constant 0 : index
    %c0_14 = arith.constant 0 : index
    %c0_15 = arith.constant 0 : index
    %14 = vector.load %arg6[%c0_12, %c0_13, %c0_14, %c0_15] : memref<1x1x2x128xf32, #tpu.memory_space<vmem>>, vector<1x1x1x128xf32>
    %15 = vector.shape_cast %14 : vector<1x1x1x128xf32> to vector<1x128xf32>
    %16 = vector.shape_cast %13 : vector<1x128xf32> to vector<1x1x1x128xf32>
    tpu.vector_store %arg6[%c0_12, %c0_13, %c0_14, %c0_15], %16 {strides = array<i32>} : memref<1x1x2x128xf32, #tpu.memory_space<vmem>>, vector<1x1x1x128xf32>,
    %17 = arith.mulf %7, %7 : vector<256x128xf32>
    %cst_16 = arith.constant dense<0.000000e+00> : vector<128xf32>
    %18 = vector.multi_reduction <add>, %17, %cst_16 [0] : vector<256x128xf32> to vector<128xf32>
    %19 = vector.shape_cast %18 : vector<128xf32> to vector<1x128xf32>
    %c0_17 = arith.constant 0 : index
    %c0_18 = arith.constant 0 : index
    %c1 = arith.constant 1 : index
    %c0_19 = arith.constant 0 : index
    %20 = vector.load %arg6[%c0_17, %c0_18, %c1, %c0_19] : memref<1x1x2x128xf32, #tpu.memory_space<vmem>>, vector<1x1x1x128xf32>
    %21 = vector.shape_cast %20 : vector<1x1x1x128xf32> to vector<1x128xf32>
    %22 = vector.shape_cast %19 : vector<1x128xf32> to vector<1x1x1x128xf32>
    tpu.vector_store %arg6[%c0_17, %c0_18, %c1, %c0_19], %22 {strides = array<i32>} : memref<1x1x2x128xf32, #tpu.memory_space<vmem>>, vector<1x1x1x128xf32>,
    return
  }
  func.func @transform_0(%arg0: i32, %arg1: i32) -> (i32, i32, i32, i32) {
    %c0_i32 = arith.constant 0 : i32
    %c0_i32_0 = arith.constant 0 : i32
    %c0_i32_1 = arith.constant 0 : i32
    return %arg0, %arg1, %c0_i32, %c0_i32_0 : i32, i32, i32, i32
  }
  func.func @transform_1(%arg0: i32, %arg1: i32) -> (i32, i32) {
    %c0_i32 = arith.constant 0 : i32
    %c0_i32_0 = arith.constant 0 : i32
    %c0_i32_1 = arith.constant 0 : i32
    return %c0_i32, %c0_i32_0 : i32, i32
  }
  func.func @transform_2(%arg0: i32, %arg1: i32) -> (i32, i32) {
    %c0_i32 = arith.constant 0 : i32
    %c0_i32_0 = arith.constant 0 : i32
    %c0_i32_1 = arith.constant 0 : i32
    return %c0_i32, %c0_i32_0 : i32, i32
  }
  func.func @transform_3(%arg0: i32, %arg1: i32) -> (i32, i32, i32, i32) {
    %c0_i32 = arith.constant 0 : i32
    %c0_i32_0 = arith.constant 0 : i32
    %c0_i32_1 = arith.constant 0 : i32
    return %arg0, %arg1, %c0_i32, %c0_i32_0 : i32, i32, i32, i32
  }
  func.func @transform_4(%arg0: i32, %arg1: i32) -> (i32, i32, i32, i32) {
    %c0_i32 = arith.constant 0 : i32
    %c0_i32_0 = arith.constant 0 : i32
    %c0_i32_1 = arith.constant 0 : i32
    return %arg0, %arg1, %c0_i32, %c0_i32_0 : i32, i32, i32, i32
  }
}

module attributes {stable_mosaic.version = 11 : i64} {
  func.func @_bn_relu_conv2_kernel(%arg0: i32, %arg1: i32, %arg2: memref<1x16x16x128xf32, #tpu.memory_space<vmem>>, %arg3: memref<1x1x16x128xf32, #tpu.memory_space<vmem>>, %arg4: memref<1x1x16x128xf32, #tpu.memory_space<vmem>>, %arg5: memref<1x128xf32, #tpu.memory_space<vmem>>, %arg6: memref<1x128xf32, #tpu.memory_space<vmem>>, %arg7: memref<3x384x128xf32, #tpu.memory_space<vmem>>, %arg8: memref<1x128xf32, #tpu.memory_space<vmem>>, %arg9: memref<1x16x16x128xf32, #tpu.memory_space<vmem>>, %arg10: memref<1x1x2x128xf32, #tpu.memory_space<vmem>>, %arg11: memref<18x18x128xf32, #tpu.memory_space<vmem>>) attributes {dimension_semantics = [#tpu.dimension_semantics<parallel>, #tpu.dimension_semantics<parallel>], iteration_bounds = array<i64: 2, 1>, scalar_prefetch = 0 : i64, scratch_operands = 1 : i64, tpu.core_type = #tpu.core_type<tc>, window_params = [{transform_indices = @transform_0, window_bounds = array<i64: 1, 16, 16, 128>}, {transform_indices = @transform_1, window_bounds = array<i64: 1, 1, 16, 128>}, {transform_indices = @transform_2, window_bounds = array<i64: 1, 1, 16, 128>}, {pipeline_mode = #tpu.pipeline_mode<synchronous>, transform_indices = @transform_3, window_bounds = array<i64: 1, 128>}, {pipeline_mode = #tpu.pipeline_mode<synchronous>, transform_indices = @transform_4, window_bounds = array<i64: 1, 128>}, {pipeline_mode = #tpu.pipeline_mode<synchronous>, transform_indices = @transform_5, window_bounds = array<i64: 3, 384, 128>}, {pipeline_mode = #tpu.pipeline_mode<synchronous>, transform_indices = @transform_6, window_bounds = array<i64: 1, 128>}, {transform_indices = @transform_7, window_bounds = array<i64: 1, 16, 16, 128>}, {transform_indices = @transform_8, window_bounds = array<i64: 1, 1, 2, 128>}]} {
    %c0 = arith.constant 0 : index
    %c0_0 = arith.constant 0 : index
    %0 = vector.load %arg5[%c0, %c0_0] : memref<1x128xf32, #tpu.memory_space<vmem>>, vector<1x128xf32>
    %c0_1 = arith.constant 0 : index
    %c0_2 = arith.constant 0 : index
    %1 = vector.load %arg6[%c0_1, %c0_2] : memref<1x128xf32, #tpu.memory_space<vmem>>, vector<1x128xf32>
    %c0_3 = arith.constant 0 : index
    %c0_4 = arith.constant 0 : index
    %c0_5 = arith.constant 0 : index
    %c0_6 = arith.constant 0 : index
    %2 = vector.load %arg2[%c0_3, %c0_4, %c0_5, %c0_6] : memref<1x16x16x128xf32, #tpu.memory_space<vmem>>, vector<1x16x16x128xf32>
    %3 = vector.shape_cast %2 : vector<1x16x16x128xf32> to vector<16x16x128xf32>
    %4 = vector.shape_cast %0 : vector<1x128xf32> to vector<1x1x128xf32>
    %5 = vector.broadcast %4 : vector<1x1x128xf32> to vector<16x16x128xf32>
    %6 = arith.mulf %3, %5 : vector<16x16x128xf32>
    %7 = vector.shape_cast %1 : vector<1x128xf32> to vector<1x1x128xf32>
    %8 = vector.broadcast %7 : vector<1x1x128xf32> to vector<16x16x128xf32>
    %9 = arith.addf %6, %8 : vector<16x16x128xf32>
    %cst = arith.constant 0.000000e+00 : f32
    %10 = vector.broadcast %cst : f32 to vector<16x16x128xf32>
    %11 = arith.maximumf %9, %10 : vector<16x16x128xf32>
    %c1 = arith.constant 1 : index
    %c1_7 = arith.constant 1 : index
    %c0_8 = arith.constant 0 : index
    %12 = vector.load %arg11[%c1, %c1_7, %c0_8] : memref<18x18x128xf32, #tpu.memory_space<vmem>>, vector<16x16x128xf32>
    tpu.vector_store %arg11[%c1, %c1_7, %c0_8], %11 {strides = array<i32>} : memref<18x18x128xf32, #tpu.memory_space<vmem>>, vector<16x16x128xf32>,
    %c0_i32 = arith.constant 0 : i32
    %13 = arith.cmpi sgt, %arg1, %c0_i32 : i32
    %14 = arith.extui %13 : i1 to i32
    %15 = arith.sitofp %14 : i32 to f32
    %c0_i32_9 = arith.constant 0 : i32
    %16 = arith.cmpi slt, %arg1, %c0_i32_9 : i32
    %17 = arith.extui %16 : i1 to i32
    %18 = arith.sitofp %17 : i32 to f32
    %c0_10 = arith.constant 0 : index
    %c0_11 = arith.constant 0 : index
    %c0_12 = arith.constant 0 : index
    %c0_13 = arith.constant 0 : index
    %19 = vector.load %arg3[%c0_10, %c0_11, %c0_12, %c0_13] : memref<1x1x16x128xf32, #tpu.memory_space<vmem>>, vector<1x1x16x128xf32>
    %20 = vector.shape_cast %19 : vector<1x1x16x128xf32> to vector<1x16x128xf32>
    %21 = vector.shape_cast %0 : vector<1x128xf32> to vector<1x1x128xf32>
    %22 = vector.broadcast %21 : vector<1x1x128xf32> to vector<1x16x128xf32>
    %23 = arith.mulf %20, %22 : vector<1x16x128xf32>
    %24 = vector.shape_cast %1 : vector<1x128xf32> to vector<1x1x128xf32>
    %25 = vector.broadcast %24 : vector<1x1x128xf32> to vector<1x16x128xf32>
    %26 = arith.addf %23, %25 : vector<1x16x128xf32>
    %cst_14 = arith.constant 0.000000e+00 : f32
    %27 = vector.broadcast %cst_14 : f32 to vector<1x16x128xf32>
    %28 = arith.maximumf %26, %27 : vector<1x16x128xf32>
    %29 = vector.broadcast %15 : f32 to vector<1x16x128xf32>
    %30 = arith.mulf %28, %29 : vector<1x16x128xf32>
    %c0_15 = arith.constant 0 : index
    %c1_16 = arith.constant 1 : index
    %c0_17 = arith.constant 0 : index
    %31 = vector.load %arg11[%c0_15, %c1_16, %c0_17] : memref<18x18x128xf32, #tpu.memory_space<vmem>>, vector<1x16x128xf32>
    tpu.vector_store %arg11[%c0_15, %c1_16, %c0_17], %30 {strides = array<i32>} : memref<18x18x128xf32, #tpu.memory_space<vmem>>, vector<1x16x128xf32>,
    %c0_18 = arith.constant 0 : index
    %c0_19 = arith.constant 0 : index
    %c0_20 = arith.constant 0 : index
    %c0_21 = arith.constant 0 : index
    %32 = vector.load %arg4[%c0_18, %c0_19, %c0_20, %c0_21] : memref<1x1x16x128xf32, #tpu.memory_space<vmem>>, vector<1x1x16x128xf32>
    %33 = vector.shape_cast %32 : vector<1x1x16x128xf32> to vector<1x16x128xf32>
    %34 = vector.shape_cast %0 : vector<1x128xf32> to vector<1x1x128xf32>
    %35 = vector.broadcast %34 : vector<1x1x128xf32> to vector<1x16x128xf32>
    %36 = arith.mulf %33, %35 : vector<1x16x128xf32>
    %37 = vector.shape_cast %1 : vector<1x128xf32> to vector<1x1x128xf32>
    %38 = vector.broadcast %37 : vector<1x1x128xf32> to vector<1x16x128xf32>
    %39 = arith.addf %36, %38 : vector<1x16x128xf32>
    %cst_22 = arith.constant 0.000000e+00 : f32
    %40 = vector.broadcast %cst_22 : f32 to vector<1x16x128xf32>
    %41 = arith.maximumf %39, %40 : vector<1x16x128xf32>
    %42 = vector.broadcast %18 : f32 to vector<1x16x128xf32>
    %43 = arith.mulf %41, %42 : vector<1x16x128xf32>
    %c17 = arith.constant 17 : index
    %c1_23 = arith.constant 1 : index
    %c0_24 = arith.constant 0 : index
    %44 = vector.load %arg11[%c17, %c1_23, %c0_24] : memref<18x18x128xf32, #tpu.memory_space<vmem>>, vector<1x16x128xf32>
    tpu.vector_store %arg11[%c17, %c1_23, %c0_24], %43 {strides = array<i32>} : memref<18x18x128xf32, #tpu.memory_space<vmem>>, vector<1x16x128xf32>,
    %cst_25 = arith.constant 0.000000e+00 : f32
    %45 = vector.broadcast %cst_25 : f32 to vector<18x1x128xf32>
    %c0_26 = arith.constant 0 : index
    %c0_27 = arith.constant 0 : index
    %c0_28 = arith.constant 0 : index
    %46 = vector.load %arg11[%c0_26, %c0_27, %c0_28] : memref<18x18x128xf32, #tpu.memory_space<vmem>>, vector<18x1x128xf32>
    tpu.vector_store %arg11[%c0_26, %c0_27, %c0_28], %45 {strides = array<i32>} : memref<18x18x128xf32, #tpu.memory_space<vmem>>, vector<18x1x128xf32>,
    %c0_29 = arith.constant 0 : index
    %c17_30 = arith.constant 17 : index
    %c0_31 = arith.constant 0 : index
    %47 = vector.load %arg11[%c0_29, %c17_30, %c0_31] : memref<18x18x128xf32, #tpu.memory_space<vmem>>, vector<18x1x128xf32>
    tpu.vector_store %arg11[%c0_29, %c17_30, %c0_31], %45 {strides = array<i32>} : memref<18x18x128xf32, #tpu.memory_space<vmem>>, vector<18x1x128xf32>,
    %cst_32 = arith.constant 0.000000e+00 : f32
    %48 = vector.broadcast %cst_32 : f32 to vector<256x128xf32>
    %c0_33 = arith.constant 0 : index
    %c0_34 = arith.constant 0 : index
    %c0_35 = arith.constant 0 : index
    %49 = vector.load %arg11[%c0_33, %c0_34, %c0_35] : memref<18x18x128xf32, #tpu.memory_space<vmem>>, vector<18x16x128xf32>
    %50 = vector.shape_cast %49 : vector<18x16x128xf32> to vector<288x128xf32>
    %51 = vector.extract_strided_slice %50 {offsets = [0, 0], sizes = [256, 128], strides = [1, 1]} : vector<288x128xf32> to vector<256x128xf32>
    %52 = vector.extract_strided_slice %50 {offsets = [16, 0], sizes = [256, 128], strides = [1, 1]} : vector<288x128xf32> to vector<256x128xf32>
    %53 = vector.extract_strided_slice %50 {offsets = [32, 0], sizes = [256, 128], strides = [1, 1]} : vector<288x128xf32> to vector<256x128xf32>
    %54 = tpu.concatenate %51, %52, %53 in 1 : vector<256x128xf32>, vector<256x128xf32>, vector<256x128xf32> -> vector<256x384xf32>
    %c0_36 = arith.constant 0 : index
    %c0_37 = arith.constant 0 : index
    %c0_38 = arith.constant 0 : index
    %55 = vector.load %arg7[%c0_36, %c0_37, %c0_38] : memref<3x384x128xf32, #tpu.memory_space<vmem>>, vector<1x384x128xf32>
    %56 = vector.shape_cast %55 : vector<1x384x128xf32> to vector<384x128xf32>
    %cst_39 = arith.constant dense<0.000000e+00> : vector<256x128xf32>
    %57 = tpu.matmul %54, %56, %cst_39 {dimension_numbers = #tpu.dot_dimension_numbers<[1], [0], [0], [1], [0, 0, 1, 1], [], []>} : vector<256x384xf32>, vector<384x128xf32>, vector<256x128xf32> -> vector<256x128xf32>
    %58 = arith.addf %48, %57 : vector<256x128xf32>
    %c0_40 = arith.constant 0 : index
    %c1_41 = arith.constant 1 : index
    %c0_42 = arith.constant 0 : index
    %59 = vector.load %arg11[%c0_40, %c1_41, %c0_42] : memref<18x18x128xf32, #tpu.memory_space<vmem>>, vector<18x16x128xf32>
    %60 = vector.shape_cast %59 : vector<18x16x128xf32> to vector<288x128xf32>
    %61 = vector.extract_strided_slice %60 {offsets = [0, 0], sizes = [256, 128], strides = [1, 1]} : vector<288x128xf32> to vector<256x128xf32>
    %62 = vector.extract_strided_slice %60 {offsets = [16, 0], sizes = [256, 128], strides = [1, 1]} : vector<288x128xf32> to vector<256x128xf32>
    %63 = vector.extract_strided_slice %60 {offsets = [32, 0], sizes = [256, 128], strides = [1, 1]} : vector<288x128xf32> to vector<256x128xf32>
    %64 = tpu.concatenate %61, %62, %63 in 1 : vector<256x128xf32>, vector<256x128xf32>, vector<256x128xf32> -> vector<256x384xf32>
    %c1_43 = arith.constant 1 : index
    %c0_44 = arith.constant 0 : index
    %c0_45 = arith.constant 0 : index
    %65 = vector.load %arg7[%c1_43, %c0_44, %c0_45] : memref<3x384x128xf32, #tpu.memory_space<vmem>>, vector<1x384x128xf32>
    %66 = vector.shape_cast %65 : vector<1x384x128xf32> to vector<384x128xf32>
    %cst_46 = arith.constant dense<0.000000e+00> : vector<256x128xf32>
    %67 = tpu.matmul %64, %66, %cst_46 {dimension_numbers = #tpu.dot_dimension_numbers<[1], [0], [0], [1], [0, 0, 1, 1], [], []>} : vector<256x384xf32>, vector<384x128xf32>, vector<256x128xf32> -> vector<256x128xf32>
    %68 = arith.addf %58, %67 : vector<256x128xf32>
    %c0_47 = arith.constant 0 : index
    %c2 = arith.constant 2 : index
    %c0_48 = arith.constant 0 : index
    %69 = vector.load %arg11[%c0_47, %c2, %c0_48] : memref<18x18x128xf32, #tpu.memory_space<vmem>>, vector<18x16x128xf32>
    %70 = vector.shape_cast %69 : vector<18x16x128xf32> to vector<288x128xf32>
    %71 = vector.extract_strided_slice %70 {offsets = [0, 0], sizes = [256, 128], strides = [1, 1]} : vector<288x128xf32> to vector<256x128xf32>
    %72 = vector.extract_strided_slice %70 {offsets = [16, 0], sizes = [256, 128], strides = [1, 1]} : vector<288x128xf32> to vector<256x128xf32>
    %73 = vector.extract_strided_slice %70 {offsets = [32, 0], sizes = [256, 128], strides = [1, 1]} : vector<288x128xf32> to vector<256x128xf32>
    %74 = tpu.concatenate %71, %72, %73 in 1 : vector<256x128xf32>, vector<256x128xf32>, vector<256x128xf32> -> vector<256x384xf32>
    %c2_49 = arith.constant 2 : index
    %c0_50 = arith.constant 0 : index
    %c0_51 = arith.constant 0 : index
    %75 = vector.load %arg7[%c2_49, %c0_50, %c0_51] : memref<3x384x128xf32, #tpu.memory_space<vmem>>, vector<1x384x128xf32>
    %76 = vector.shape_cast %75 : vector<1x384x128xf32> to vector<384x128xf32>
    %cst_52 = arith.constant dense<0.000000e+00> : vector<256x128xf32>
    %77 = tpu.matmul %74, %76, %cst_52 {dimension_numbers = #tpu.dot_dimension_numbers<[1], [0], [0], [1], [0, 0, 1, 1], [], []>} : vector<256x384xf32>, vector<384x128xf32>, vector<256x128xf32> -> vector<256x128xf32>
    %78 = arith.addf %68, %77 : vector<256x128xf32>
    %c0_53 = arith.constant 0 : index
    %c0_54 = arith.constant 0 : index
    %79 = vector.load %arg8[%c0_53, %c0_54] : memref<1x128xf32, #tpu.memory_space<vmem>>, vector<1x128xf32>
    %80 = vector.broadcast %79 : vector<1x128xf32> to vector<256x128xf32>
    %81 = arith.addf %78, %80 : vector<256x128xf32>
    %82 = vector.shape_cast %81 : vector<256x128xf32> to vector<16x16x128xf32>
    %c0_55 = arith.constant 0 : index
    %c0_56 = arith.constant 0 : index
    %c0_57 = arith.constant 0 : index
    %c0_58 = arith.constant 0 : index
    %83 = vector.load %arg9[%c0_55, %c0_56, %c0_57, %c0_58] : memref<1x16x16x128xf32, #tpu.memory_space<vmem>>, vector<1x16x16x128xf32>
    %84 = vector.shape_cast %83 : vector<1x16x16x128xf32> to vector<16x16x128xf32>
    %85 = vector.shape_cast %82 : vector<16x16x128xf32> to vector<1x16x16x128xf32>
    tpu.vector_store %arg9[%c0_55, %c0_56, %c0_57, %c0_58], %85 {strides = array<i32>} : memref<1x16x16x128xf32, #tpu.memory_space<vmem>>, vector<1x16x16x128xf32>,
    %cst_59 = arith.constant dense<0.000000e+00> : vector<128xf32>
    %86 = vector.multi_reduction <add>, %81, %cst_59 [0] : vector<256x128xf32> to vector<128xf32>
    %87 = vector.shape_cast %86 : vector<128xf32> to vector<1x128xf32>
    %c0_60 = arith.constant 0 : index
    %c0_61 = arith.constant 0 : index
    %c0_62 = arith.constant 0 : index
    %c0_63 = arith.constant 0 : index
    %88 = vector.load %arg10[%c0_60, %c0_61, %c0_62, %c0_63] : memref<1x1x2x128xf32, #tpu.memory_space<vmem>>, vector<1x1x1x128xf32>
    %89 = vector.shape_cast %88 : vector<1x1x1x128xf32> to vector<1x128xf32>
    %90 = vector.shape_cast %87 : vector<1x128xf32> to vector<1x1x1x128xf32>
    tpu.vector_store %arg10[%c0_60, %c0_61, %c0_62, %c0_63], %90 {strides = array<i32>} : memref<1x1x2x128xf32, #tpu.memory_space<vmem>>, vector<1x1x1x128xf32>,
    %91 = arith.mulf %81, %81 : vector<256x128xf32>
    %cst_64 = arith.constant dense<0.000000e+00> : vector<128xf32>
    %92 = vector.multi_reduction <add>, %91, %cst_64 [0] : vector<256x128xf32> to vector<128xf32>
    %93 = vector.shape_cast %92 : vector<128xf32> to vector<1x128xf32>
    %c0_65 = arith.constant 0 : index
    %c0_66 = arith.constant 0 : index
    %c1_67 = arith.constant 1 : index
    %c0_68 = arith.constant 0 : index
    %94 = vector.load %arg10[%c0_65, %c0_66, %c1_67, %c0_68] : memref<1x1x2x128xf32, #tpu.memory_space<vmem>>, vector<1x1x1x128xf32>
    %95 = vector.shape_cast %94 : vector<1x1x1x128xf32> to vector<1x128xf32>
    %96 = vector.shape_cast %93 : vector<1x128xf32> to vector<1x1x1x128xf32>
    tpu.vector_store %arg10[%c0_65, %c0_66, %c1_67, %c0_68], %96 {strides = array<i32>} : memref<1x1x2x128xf32, #tpu.memory_space<vmem>>, vector<1x1x1x128xf32>,
    return
  }
  func.func @transform_0(%arg0: i32, %arg1: i32) -> (i32, i32, i32, i32) {
    %c0_i32 = arith.constant 0 : i32
    %c0_i32_0 = arith.constant 0 : i32
    %c0_i32_1 = arith.constant 0 : i32
    return %arg0, %arg1, %c0_i32, %c0_i32_0 : i32, i32, i32, i32
  }
  func.func @transform_1(%arg0: i32, %arg1: i32) -> (i32, i32, i32, i32) {
    %c16_i32 = arith.constant 16 : i32
    %0 = arith.muli %arg1, %c16_i32 : i32
    %c1_i32 = arith.constant 1 : i32
    %1 = arith.subi %0, %c1_i32 : i32
    %c0_i32 = arith.constant 0 : i32
    %2 = arith.maxsi %1, %c0_i32 : i32
    %c0_i32_0 = arith.constant 0 : i32
    %c0_i32_1 = arith.constant 0 : i32
    %c0_i32_2 = arith.constant 0 : i32
    return %arg0, %2, %c0_i32_0, %c0_i32_1 : i32, i32, i32, i32
  }
  func.func @transform_2(%arg0: i32, %arg1: i32) -> (i32, i32, i32, i32) {
    %c16_i32 = arith.constant 16 : i32
    %0 = arith.muli %arg1, %c16_i32 : i32
    %c16_i32_0 = arith.constant 16 : i32
    %1 = arith.addi %0, %c16_i32_0 : i32
    %c15_i32 = arith.constant 15 : i32
    %2 = arith.minsi %1, %c15_i32 : i32
    %c0_i32 = arith.constant 0 : i32
    %c0_i32_1 = arith.constant 0 : i32
    %c0_i32_2 = arith.constant 0 : i32
    return %arg0, %2, %c0_i32, %c0_i32_1 : i32, i32, i32, i32
  }
  func.func @transform_3(%arg0: i32, %arg1: i32) -> (i32, i32) {
    %c0_i32 = arith.constant 0 : i32
    %c0_i32_0 = arith.constant 0 : i32
    %c0_i32_1 = arith.constant 0 : i32
    return %c0_i32, %c0_i32_0 : i32, i32
  }
  func.func @transform_4(%arg0: i32, %arg1: i32) -> (i32, i32) {
    %c0_i32 = arith.constant 0 : i32
    %c0_i32_0 = arith.constant 0 : i32
    %c0_i32_1 = arith.constant 0 : i32
    return %c0_i32, %c0_i32_0 : i32, i32
  }
  func.func @transform_5(%arg0: i32, %arg1: i32) -> (i32, i32, i32) {
    %c0_i32 = arith.constant 0 : i32
    %c0_i32_0 = arith.constant 0 : i32
    %c0_i32_1 = arith.constant 0 : i32
    %c0_i32_2 = arith.constant 0 : i32
    return %c0_i32, %c0_i32_0, %c0_i32_1 : i32, i32, i32
  }
  func.func @transform_6(%arg0: i32, %arg1: i32) -> (i32, i32) {
    %c0_i32 = arith.constant 0 : i32
    %c0_i32_0 = arith.constant 0 : i32
    %c0_i32_1 = arith.constant 0 : i32
    return %c0_i32, %c0_i32_0 : i32, i32
  }
  func.func @transform_7(%arg0: i32, %arg1: i32) -> (i32, i32, i32, i32) {
    %c0_i32 = arith.constant 0 : i32
    %c0_i32_0 = arith.constant 0 : i32
    %c0_i32_1 = arith.constant 0 : i32
    return %arg0, %arg1, %c0_i32, %c0_i32_0 : i32, i32, i32, i32
  }
  func.func @transform_8(%arg0: i32, %arg1: i32) -> (i32, i32, i32, i32) {
    %c0_i32 = arith.constant 0 : i32
    %c0_i32_0 = arith.constant 0 : i32
    %c0_i32_1 = arith.constant 0 : i32
    return %arg0, %arg1, %c0_i32, %c0_i32_0 : i32, i32, i32, i32
  }
}

</mosaic_0001>

<llo_original>
// kernel: double_conv.2
$region0: #{double_conv.2}
  #allocation0 [shape = 'u32[]', space=smem, size = 0x4, offset = 0x4, fixed_abs, tag = 'smem constant byte address 0x4 - core index']
  #allocation1 [shape = 'u32[144,128]{1,0:T(1,128)}', space=vmem, size = 0x12000, scoped, tag = 'internal scratch']
  %s0 = inlined_call_operand.vmem [shape: f32[2,16,16,40], index: 0, kind: input, shape index: {}]
  %s1 = inlined_call_operand.vmem [shape: f32[40,128], index: 1, kind: input, shape index: {}]
  %s2 = inlined_call_operand.vmem [shape: f32[1,128], index: 2, kind: input, shape index: {}]
  %s3 = inlined_call_operand.vmem [shape: f32[2,16,16,128], index: 3, kind: output, shape index: {0}]
  %s4 = inlined_call_operand.vmem [shape: f32[2,1,2,128], index: 4, kind: output, shape index: {1}]
  %5 = xla_tuple %s3, %s4
  %s6 = sld [smem:[#allocation0]]
  $region53: #{double_conv.2} parent=0
    _
  %s8 = ssub.s32 1, %s6
  %s9 = scalar_select 0, %s8, %s6
  loop: start=0, step=1, limit=4
  $region2: #{double_conv.2} parent=0 // loop_pre_header
    _
  $region3: #{double_conv.2} parent=0 // loop_header
    %s11 = sphi 0, %s15
    %p12 = scmp.ge.s32.totalorder %s11, 4
    %s18 = sphi 0, %s30
    %s19 = sphi 0, %s26
    %s20 = sphi 0, %s18
    %s21 = sphi 0, %s19
    %s22 = sphi 0, %s20
    %s23 = sphi 0, %s21
    %s35 = sphi 0, %s37
    %s38 = sphi 0, %s35
    %s39 = sphi 0, %s38
    %s55 = sphi 0, %s39
    %s59 = sphi 0, %s59
    %s61 = sphi 0, %s59
    %s62 = sphi 0, %s61
    %s76 = sphi 0, %s62
    %s80 = sphi 0, %s80
    %s82 = sphi 0, %s80
    %s83 = sphi 0, %s82
    %s97 = sphi 0, %s83
    %s105 = sphi 0, %s107
    %s108 = sphi 0, %s105
    %s109 = sphi 0, %s108
    %s125 = sphi 0, %s109
    %s133 = sphi 0, %s135
    %s136 = sphi 0, %s133
    %s137 = sphi 0, %s136
    %s153 = sphi 0, %s137
  $region4: #{double_conv.2} parent=0 // loop_header_branch
    %14 = sbr.rel (%p12) target = $region8
  $region5: #{double_conv.2} parent=0 // loop_body
    %s16 = ssub.s32 %s11, 1
    %s17 = ssub.s32 %s11, 2
    %s24 = sadd.s32 1, %s19
    %p25 = scmp.ge.s32.totalorder %s24, 1
    %s26 = scalar_select %p25, 0, %s24
    %s27 = sadd.s32 1, %s18
    %s28 = scalar_select %p25, %s27, %s18
    %p29 = scmp.ge.s32.totalorder %s28, 2
    %s30 = scalar_select %p29, 0, %s28
    %s31 = ssub.s32 %s18, %s30
    %s32 = ssub.s32 %s19, %s26
    %s33 = sor.u32 %s31, %s32
    %p34 = scmp.eq.s32.totalorder %s33, 0
    %s36 = sadd.s32 %s35, 1
    %s37 = scalar_select %p34, %s35, %s36
    %p40 = pneg %p34
    %p41 = scmp.eq.s32.totalorder %s11, 1
    %p42 = por %p40, %p41
    %p43 = scmp.ne.s32.totalorder %s35, %s38
    %p44 = scmp.eq.s32.totalorder %s11, 0
    %p45 = por %p43, %p44
    %p46 = scmp.ne.s32.totalorder %s35, %s38
    %p47 = scmp.eq.s32.totalorder %s16, 1
    %p48 = por %p46, %p47
    %p49 = scmp.ne.s32.totalorder %s38, %s39
    %p50 = scmp.eq.s32.totalorder %s16, 0
    %p51 = por %p49, %p50
    %p52 = scmp.ne.s32.totalorder %s38, %s39
    %p53 = scmp.eq.s32.totalorder %s17, 1
    %p54 = por %p52, %p53
    %p56 = scmp.ne.s32.totalorder %s39, %s55
    %p57 = scmp.eq.s32.totalorder %s17, 0
    %p58 = por %p56, %p57
    %s60 = sadd.s32 %s59, 1
    %p63 = scmp.eq.s32.totalorder %s11, 1
    %p64 = scmp.ne.s32.totalorder %s59, %s61
    %p65 = scmp.eq.s32.totalorder %s11, 0
    %p66 = por %p64, %p65
    %p67 = scmp.ne.s32.totalorder %s59, %s61
    %p68 = scmp.eq.s32.totalorder %s16, 1
    %p69 = por %p67, %p68
    %p70 = scmp.ne.s32.totalorder %s61, %s62
    %p71 = scmp.eq.s32.totalorder %s16, 0
    %p72 = por %p70, %p71
    %p73 = scmp.ne.s32.totalorder %s61, %s62
    %p74 = scmp.eq.s32.totalorder %s17, 1
    %p75 = por %p73, %p74
    %p77 = scmp.ne.s32.totalorder %s62, %s76
    %p78 = scmp.eq.s32.totalorder %s17, 0
    %p79 = por %p77, %p78
    %s81 = sadd.s32 %s80, 1
    %p84 = scmp.eq.s32.totalorder %s11, 1
    %p85 = scmp.ne.s32.totalorder %s80, %s82
    %p86 = scmp.eq.s32.totalorder %s11, 0
    %p87 = por %p85, %p86
    %p88 = scmp.ne.s32.totalorder %s80, %s82
    %p89 = scmp.eq.s32.totalorder %s16, 1
    %p90 = por %p88, %p89
    %p91 = scmp.ne.s32.totalorder %s82, %s83
    %p92 = scmp.eq.s32.totalorder %s16, 0
    %p93 = por %p91, %p92
    %p94 = scmp.ne.s32.totalorder %s82, %s83
    %p95 = scmp.eq.s32.totalorder %s17, 1
    %p96 = por %p94, %p95
    %p98 = scmp.ne.s32.totalorder %s83, %s97
    %p99 = scmp.eq.s32.totalorder %s17, 0
    %p100 = por %p98, %p99
    %s101 = ssub.s32 %s18, %s30
    %s102 = ssub.s32 %s19, %s26
    %s103 = sor.u32 %s101, %s102
    %p104 = scmp.eq.s32.totalorder %s103, 0
    %s106 = sadd.s32 %s105, 1
    %s107 = scalar_select %p104, %s105, %s106
    %p110 = pneg %p104
    %p111 = scmp.eq.s32.totalorder %s11, 1
    %p112 = por %p110, %p111
    %p113 = scmp.ne.s32.totalorder %s105, %s108
    %p114 = scmp.eq.s32.totalorder %s11, 0
    %p115 = por %p113, %p114
    %p116 = scmp.ne.s32.totalorder %s105, %s108
    %p117 = scmp.eq.s32.totalorder %s16, 1
    %p118 = por %p116, %p117
    %p119 = scmp.ne.s32.totalorder %s108, %s109
    %p120 = scmp.eq.s32.totalorder %s16, 0
    %p121 = por %p119, %p120
    %p122 = scmp.ne.s32.totalorder %s108, %s109
    %p123 = scmp.eq.s32.totalorder %s17, 1
    %p124 = por %p122, %p123
    %p126 = scmp.ne.s32.totalorder %s109, %s125
    %p127 = scmp.eq.s32.totalorder %s17, 0
    %p128 = por %p126, %p127
    %s129 = ssub.s32 %s18, %s30
    %s130 = ssub.s32 %s19, %s26
    %s131 = sor.u32 %s129, %s130
    %p132 = scmp.eq.s32.totalorder %s131, 0
    %s134 = sadd.s32 %s133, 1
    %s135 = scalar_select %p132, %s133, %s134
    %p138 = pneg %p132
    %p139 = scmp.eq.s32.totalorder %s11, 1
    %p140 = por %p138, %p139
    %p141 = scmp.ne.s32.totalorder %s133, %s136
    %p142 = scmp.eq.s32.totalorder %s11, 0
    %p143 = por %p141, %p142
    %p144 = scmp.ne.s32.totalorder %s133, %s136
    %p145 = scmp.eq.s32.totalorder %s16, 1
    %p146 = por %p144, %p145
    %p147 = scmp.ne.s32.totalorder %s136, %s137
    %p148 = scmp.eq.s32.totalorder %s16, 0
    %p149 = por %p147, %p148
    %p150 = scmp.ne.s32.totalorder %s136, %s137
    %p151 = scmp.eq.s32.totalorder %s17, 1
    %p152 = por %p150, %p151
    %p154 = scmp.ne.s32.totalorder %s137, %s153
    %p155 = scmp.eq.s32.totalorder %s17, 0
    %p156 = por %p154, %p155
    %p157 = scmp.le.s32.totalorder 1, %s11
    %p158 = scmp.lt.s32.totalorder %s11, 3
    %p159 = pnand %p157, %p158
    %p160 = pneg %p159
    // Predicated region
    $region9: #{double_conv.2} parent=5 // pred_check
      _
    $region10: #{double_conv.2} parent=5 // pred_check_branch
      %162 = sbr.rel (%p159) target = $region12
    $region11: #{double_conv.2} parent=5 // pred_region
      %s163 = ssub.s32 %s11, 1
      // Predicated region
      $region13: #{double_conv.2} parent=11 // pred_check
        %p164 = pneg %p72
      $region14: #{double_conv.2} parent=11 // pred_check_branch
        %166 = sbr.rel (%p164) target = $region16
      $region15: #{double_conv.2} parent=11 // pred_region
        _
      $region16: #{double_conv.2} parent=11 // pred_fallthru
        _
      // Predicated region
      $region17: #{double_conv.2} parent=11 // pred_check
        %p167 = pneg %p93
      $region18: #{double_conv.2} parent=11 // pred_check_branch
        %169 = sbr.rel (%p167) target = $region20
      $region19: #{double_conv.2} parent=11 // pred_region
        _
      $region20: #{double_conv.2} parent=11 // pred_fallthru
        _
    $region12: #{double_conv.2} parent=5 // pred_fallthru
      _
    %p170 = scmp.lt.s32.totalorder %s11, 2
    // Predicated region
    $region21: #{double_conv.2} parent=5 // pred_check
      %p171 = pneg %p170
    $region22: #{double_conv.2} parent=5 // pred_check_branch
      %173 = sbr.rel (%p171) target = $region24
    $region23: #{double_conv.2} parent=5 // pred_region
      // Predicated region
      $region25: #{double_conv.2} parent=23 // pred_check
        %p174 = pneg %p45
      $region26: #{double_conv.2} parent=23 // pred_check_branch
        %176 = sbr.rel (%p174) target = $region28
      $region27: #{double_conv.2} parent=23 // pred_region
        %s177 = smul.u32 16, %s19
        %p178 = scmp.lt.s32.totalorder %s18, 1
        %s179 = scalar_select %p178, %s18, 1
        %p180 = scmp.lt.s32.totalorder %s177, 15
        %s181 = scalar_select %p180, %s177, 15
        %s182 = smul.addr %s181, 2
        %s183 = smul.addr %s179, 32
        %s184 = sadd.s32 %s182, %s183
        %s185 = smul.addr %s184, 8
        %s186 = scalar_lea.vmem %s0, %s185
        %s187 = smul.u32 16, %s19
      $region28: #{double_conv.2} parent=23 // pred_fallthru
        _
    $region24: #{double_conv.2} parent=5 // pred_fallthru
      _
    %p188 = scmp.le.s32.totalorder 1, %s11
    %p189 = scmp.lt.s32.totalorder %s11, 3
    %p190 = pnand %p188, %p189
    %p191 = pneg %p190
    // Predicated region
    $region29: #{double_conv.2} parent=5 // pred_check
      _
    $region30: #{double_conv.2} parent=5 // pred_check_branch
      %193 = sbr.rel (%p190) target = $region32
    $region31: #{double_conv.2} parent=5 // pred_region
      %s194 = ssub.s32 %s11, 1
      %s195 = smul.u32 16, %s21
      %p196 = scmp.lt.s32.totalorder %s20, 1
      %s197 = scalar_select %p196, %s20, 1
      %p198 = scmp.lt.s32.totalorder %s195, 15
      %s199 = scalar_select %p198, %s195, 15
      %s200 = smul.addr %s199, 2
      %s201 = smul.addr %s197, 32
      %s202 = sadd.s32 %s200, %s201
      %s203 = smul.addr %s202, 8
      %s204 = scalar_lea.vmem %s0, %s203
      %p205 = pneg %p51
      %p206 = pneg %p48
      %p207 = pneg %p72
      %p208 = pneg %p69
      %p209 = pneg %p93
      %p210 = pneg %p90
      %p211 = pneg %p121
      %p212 = pneg %p118
      %s213 = smul.u32 16, %s21
      %p214 = scmp.lt.s32.totalorder %s20, 1
      %s215 = scalar_select %p214, %s20, 1
      %p216 = scmp.lt.s32.totalorder %s213, 15
      %s217 = scalar_select %p216, %s213, 15
      %s218 = smul.addr %s217, 2
      %s219 = smul.addr %s215, 32
      %s220 = sadd.s32 %s218, %s219
      %s221 = smul.addr %s220, 8
      %s222 = scalar_lea.vmem %s3, %s221
      %p223 = pneg %p149
      %p224 = pneg %p146
      %p225 = scmp.lt.s32.totalorder %s20, 1
      %s226 = scalar_select %p225, %s20, 1
      %p227 = scmp.lt.s32.totalorder %s21, 0
      %s228 = scalar_select %p227, %s21, 0
      %s229 = sadd.s32 %s228, %s226
      %s230 = smul.addr %s229, 2
      %s231 = scalar_lea.vmem %s4, %s230
      %s232 = smul.u32 16, %s21
      %p233 = scmp.lt.s32.totalorder %s20, 1
      %s234 = scalar_select %p233, %s20, 1
      %p235 = scmp.lt.s32.totalorder %s232, 15
      %s236 = scalar_select %p235, %s232, 15
      %s237 = smul.addr %s236, 2
      %s238 = smul.addr %s234, 32
      %s239 = sadd.s32 %s237, %s238
      %s240 = smul.addr %s239, 8
      %s241 = scalar_lea.vmem %s0, %s240
      %s242 = smul.u32 16, %s21
      %s243 = smul.u32 16, %s21
      %p244 = scmp.lt.s32.totalorder %s20, 1
      %s245 = scalar_select %p244, %s20, 1
      %p246 = scmp.lt.s32.totalorder %s243, 15
      %s247 = scalar_select %p246, %s243, 15
      %s248 = smul.addr %s247, 2
      %s249 = smul.addr %s245, 32
      %s250 = sadd.s32 %s248, %s249
      %s251 = smul.addr %s250, 8
      %s252 = scalar_lea.vmem %s3, %s251
      %s253 = smul.u32 16, %s21
      %p254 = scmp.lt.s32.totalorder %s20, 1
      %s255 = scalar_select %p254, %s20, 1
      %p256 = scmp.lt.s32.totalorder %s21, 0
      %s257 = scalar_select %p256, %s21, 0
      %s258 = sadd.s32 %s257, %s255
      %s259 = smul.addr %s258, 2
      %s260 = scalar_lea.vmem %s4, %s259
      %v261 = vld [vmem:[%s241] sm:$0xff]
      %v262 = vld [vmem:[%s241 + $0x8] sm:$0xff]
      %v263 = vld [vmem:[%s241 + $0x10] sm:$0xff]
      %v264 = vld [vmem:[%s241 + $0x18] sm:$0xff]
      %v265 = vld [vmem:[%s241 + $0x20] sm:$0xff]
      %v266 = vld [vmem:[%s241 + $0x28] sm:$0xff]
      %v267 = vld [vmem:[%s241 + $0x30] sm:$0xff]
      %v268 = vld [vmem:[%s241 + $0x38] sm:$0xff]
      %v269 = vld [vmem:[%s241 + $0x40] sm:$0xff]
      %v270 = vld [vmem:[%s241 + $0x48] sm:$0xff]
      %v271 = vld [vmem:[%s241 + $0x50] sm:$0xff]
      %v272 = vld [vmem:[%s241 + $0x58] sm:$0xff]
      %v273 = vld [vmem:[%s241 + $0x60] sm:$0xff]
      %v274 = vld [vmem:[%s241 + $0x68] sm:$0xff]
      %v275 = vld [vmem:[%s241 + $0x70] sm:$0xff]
      %v276 = vld [vmem:[%s241 + $0x78] sm:$0xff]
      %v277 = vld [vmem:[%s241 + $0x80] sm:$0xff]
      %v278 = vld [vmem:[%s241 + $0x88] sm:$0xff]
      %v279 = vld [vmem:[%s241 + $0x90] sm:$0xff]
      %v280 = vld [vmem:[%s241 + $0x98] sm:$0xff]
      %v281 = vld [vmem:[%s241 + $0xa0] sm:$0xff]
      %v282 = vld [vmem:[%s241 + $0xa8] sm:$0xff]
      %v283 = vld [vmem:[%s241 + $0xb0] sm:$0xff]
      %v284 = vld [vmem:[%s241 + $0xb8] sm:$0xff]
      %v285 = vld [vmem:[%s241 + $0xc0] sm:$0xff]
      %v286 = vld [vmem:[%s241 + $0xc8] sm:$0xff]
      %v287 = vld [vmem:[%s241 + $0xd0] sm:$0xff]
      %v288 = vld [vmem:[%s241 + $0xd8] sm:$0xff]
      %v289 = vld [vmem:[%s241 + $0xe0] sm:$0xff]
      %v290 = vld [vmem:[%s241 + $0xe8] sm:$0xff]
      %v291 = vld [vmem:[%s241 + $0xf0] sm:$0xff]
      %v292 = vld [vmem:[%s241 + $0xf8] sm:$0xff]
      %v293 = vld [vmem:[%s1] sm:$0xff]
      %v294 = vld [vmem:[%s1 + $0x8] sm:$0xff]
      %v295 = vld [vmem:[%s1 + $0x10] sm:$0xff]
      %v296 = vld [vmem:[%s1 + $0x18] sm:$0xff]
      %v297 = vld [vmem:[%s1 + $0x20] sm:$0xff]
      %v298 = vld [vmem:[%s2] sm:$0x1]
      %v300 = vlaneseq
      %v301 = vshrl.u32 %v300, 7
      %v302 = vsub.s32 0, %v301
      %v303 = vrot.slane %v298, %v302
      %vm305 = vcmask 326656
      %v307 = vsel %vm305, %v261, 0
      %v310 = vsel %vm305, %v262, 0
      %v313 = vsel %vm305, %v263, 0
      %v316 = vsel %vm305, %v264, 0
      %v319 = vsel %vm305, %v265, 0
      %v322 = vsel %vm305, %v266, 0
      %v325 = vsel %vm305, %v267, 0
      %v328 = vsel %vm305, %v268, 0
      %v331 = vsel %vm305, %v269, 0
      %v334 = vsel %vm305, %v270, 0
      %v337 = vsel %vm305, %v271, 0
      %v340 = vsel %vm305, %v272, 0
      %v343 = vsel %vm305, %v273, 0
      %v346 = vsel %vm305, %v274, 0
      %v349 = vsel %vm305, %v275, 0
      %v352 = vsel %vm305, %v276, 0
      %v355 = vsel %vm305, %v277, 0
      %v358 = vsel %vm305, %v278, 0
      %v361 = vsel %vm305, %v279, 0
      %v364 = vsel %vm305, %v280, 0
      %v367 = vsel %vm305, %v281, 0
      %v370 = vsel %vm305, %v282, 0
      %v373 = vsel %vm305, %v283, 0
      %v376 = vsel %vm305, %v284, 0
      %v379 = vsel %vm305, %v285, 0
      %v382 = vsel %vm305, %v286, 0
      %v385 = vsel %vm305, %v287, 0
      %v388 = vsel %vm305, %v288, 0
      %v391 = vsel %vm305, %v289, 0
      %v394 = vsel %vm305, %v290, 0
      %v397 = vsel %vm305, %v291, 0
      %v400 = vsel %vm305, %v292, 0
      %402 = vmatprep.subr.mxu0 0.0
      %403 = vmatpush1.msra.mxu0 %v293
      %404 = vmatprep.subr.mxu0 0.0
      %405 = vmatpush1.msra.mxu0 %v294
      %406 = vmatprep.subr.mxu0 0.0
      %407 = vmatpush1.msra.mxu0 %v295
      %408 = vmatprep.subr.mxu0 0.0
      %409 = vmatpush1.msra.mxu0 %v296
      %410 = vmatprep.subr.mxu0 0.0
      %411 = vmatpush1.msra.mxu0 %v297
      %412 = vmatprep.subr.mxu0 0.0
      %413 = vmatpush1.msra.mxu0 0.0
      %414 = vmatprep.subr.mxu0 0.0
      %415 = vmatpush1.msra.mxu0 0.0
      %416 = vmatprep.subr.mxu0 0.0
      %417 = vmatpush1.msra.mxu0 0.0
      %418 = vmatprep.subr.mxu0 0.0
      %419 = vmatpush1.msra.mxu0 0.0
      %420 = vmatprep.subr.mxu0 0.0
      %421 = vmatpush1.msra.mxu0 0.0
      %422 = vmatprep.subr.mxu0 0.0
      %423 = vmatpush1.msra.mxu0 0.0
      %424 = vmatprep.subr.mxu0 0.0
      %425 = vmatpush1.msra.mxu0 0.0
      %426 = vmatprep.subr.mxu0 0.0
      %427 = vmatpush1.msra.mxu0 0.0
      %428 = vmatprep.subr.mxu0 0.0
      %429 = vmatpush1.msra.mxu0 0.0
      %430 = vmatprep.subr.mxu0 0.0
      %431 = vmatpush1.msra.mxu0 0.0
      %432 = vmatprep.subr.mxu0 0.0
      %433 = vmatpush1.msra.mxu0 0.0
      %434 = vmatprep.subr.mxu0 0.0
      %435 = vmatpush1.msra.mxu0 0.0
      %436 = vmatprep.subr.mxu0 0.0
      %437 = vmatpush1.msra.mxu0 0.0
      %438 = vmatprep.subr.mxu0 0.0
      %439 = vmatpush1.msra.mxu0 0.0
      %440 = vmatprep.subr.mxu0 0.0
      %441 = vmatpush1.msra.mxu0 0.0
      %442 = vmatprep.subr.mxu0 0.0
      %443 = vmatpush1.msra.mxu0 0.0
      %444 = vmatprep.subr.mxu0 0.0
      %445 = vmatpush1.msra.mxu0 0.0
      %446 = vmatprep.subr.mxu0 0.0
      %447 = vmatpush1.msra.mxu0 0.0
      %448 = vmatprep.subr.mxu0 0.0
      %449 = vmatpush1.msra.mxu0 0.0
      %450 = vmatprep.subr.mxu0 0.0
      %451 = vmatpush1.msra.mxu0 0.0
      %452 = vmatprep.subr.mxu0 0.0
      %453 = vmatpush1.msra.mxu0 0.0
      %454 = vmatprep.subr.mxu0 0.0
      %455 = vmatpush1.msra.mxu0 0.0
      %456 = vmatprep.subr.mxu0 0.0
      %457 = vmatpush1.msra.mxu0 0.0
      %458 = vmatprep.subr.mxu0 0.0
      %459 = vmatpush1.msra.mxu0 0.0
      %460 = vmatprep.subr.mxu0 0.0
      %461 = vmatpush1.msra.mxu0 0.0
      %462 = vmatprep.subr.mxu0 0.0
      %463 = vmatpush1.msra.mxu0 0.0
      %464 = vmatprep.subr.mxu0 0.0
      %465 = vmatpush1.msra.mxu0 0.0
      %466 = vmatprep.mubr.f32.mxu0 0.0
      %467 = vmatmul.mubr.f32.gmra.mrb[0].mxu0 %v307
      %v468 = vpop.f32.mrb[0].mxu0
      %v469 = vadd.f32 %v303, %v468
      %v470 = vpop.f32.mrb[0].mxu0
      %471 = vmatprep.mubr.f32.mxu0 0.0
      %472 = vmatmul.mubr.f32.gmra.mrb[0].mxu0 %v310
      %v473 = vpop.f32.mrb[0].mxu0
      %v474 = vadd.f32 %v303, %v473
      %v475 = vpop.f32.mrb[0].mxu0
      %476 = vmatprep.mubr.f32.mxu0 0.0
      %477 = vmatmul.mubr.f32.gmra.mrb[0].mxu0 %v313
      %v478 = vpop.f32.mrb[0].mxu0
      %v479 = vadd.f32 %v303, %v478
      %v480 = vpop.f32.mrb[0].mxu0
      %481 = vmatprep.mubr.f32.mxu0 0.0
      %482 = vmatmul.mubr.f32.gmra.mrb[0].mxu0 %v316
      %v483 = vpop.f32.mrb[0].mxu0
      %v484 = vadd.f32 %v303, %v483
      %v485 = vpop.f32.mrb[0].mxu0
      %486 = vmatprep.mubr.f32.mxu0 0.0
      %487 = vmatmul.mubr.f32.gmra.mrb[0].mxu0 %v319
      %v488 = vpop.f32.mrb[0].mxu0
      %v489 = vadd.f32 %v303, %v488
      %v490 = vpop.f32.mrb[0].mxu0
      %491 = vmatprep.mubr.f32.mxu0 0.0
      %492 = vmatmul.mubr.f32.gmra.mrb[0].mxu0 %v322
      %v493 = vpop.f32.mrb[0].mxu0
      %v494 = vadd.f32 %v303, %v493
      %v495 = vpop.f32.mrb[0].mxu0
      %496 = vmatprep.mubr.f32.mxu0 0.0
      %497 = vmatmul.mubr.f32.gmra.mrb[0].mxu0 %v325
      %v498 = vpop.f32.mrb[0].mxu0
      %v499 = vadd.f32 %v303, %v498
      %v500 = vpop.f32.mrb[0].mxu0
      %501 = vmatprep.mubr.f32.mxu0 0.0
      %502 = vmatmul.mubr.f32.gmra.mrb[0].mxu0 %v328
      %v503 = vpop.f32.mrb[0].mxu0
      %v504 = vadd.f32 %v303, %v503
      %v505 = vpop.f32.mrb[0].mxu0
      %506 = vmatprep.mubr.f32.mxu0 0.0
      %507 = vmatmul.mubr.f32.gmra.mrb[0].mxu0 %v331
      %v508 = vpop.f32.mrb[0].mxu0
      %v509 = vadd.f32 %v303, %v508
      %v510 = vpop.f32.mrb[0].mxu0
      %511 = vmatprep.mubr.f32.mxu0 0.0
      %512 = vmatmul.mubr.f32.gmra.mrb[0].mxu0 %v334
      %v513 = vpop.f32.mrb[0].mxu0
      %v514 = vadd.f32 %v303, %v513
      %v515 = vpop.f32.mrb[0].mxu0
      %516 = vmatprep.mubr.f32.mxu0 0.0
      %517 = vmatmul.mubr.f32.gmra.mrb[0].mxu0 %v337
      %v518 = vpop.f32.mrb[0].mxu0
      %v519 = vadd.f32 %v303, %v518
      %v520 = vpop.f32.mrb[0].mxu0
      %521 = vmatprep.mubr.f32.mxu0 0.0
      %522 = vmatmul.mubr.f32.gmra.mrb[0].mxu0 %v340
      %v523 = vpop.f32.mrb[0].mxu0
      %v524 = vadd.f32 %v303, %v523
      %v525 = vpop.f32.mrb[0].mxu0
      %526 = vmatprep.mubr.f32.mxu0 0.0
      %527 = vmatmul.mubr.f32.gmra.mrb[0].mxu0 %v343
      %v528 = vpop.f32.mrb[0].mxu0
      %v529 = vadd.f32 %v303, %v528
      %v530 = vpop.f32.mrb[0].mxu0
      %531 = vmatprep.mubr.f32.mxu0 0.0
      %532 = vmatmul.mubr.f32.gmra.mrb[0].mxu0 %v346
      %v533 = vpop.f32.mrb[0].mxu0
      %v534 = vadd.f32 %v303, %v533
      %v535 = vpop.f32.mrb[0].mxu0
      %536 = vmatprep.mubr.f32.mxu0 0.0
      %537 = vmatmul.mubr.f32.gmra.mrb[0].mxu0 %v349
      %v538 = vpop.f32.mrb[0].mxu0
      %v539 = vadd.f32 %v303, %v538
      %v540 = vpop.f32.mrb[0].mxu0
      %541 = vmatprep.mubr.f32.mxu0 0.0
      %542 = vmatmul.mubr.f32.gmra.mrb[0].mxu0 %v352
      %v543 = vpop.f32.mrb[0].mxu0
      %v544 = vadd.f32 %v303, %v543
      %v545 = vpop.f32.mrb[0].mxu0
      %546 = vmatprep.mubr.f32.mxu0 0.0
      %547 = vmatmul.mubr.f32.gmra.mrb[0].mxu0 %v355
      %v548 = vpop.f32.mrb[0].mxu0
      %v549 = vadd.f32 %v303, %v548
      %v550 = vpop.f32.mrb[0].mxu0
      %551 = vmatprep.mubr.f32.mxu0 0.0
      %552 = vmatmul.mubr.f32.gmra.mrb[0].mxu0 %v358
      %v553 = vpop.f32.mrb[0].mxu0
      %v554 = vadd.f32 %v303, %v553
      %v555 = vpop.f32.mrb[0].mxu0
      %556 = vmatprep.mubr.f32.mxu0 0.0
      %557 = vmatmul.mubr.f32.gmra.mrb[0].mxu0 %v361
      %v558 = vpop.f32.mrb[0].mxu0
      %v559 = vadd.f32 %v303, %v558
      %v560 = vpop.f32.mrb[0].mxu0
      %561 = vmatprep.mubr.f32.mxu0 0.0
      %562 = vmatmul.mubr.f32.gmra.mrb[0].mxu0 %v364
      %v563 = vpop.f32.mrb[0].mxu0
      %v564 = vadd.f32 %v303, %v563
      %v565 = vpop.f32.mrb[0].mxu0
      %566 = vmatprep.mubr.f32.mxu0 0.0
      %567 = vmatmul.mubr.f32.gmra.mrb[0].mxu0 %v367
      %v568 = vpop.f32.mrb[0].mxu0
      %v569 = vadd.f32 %v303, %v568
      %v570 = vpop.f32.mrb[0].mxu0
      %571 = vmatprep.mubr.f32.mxu0 0.0
      %572 = vmatmul.mubr.f32.gmra.mrb[0].mxu0 %v370
      %v573 = vpop.f32.mrb[0].mxu0
      %v574 = vadd.f32 %v303, %v573
      %v575 = vpop.f32.mrb[0].mxu0
      %576 = vmatprep.mubr.f32.mxu0 0.0
      %577 = vmatmul.mubr.f32.gmra.mrb[0].mxu0 %v373
      %v578 = vpop.f32.mrb[0].mxu0
      %v579 = vadd.f32 %v303, %v578
      %v580 = vpop.f32.mrb[0].mxu0
      %581 = vmatprep.mubr.f32.mxu0 0.0
      %582 = vmatmul.mubr.f32.gmra.mrb[0].mxu0 %v376
      %v583 = vpop.f32.mrb[0].mxu0
      %v584 = vadd.f32 %v303, %v583
      %v585 = vpop.f32.mrb[0].mxu0
      %586 = vmatprep.mubr.f32.mxu0 0.0
      %587 = vmatmul.mubr.f32.gmra.mrb[0].mxu0 %v379
      %v588 = vpop.f32.mrb[0].mxu0
      %v589 = vadd.f32 %v303, %v588
      %v590 = vpop.f32.mrb[0].mxu0
      %591 = vmatprep.mubr.f32.mxu0 0.0
      %592 = vmatmul.mubr.f32.gmra.mrb[0].mxu0 %v382
      %v593 = vpop.f32.mrb[0].mxu0
      %v594 = vadd.f32 %v303, %v593
      %v595 = vpop.f32.mrb[0].mxu0
      %596 = vmatprep.mubr.f32.mxu0 0.0
      %597 = vmatmul.mubr.f32.gmra.mrb[0].mxu0 %v385
      %v598 = vpop.f32.mrb[0].mxu0
      %v599 = vadd.f32 %v303, %v598
      %v600 = vpop.f32.mrb[0].mxu0
      %601 = vmatprep.mubr.f32.mxu0 0.0
      %602 = vmatmul.mubr.f32.gmra.mrb[0].mxu0 %v388
      %v603 = vpop.f32.mrb[0].mxu0
      %v604 = vadd.f32 %v303, %v603
      %v605 = vpop.f32.mrb[0].mxu0
      %606 = vmatprep.mubr.f32.mxu0 0.0
      %607 = vmatmul.mubr.f32.gmra.mrb[0].mxu0 %v391
      %v608 = vpop.f32.mrb[0].mxu0
      %v609 = vadd.f32 %v303, %v608
      %v610 = vpop.f32.mrb[0].mxu0
      %611 = vmatprep.mubr.f32.mxu0 0.0
      %612 = vmatmul.mubr.f32.gmra.mrb[0].mxu0 %v394
      %v613 = vpop.f32.mrb[0].mxu0
      %v614 = vadd.f32 %v303, %v613
      %v615 = vpop.f32.mrb[0].mxu0
      %616 = vmatprep.mubr.f32.mxu0 0.0
      %617 = vmatmul.mubr.f32.gmra.mrb[0].mxu0 %v397
      %v618 = vpop.f32.mrb[0].mxu0
      %v619 = vadd.f32 %v303, %v618
      %v620 = vpop.f32.mrb[0].mxu0
      %621 = vmatprep.mubr.f32.mxu0 0.0
      %622 = vmatmul.mubr.f32.gmra.mrb[0].mxu0 %v400
      %v623 = vpop.f32.mrb[0].mxu0
      %v624 = vadd.f32 %v303, %v623
      %v625 = vpop.f32.mrb[0].mxu0
      %626 = vdwg.mxu0
      %627 = vst [vmem:[%s252] sm:$0xff] %v469
      %628 = vst [vmem:[%s252 + $0x8] sm:$0xff] %v474
      %629 = vst [vmem:[%s252 + $0x10] sm:$0xff] %v479
      %630 = vst [vmem:[%s252 + $0x18] sm:$0xff] %v484
      %631 = vst [vmem:[%s252 + $0x20] sm:$0xff] %v489
      %632 = vst [vmem:[%s252 + $0x28] sm:$0xff] %v494
      %633 = vst [vmem:[%s252 + $0x30] sm:$0xff] %v499
      %634 = vst [vmem:[%s252 + $0x38] sm:$0xff] %v504
      %635 = vst [vmem:[%s252 + $0x40] sm:$0xff] %v509
      %636 = vst [vmem:[%s252 + $0x48] sm:$0xff] %v514
      %637 = vst [vmem:[%s252 + $0x50] sm:$0xff] %v519
      %638 = vst [vmem:[%s252 + $0x58] sm:$0xff] %v524
      %639 = vst [vmem:[%s252 + $0x60] sm:$0xff] %v529
      %640 = vst [vmem:[%s252 + $0x68] sm:$0xff] %v534
      %641 = vst [vmem:[%s252 + $0x70] sm:$0xff] %v539
      %642 = vst [vmem:[%s252 + $0x78] sm:$0xff] %v544
      %643 = vst [vmem:[%s252 + $0x80] sm:$0xff] %v549
      %644 = vst [vmem:[%s252 + $0x88] sm:$0xff] %v554
      %645 = vst [vmem:[%s252 + $0x90] sm:$0xff] %v559
      %646 = vst [vmem:[%s252 + $0x98] sm:$0xff] %v564
      %647 = vst [vmem:[%s252 + $0xa0] sm:$0xff] %v569
      %648 = vst [vmem:[%s252 + $0xa8] sm:$0xff] %v574
      %649 = vst [vmem:[%s252 + $0xb0] sm:$0xff] %v579
      %650 = vst [vmem:[%s252 + $0xb8] sm:$0xff] %v584
      %651 = vst [vmem:[%s252 + $0xc0] sm:$0xff] %v589
      %652 = vst [vmem:[%s252 + $0xc8] sm:$0xff] %v594
      %653 = vst [vmem:[%s252 + $0xd0] sm:$0xff] %v599
      %654 = vst [vmem:[%s252 + $0xd8] sm:$0xff] %v604
      %655 = vst [vmem:[%s252 + $0xe0] sm:$0xff] %v609
      %656 = vst [vmem:[%s252 + $0xe8] sm:$0xff] %v614
      %657 = vst [vmem:[%s252 + $0xf0] sm:$0xff] %v619
      %658 = vst [vmem:[%s252 + $0xf8] sm:$0xff] %v624
      %v659 = vadd.f32 %v469, %v474
      %v660 = vadd.f32 %v659, %v479
      %v661 = vadd.f32 %v660, %v484
      %v662 = vadd.f32 %v661, %v489
      %v663 = vadd.f32 %v662, %v494
      %v664 = vadd.f32 %v663, %v499
      %v665 = vadd.f32 %v664, %v504
      %v666 = vadd.f32 %v665, %v509
      %v667 = vadd.f32 %v666, %v514
      %v668 = vadd.f32 %v667, %v519
      %v669 = vadd.f32 %v668, %v524
      %v670 = vadd.f32 %v669, %v529
      %v671 = vadd.f32 %v670, %v534
      %v672 = vadd.f32 %v671, %v539
      %v673 = vadd.f32 %v672, %v544
      %v674 = vadd.f32 %v673, %v549
      %v675 = vadd.f32 %v674, %v554
      %v676 = vadd.f32 %v675, %v559
      %v677 = vadd.f32 %v676, %v564
      %v678 = vadd.f32 %v677, %v569
      %v679 = vadd.f32 %v678, %v574
      %v680 = vadd.f32 %v679, %v579
      %v681 = vadd.f32 %v680, %v584
      %v682 = vadd.f32 %v681, %v589
      %v683 = vadd.f32 %v682, %v594
      %v684 = vadd.f32 %v683, %v599
      %v685 = vadd.f32 %v684, %v604
      %v686 = vadd.f32 %v685, %v609
      %v687 = vadd.f32 %v686, %v614
      %v688 = vadd.f32 %v687, %v619
      %v689 = vadd.f32 %v688, %v624
      %v690 = vrot.slane %v689, 4
      %v691 = vadd.f32 %v689, %v690
      %v692 = vrot.slane %v691, 2
      %v693 = vadd.f32 %v691, %v692
      %v694 = vrot.slane %v693, 1
      %v695 = vadd.f32 %v693, %v694
      %696 = vst [vmem:[%s260] sm:$0x1] %v695
      %v697 = vmul.f32 %v469, %v469
      %v698 = vmul.f32 %v474, %v474
      %v699 = vmul.f32 %v479, %v479
      %v700 = vmul.f32 %v484, %v484
      %v701 = vmul.f32 %v489, %v489
      %v702 = vmul.f32 %v494, %v494
      %v703 = vmul.f32 %v499, %v499
      %v704 = vmul.f32 %v504, %v504
      %v705 = vmul.f32 %v509, %v509
      %v706 = vmul.f32 %v514, %v514
      %v707 = vmul.f32 %v519, %v519
      %v708 = vmul.f32 %v524, %v524
      %v709 = vmul.f32 %v529, %v529
      %v710 = vmul.f32 %v534, %v534
      %v711 = vmul.f32 %v539, %v539
      %v712 = vmul.f32 %v544, %v544
      %v713 = vmul.f32 %v549, %v549
      %v714 = vmul.f32 %v554, %v554
      %v715 = vmul.f32 %v559, %v559
      %v716 = vmul.f32 %v564, %v564
      %v717 = vmul.f32 %v569, %v569
      %v718 = vmul.f32 %v574, %v574
      %v719 = vmul.f32 %v579, %v579
      %v720 = vmul.f32 %v584, %v584
      %v721 = vmul.f32 %v589, %v589
      %v722 = vmul.f32 %v594, %v594
      %v723 = vmul.f32 %v599, %v599
      %v724 = vmul.f32 %v604, %v604
      %v725 = vmul.f32 %v609, %v609
      %v726 = vmul.f32 %v614, %v614
      %v727 = vmul.f32 %v619, %v619
      %v728 = vmul.f32 %v624, %v624
      %v729 = vadd.f32 %v697, %v698
      %v730 = vadd.f32 %v729, %v699
      %v731 = vadd.f32 %v730, %v700
      %v732 = vadd.f32 %v731, %v701
      %v733 = vadd.f32 %v732, %v702
      %v734 = vadd.f32 %v733, %v703
      %v735 = vadd.f32 %v734, %v704
      %v736 = vadd.f32 %v735, %v705
      %v737 = vadd.f32 %v736, %v706
      %v738 = vadd.f32 %v737, %v707
      %v739 = vadd.f32 %v738, %v708
      %v740 = vadd.f32 %v739, %v709
      %v741 = vadd.f32 %v740, %v710
      %v742 = vadd.f32 %v741, %v711
      %v743 = vadd.f32 %v742, %v712
      %v744 = vadd.f32 %v743, %v713
      %v745 = vadd.f32 %v744, %v714
      %v746 = vadd.f32 %v745, %v715
      %v747 = vadd.f32 %v746, %v716
      %v748 = vadd.f32 %v747, %v717
      %v749 = vadd.f32 %v748, %v718
      %v750 = vadd.f32 %v749, %v719
      %v751 = vadd.f32 %v750, %v720
      %v752 = vadd.f32 %v751, %v721
      %v753 = vadd.f32 %v752, %v722
      %v754 = vadd.f32 %v753, %v723
      %v755 = vadd.f32 %v754, %v724
      %v756 = vadd.f32 %v755, %v725
      %v757 = vadd.f32 %v756, %v726
      %v758 = vadd.f32 %v757, %v727
      %v759 = vadd.f32 %v758, %v728
      %v760 = vrot.slane %v759, 4
      %v761 = vadd.f32 %v759, %v760
      %v762 = vrot.slane %v761, 2
      %v763 = vadd.f32 %v761, %v762
      %v764 = vrot.slane %v763, 1
      %v765 = vadd.f32 %v763, %v764
      %766 = vst [vmem:[%s260 + $0x1] sm:$0x1] %v765
      %s767 = smul.u32 16, %s21
      %p768 = scmp.lt.s32.totalorder %s20, 1
      %s769 = scalar_select %p768, %s20, 1
      %p770 = scmp.lt.s32.totalorder %s767, 15
      %s771 = scalar_select %p770, %s767, 15
      %s772 = smul.addr %s771, 2
      %s773 = smul.addr %s769, 32
      %s774 = sadd.s32 %s772, %s773
      %s775 = smul.addr %s774, 8
      %s776 = scalar_lea.vmem %s3, %s775
      %p777 = scmp.lt.s32.totalorder %s20, 1
      %s778 = scalar_select %p777, %s20, 1
      %p779 = scmp.lt.s32.totalorder %s21, 0
      %s780 = scalar_select %p779, %s21, 0
      %s781 = sadd.s32 %s780, %s778
      %s782 = smul.addr %s781, 2
      %s783 = scalar_lea.vmem %s4, %s782
      // Predicated region
      $region33: #{double_conv.2} parent=31 // pred_check
        %p784 = pneg %p118
      $region34: #{double_conv.2} parent=31 // pred_check_branch
        %786 = sbr.rel (%p784) target = $region36
      $region35: #{double_conv.2} parent=31 // pred_region
        %s787 = smul.u32 16, %s21
      $region36: #{double_conv.2} parent=31 // pred_fallthru
        _
      // Predicated region
      $region37: #{double_conv.2} parent=31 // pred_check
        %p788 = pneg %p146
      $region38: #{double_conv.2} parent=31 // pred_check_branch
        %790 = sbr.rel (%p788) target = $region40
      $region39: #{double_conv.2} parent=31 // pred_region
        _
      $region40: #{double_conv.2} parent=31 // pred_fallthru
        _
    $region32: #{double_conv.2} parent=5 // pred_fallthru
      _
    %p791 = scmp.le.s32.totalorder 2, %s11
    // Predicated region
    $region41: #{double_conv.2} parent=5 // pred_check
      %p792 = pneg %p791
    $region42: #{double_conv.2} parent=5 // pred_check_branch
      %794 = sbr.rel (%p792) target = $region44
    $region43: #{double_conv.2} parent=5 // pred_region
      %s795 = ssub.s32 %s11, 2
      // Predicated region
      $region45: #{double_conv.2} parent=43 // pred_check
        %p796 = pneg %p124
      $region46: #{double_conv.2} parent=43 // pred_check_branch
        %798 = sbr.rel (%p796) target = $region48
      $region47: #{double_conv.2} parent=43 // pred_region
        %s799 = smul.u32 16, %s23
        %p800 = scmp.lt.s32.totalorder %s22, 1
        %s801 = scalar_select %p800, %s22, 1
        %p802 = scmp.lt.s32.totalorder %s799, 15
        %s803 = scalar_select %p802, %s799, 15
        %s804 = smul.addr %s803, 2
        %s805 = smul.addr %s801, 32
        %s806 = sadd.s32 %s804, %s805
        %s807 = smul.addr %s806, 8
        %s808 = scalar_lea.vmem %s3, %s807
      $region48: #{double_conv.2} parent=43 // pred_fallthru
        _
      // Predicated region
      $region49: #{double_conv.2} parent=43 // pred_check
        %p809 = pneg %p152
      $region50: #{double_conv.2} parent=43 // pred_check_branch
        %811 = sbr.rel (%p809) target = $region52
      $region51: #{double_conv.2} parent=43 // pred_region
        %p812 = scmp.lt.s32.totalorder %s22, 1
        %s813 = scalar_select %p812, %s22, 1
        %p814 = scmp.lt.s32.totalorder %s23, 0
        %s815 = scalar_select %p814, %s23, 0
        %s816 = sadd.s32 %s815, %s813
        %s817 = smul.addr %s816, 2
        %s818 = scalar_lea.vmem %s4, %s817
      $region52: #{double_conv.2} parent=43 // pred_fallthru
        _
    $region44: #{double_conv.2} parent=5 // pred_fallthru
      _
  $region6: #{double_conv.2} parent=0 // loop_footer
    %s15 = sadd.s32 1, %s11
  $region7: #{double_conv.2} parent=0 // loop_footer_branch
    %10 = sbr.rel target = $region3
  $region8: #{double_conv.2} parent=0 // loop_exit
    _

// kernel: double_conv.3
$region0: #{double_conv.3}
  #allocation0 [shape = 'u32[]', space=smem, size = 0x4, offset = 0x4, fixed_abs, tag = 'smem constant byte address 0x4 - core index']
  #allocation1 [shape = 'u32[144,128]{1,0:T(1,128)}', space=vmem, size = 0x12000, scoped, tag = 'internal scratch']
  #allocation2 [shape = 'f32[18,18,128]{2,1,0:T(8,128)}', space=vmem, size = 0x36000, scoped, tag = 'scratch operand']
  %s0 = inlined_call_operand.vmem [shape: f32[2,16,16,128], index: 0, kind: input, shape index: {}, may-alias: {0,1,2}]
  %s1 = inlined_call_operand.vmem [shape: f32[2,16,16,128], index: 1, kind: input, shape index: {}, may-alias: {0,1,2}]
  %s2 = inlined_call_operand.vmem [shape: f32[2,16,16,128], index: 2, kind: input, shape index: {}, may-alias: {0,1,2}]
  %s3 = inlined_call_operand.vmem [shape: f32[1,128], index: 3, kind: input, shape index: {}]
  %s4 = inlined_call_operand.vmem [shape: f32[1,128], index: 4, kind: input, shape index: {}]
  %s5 = inlined_call_operand.vmem [shape: f32[3,384,128], index: 5, kind: input, shape index: {}]
  %s6 = inlined_call_operand.vmem [shape: f32[1,128], index: 6, kind: input, shape index: {}]
  %s7 = inlined_call_operand.vmem [shape: f32[2,16,16,128], index: 7, kind: output, shape index: {0}]
  %s8 = inlined_call_operand.vmem [shape: f32[2,1,2,128], index: 8, kind: output, shape index: {1}]
  %9 = xla_tuple %s7, %s8
  %s10 = sld [smem:[#allocation0]]
  $region69: #{double_conv.3} parent=0
    _
  %s12 = ssub.s32 1, %s10
  %s13 = scalar_select 0, %s12, %s10
  loop: start=0, step=1, limit=4
  $region2: #{double_conv.3} parent=0 // loop_pre_header
    _
  $region3: #{double_conv.3} parent=0 // loop_header
    %s15 = sphi 0, %s19
    %p16 = scmp.ge.s32.totalorder %s15, 4
    %s22 = sphi 0, %s34
    %s23 = sphi 0, %s30
    %s24 = sphi 0, %s22
    %s25 = sphi 0, %s23
    %s26 = sphi 0, %s24
    %s27 = sphi 0, %s25
    %s39 = sphi 0, %s41
    %s42 = sphi 0, %s39
    %s43 = sphi 0, %s42
    %s59 = sphi 0, %s43
    %s75 = sphi 0, %s77
    %s78 = sphi 0, %s75
    %s79 = sphi 0, %s78
    %s95 = sphi 0, %s79
    %s111 = sphi 0, %s113
    %s114 = sphi 0, %s111
    %s115 = sphi 0, %s114
    %s131 = sphi 0, %s115
    %s135 = sphi 0, %s135
    %s137 = sphi 0, %s135
    %s138 = sphi 0, %s137
    %s152 = sphi 0, %s138
    %s156 = sphi 0, %s156
    %s158 = sphi 0, %s156
    %s159 = sphi 0, %s158
    %s173 = sphi 0, %s159
    %s177 = sphi 0, %s177
    %s179 = sphi 0, %s177
    %s180 = sphi 0, %s179
    %s194 = sphi 0, %s180
    %s198 = sphi 0, %s198
    %s200 = sphi 0, %s198
    %s201 = sphi 0, %s200
    %s215 = sphi 0, %s201
    %s223 = sphi 0, %s225
    %s226 = sphi 0, %s223
    %s227 = sphi 0, %s226
    %s243 = sphi 0, %s227
    %s251 = sphi 0, %s253
    %s254 = sphi 0, %s251
    %s255 = sphi 0, %s254
    %s271 = sphi 0, %s255
  $region4: #{double_conv.3} parent=0 // loop_header_branch
    %18 = sbr.rel (%p16) target = $region8
  $region5: #{double_conv.3} parent=0 // loop_body
    %s20 = ssub.s32 %s15, 1
    %s21 = ssub.s32 %s15, 2
    %s28 = sadd.s32 1, %s23
    %p29 = scmp.ge.s32.totalorder %s28, 1
    %s30 = scalar_select %p29, 0, %s28
    %s31 = sadd.s32 1, %s22
    %s32 = scalar_select %p29, %s31, %s22
    %p33 = scmp.ge.s32.totalorder %s32, 2
    %s34 = scalar_select %p33, 0, %s32
    %s35 = ssub.s32 %s22, %s34
    %s36 = ssub.s32 %s23, %s30
    %s37 = sor.u32 %s35, %s36
    %p38 = scmp.eq.s32.totalorder %s37, 0
    %s40 = sadd.s32 %s39, 1
    %s41 = scalar_select %p38, %s39, %s40
    %p44 = pneg %p38
    %p45 = scmp.eq.s32.totalorder %s15, 1
    %p46 = por %p44, %p45
    %p47 = scmp.ne.s32.totalorder %s39, %s42
    %p48 = scmp.eq.s32.totalorder %s15, 0
    %p49 = por %p47, %p48
    %p50 = scmp.ne.s32.totalorder %s39, %s42
    %p51 = scmp.eq.s32.totalorder %s20, 1
    %p52 = por %p50, %p51
    %p53 = scmp.ne.s32.totalorder %s42, %s43
    %p54 = scmp.eq.s32.totalorder %s20, 0
    %p55 = por %p53, %p54
    %p56 = scmp.ne.s32.totalorder %s42, %s43
    %p57 = scmp.eq.s32.totalorder %s21, 1
    %p58 = por %p56, %p57
    %p60 = scmp.ne.s32.totalorder %s43, %s59
    %p61 = scmp.eq.s32.totalorder %s21, 0
    %p62 = por %p60, %p61
    %s63 = smul.u32 %s23, 16
    %s64 = ssub.s32 %s63, 1
    %p65 = scmp.gt.s32.totalorder %s64, 0
    %s66 = scalar_select %p65, %s64, 0
    %s67 = smul.u32 %s30, 16
    %s68 = ssub.s32 %s67, 1
    %p69 = scmp.gt.s32.totalorder %s68, 0
    %s70 = scalar_select %p69, %s68, 0
    %s71 = ssub.s32 %s22, %s34
    %s72 = ssub.s32 %s66, %s70
    %s73 = sor.u32 %s71, %s72
    %p74 = scmp.eq.s32.totalorder %s73, 0
    %s76 = sadd.s32 %s75, 1
    %s77 = scalar_select %p74, %s75, %s76
    %p80 = pneg %p74
    %p81 = scmp.eq.s32.totalorder %s15, 1
    %p82 = por %p80, %p81
    %p83 = scmp.ne.s32.totalorder %s75, %s78
    %p84 = scmp.eq.s32.totalorder %s15, 0
    %p85 = por %p83, %p84
    %p86 = scmp.ne.s32.totalorder %s75, %s78
    %p87 = scmp.eq.s32.totalorder %s20, 1
    %p88 = por %p86, %p87
    %p89 = scmp.ne.s32.totalorder %s78, %s79
    %p90 = scmp.eq.s32.totalorder %s20, 0
    %p91 = por %p89, %p90
    %p92 = scmp.ne.s32.totalorder %s78, %s79
    %p93 = scmp.eq.s32.totalorder %s21, 1
    %p94 = por %p92, %p93
    %p96 = scmp.ne.s32.totalorder %s79, %s95
    %p97 = scmp.eq.s32.totalorder %s21, 0
    %p98 = por %p96, %p97
    %s99 = smul.u32 %s23, 16
    %s100 = sadd.s32 %s99, 16
    %p101 = scmp.lt.s32.totalorder %s100, 15
    %s102 = scalar_select %p101, %s100, 15
    %s103 = smul.u32 %s30, 16
    %s104 = sadd.s32 %s103, 16
    %p105 = scmp.lt.s32.totalorder %s104, 15
    %s106 = scalar_select %p105, %s104, 15
    %s107 = ssub.s32 %s22, %s34
    %s108 = ssub.s32 %s102, %s106
    %s109 = sor.u32 %s107, %s108
    %p110 = scmp.eq.s32.totalorder %s109, 0
    %s112 = sadd.s32 %s111, 1
    %s113 = scalar_select %p110, %s111, %s112
    %p116 = pneg %p110
    %p117 = scmp.eq.s32.totalorder %s15, 1
    %p118 = por %p116, %p117
    %p119 = scmp.ne.s32.totalorder %s111, %s114
    %p120 = scmp.eq.s32.totalorder %s15, 0
    %p121 = por %p119, %p120
    %p122 = scmp.ne.s32.totalorder %s111, %s114
    %p123 = scmp.eq.s32.totalorder %s20, 1
    %p124 = por %p122, %p123
    %p125 = scmp.ne.s32.totalorder %s114, %s115
    %p126 = scmp.eq.s32.totalorder %s20, 0
    %p127 = por %p125, %p126
    %p128 = scmp.ne.s32.totalorder %s114, %s115
    %p129 = scmp.eq.s32.totalorder %s21, 1
    %p130 = por %p128, %p129
    %p132 = scmp.ne.s32.totalorder %s115, %s131
    %p133 = scmp.eq.s32.totalorder %s21, 0
    %p134 = por %p132, %p133
    %s136 = sadd.s32 %s135, 1
    %p139 = scmp.eq.s32.totalorder %s15, 1
    %p140 = scmp.ne.s32.totalorder %s135, %s137
    %p141 = scmp.eq.s32.totalorder %s15, 0
    %p142 = por %p140, %p141
    %p143 = scmp.ne.s32.totalorder %s135, %s137
    %p144 = scmp.eq.s32.totalorder %s20, 1
    %p145 = por %p143, %p144
    %p146 = scmp.ne.s32.totalorder %s137, %s138
    %p147 = scmp.eq.s32.totalorder %s20, 0
    %p148 = por %p146, %p147
    %p149 = scmp.ne.s32.totalorder %s137, %s138
    %p150 = scmp.eq.s32.totalorder %s21, 1
    %p151 = por %p149, %p150
    %p153 = scmp.ne.s32.totalorder %s138, %s152
    %p154 = scmp.eq.s32.totalorder %s21, 0
    %p155 = por %p153, %p154
    %s157 = sadd.s32 %s156, 1
    %p160 = scmp.eq.s32.totalorder %s15, 1
    %p161 = scmp.ne.s32.totalorder %s156, %s158
    %p162 = scmp.eq.s32.totalorder %s15, 0
    %p163 = por %p161, %p162
    %p164 = scmp.ne.s32.totalorder %s156, %s158
    %p165 = scmp.eq.s32.totalorder %s20, 1
    %p166 = por %p164, %p165
    %p167 = scmp.ne.s32.totalorder %s158, %s159
    %p168 = scmp.eq.s32.totalorder %s20, 0
    %p169 = por %p167, %p168
    %p170 = scmp.ne.s32.totalorder %s158, %s159
    %p171 = scmp.eq.s32.totalorder %s21, 1
    %p172 = por %p170, %p171
    %p174 = scmp.ne.s32.totalorder %s159, %s173
    %p175 = scmp.eq.s32.totalorder %s21, 0
    %p176 = por %p174, %p175
    %s178 = sadd.s32 %s177, 1
    %p181 = scmp.eq.s32.totalorder %s15, 1
    %p182 = scmp.ne.s32.totalorder %s177, %s179
    %p183 = scmp.eq.s32.totalorder %s15, 0
    %p184 = por %p182, %p183
    %p185 = scmp.ne.s32.totalorder %s177, %s179
    %p186 = scmp.eq.s32.totalorder %s20, 1
    %p187 = por %p185, %p186
    %p188 = scmp.ne.s32.totalorder %s179, %s180
    %p189 = scmp.eq.s32.totalorder %s20, 0
    %p190 = por %p188, %p189
    %p191 = scmp.ne.s32.totalorder %s179, %s180
    %p192 = scmp.eq.s32.totalorder %s21, 1
    %p193 = por %p191, %p192
    %p195 = scmp.ne.s32.totalorder %s180, %s194
    %p196 = scmp.eq.s32.totalorder %s21, 0
    %p197 = por %p195, %p196
    %s199 = sadd.s32 %s198, 1
    %p202 = scmp.eq.s32.totalorder %s15, 1
    %p203 = scmp.ne.s32.totalorder %s198, %s200
    %p204 = scmp.eq.s32.totalorder %s15, 0
    %p205 = por %p203, %p204
    %p206 = scmp.ne.s32.totalorder %s198, %s200
    %p207 = scmp.eq.s32.totalorder %s20, 1
    %p208 = por %p206, %p207
    %p209 = scmp.ne.s32.totalorder %s200, %s201
    %p210 = scmp.eq.s32.totalorder %s20, 0
    %p211 = por %p209, %p210
    %p212 = scmp.ne.s32.totalorder %s200, %s201
    %p213 = scmp.eq.s32.totalorder %s21, 1
    %p214 = por %p212, %p213
    %p216 = scmp.ne.s32.totalorder %s201, %s215
    %p217 = scmp.eq.s32.totalorder %s21, 0
    %p218 = por %p216, %p217
    %s219 = ssub.s32 %s22, %s34
    %s220 = ssub.s32 %s23, %s30
    %s221 = sor.u32 %s219, %s220
    %p222 = scmp.eq.s32.totalorder %s221, 0
    %s224 = sadd.s32 %s223, 1
    %s225 = scalar_select %p222, %s223, %s224
    %p228 = pneg %p222
    %p229 = scmp.eq.s32.totalorder %s15, 1
    %p230 = por %p228, %p229
    %p231 = scmp.ne.s32.totalorder %s223, %s226
    %p232 = scmp.eq.s32.totalorder %s15, 0
    %p233 = por %p231, %p232
    %p234 = scmp.ne.s32.totalorder %s223, %s226
    %p235 = scmp.eq.s32.totalorder %s20, 1
    %p236 = por %p234, %p235
    %p237 = scmp.ne.s32.totalorder %s226, %s227
    %p238 = scmp.eq.s32.totalorder %s20, 0
    %p239 = por %p237, %p238
    %p240 = scmp.ne.s32.totalorder %s226, %s227
    %p241 = scmp.eq.s32.totalorder %s21, 1
    %p242 = por %p240, %p241
    %p244 = scmp.ne.s32.totalorder %s227, %s243
    %p245 = scmp.eq.s32.totalorder %s21, 0
    %p246 = por %p244, %p245
    %s247 = ssub.s32 %s22, %s34
    %s248 = ssub.s32 %s23, %s30
    %s249 = sor.u32 %s247, %s248
    %p250 = scmp.eq.s32.totalorder %s249, 0
    %s252 = sadd.s32 %s251, 1
    %s253 = scalar_select %p250, %s251, %s252
    %p256 = pneg %p250
    %p257 = scmp.eq.s32.totalorder %s15, 1
    %p258 = por %p256, %p257
    %p259 = scmp.ne.s32.totalorder %s251, %s254
    %p260 = scmp.eq.s32.totalorder %s15, 0
    %p261 = por %p259, %p260
    %p262 = scmp.ne.s32.totalorder %s251, %s254
    %p263 = scmp.eq.s32.totalorder %s20, 1
    %p264 = por %p262, %p263
    %p265 = scmp.ne.s32.totalorder %s254, %s255
    %p266 = scmp.eq.s32.totalorder %s20, 0
    %p267 = por %p265, %p266
    %p268 = scmp.ne.s32.totalorder %s254, %s255
    %p269 = scmp.eq.s32.totalorder %s21, 1
    %p270 = por %p268, %p269
    %p272 = scmp.ne.s32.totalorder %s255, %s271
    %p273 = scmp.eq.s32.totalorder %s21, 0
    %p274 = por %p272, %p273
    %p275 = scmp.le.s32.totalorder 1, %s15
    %p276 = scmp.lt.s32.totalorder %s15, 3
    %p277 = pnand %p275, %p276
    %p278 = pneg %p277
    // Predicated region
    $region9: #{double_conv.3} parent=5 // pred_check
      _
    $region10: #{double_conv.3} parent=5 // pred_check_branch
      %280 = sbr.rel (%p277) target = $region12
    $region11: #{double_conv.3} parent=5 // pred_region
      %s281 = ssub.s32 %s15, 1
      // Predicated region
      $region13: #{double_conv.3} parent=11 // pred_check
        %p282 = pneg %p148
      $region14: #{double_conv.3} parent=11 // pred_check_branch
        %284 = sbr.rel (%p282) target = $region16
      $region15: #{double_conv.3} parent=11 // pred_region
        _
      $region16: #{double_conv.3} parent=11 // pred_fallthru
        _
      // Predicated region
      $region17: #{double_conv.3} parent=11 // pred_check
        %p285 = pneg %p169
      $region18: #{double_conv.3} parent=11 // pred_check_branch
        %287 = sbr.rel (%p285) target = $region20
      $region19: #{double_conv.3} parent=11 // pred_region
        _
      $region20: #{double_conv.3} parent=11 // pred_fallthru
        _
      // Predicated region
      $region21: #{double_conv.3} parent=11 // pred_check
        %p288 = pneg %p190
      $region22: #{double_conv.3} parent=11 // pred_check_branch
        %290 = sbr.rel (%p288) target = $region24
      $region23: #{double_conv.3} parent=11 // pred_region
        _
      $region24: #{double_conv.3} parent=11 // pred_fallthru
        _
      // Predicated region
      $region25: #{double_conv.3} parent=11 // pred_check
        %p291 = pneg %p211
      $region26: #{double_conv.3} parent=11 // pred_check_branch
        %293 = sbr.rel (%p291) target = $region28
      $region27: #{double_conv.3} parent=11 // pred_region
        _
      $region28: #{double_conv.3} parent=11 // pred_fallthru
        _
    $region12: #{double_conv.3} parent=5 // pred_fallthru
      _
    %p294 = scmp.lt.s32.totalorder %s15, 2
    // Predicated region
    $region29: #{double_conv.3} parent=5 // pred_check
      %p295 = pneg %p294
    $region30: #{double_conv.3} parent=5 // pred_check_branch
      %297 = sbr.rel (%p295) target = $region32
    $region31: #{double_conv.3} parent=5 // pred_region
      // Predicated region
      $region33: #{double_conv.3} parent=31 // pred_check
        %p298 = pneg %p49
      $region34: #{double_conv.3} parent=31 // pred_check_branch
        %300 = sbr.rel (%p298) target = $region36
      $region35: #{double_conv.3} parent=31 // pred_region
        %s301 = smul.u32 16, %s23
        %p302 = scmp.lt.s32.totalorder %s22, 1
        %s303 = scalar_select %p302, %s22, 1
        %p304 = scmp.lt.s32.totalorder %s301, 15
        %s305 = scalar_select %p304, %s301, 15
        %s306 = smul.addr %s305, 2
        %s307 = smul.addr %s303, 32
        %s308 = sadd.s32 %s306, %s307
        %s309 = smul.addr %s308, 8
        %s310 = scalar_lea.vmem %s0, %s309
        %s311 = smul.u32 16, %s23
      $region36: #{double_conv.3} parent=31 // pred_fallthru
        _
      // Predicated region
      $region37: #{double_conv.3} parent=31 // pred_check
        %p312 = pneg %p85
      $region38: #{double_conv.3} parent=31 // pred_check_branch
        %314 = sbr.rel (%p312) target = $region40
      $region39: #{double_conv.3} parent=31 // pred_region
        %s315 = smul.u32 %s23, 16
        %s316 = ssub.s32 %s315, 1
        %p317 = scmp.gt.s32.totalorder %s316, 0
        %s318 = scalar_select %p317, %s316, 0
        %p319 = scmp.lt.s32.totalorder %s22, 1
        %s320 = scalar_select %p319, %s22, 1
        %p321 = scmp.lt.s32.totalorder %s318, 15
        %s322 = scalar_select %p321, %s318, 15
        %s323 = smul.addr %s322, 2
        %s324 = smul.addr %s320, 32
        %s325 = sadd.s32 %s323, %s324
        %s326 = smul.addr %s325, 8
        %s327 = scalar_lea.vmem %s1, %s326
        %s328 = smul.u32 %s23, 16
        %s329 = ssub.s32 %s328, 1
        %p330 = scmp.gt.s32.totalorder %s329, 0
        %s331 = scalar_select %p330, %s329, 0
      $region40: #{double_conv.3} parent=31 // pred_fallthru
        _
      // Predicated region
      $region41: #{double_conv.3} parent=31 // pred_check
        %p332 = pneg %p121
      $region42: #{double_conv.3} parent=31 // pred_check_branch
        %334 = sbr.rel (%p332) target = $region44
      $region43: #{double_conv.3} parent=31 // pred_region
        %s335 = smul.u32 %s23, 16
        %s336 = sadd.s32 %s335, 16
        %p337 = scmp.lt.s32.totalorder %s336, 15
        %s338 = scalar_select %p337, %s336, 15
        %p339 = scmp.lt.s32.totalorder %s22, 1
        %s340 = scalar_select %p339, %s22, 1
        %p341 = scmp.lt.s32.totalorder %s338, 15
        %s342 = scalar_select %p341, %s338, 15
        %s343 = smul.addr %s342, 2
        %s344 = smul.addr %s340, 32
        %s345 = sadd.s32 %s343, %s344
        %s346 = smul.addr %s345, 8
        %s347 = scalar_lea.vmem %s2, %s346
        %s348 = smul.u32 %s23, 16
        %s349 = sadd.s32 %s348, 16
        %p350 = scmp.lt.s32.totalorder %s349, 15
        %s351 = scalar_select %p350, %s349, 15
      $region44: #{double_conv.3} parent=31 // pred_fallthru
        _
    $region32: #{double_conv.3} parent=5 // pred_fallthru
      _
    %p352 = scmp.le.s32.totalorder 1, %s15
    %p353 = scmp.lt.s32.totalorder %s15, 3
    %p354 = pnand %p352, %p353
    %p355 = pneg %p354
    // Predicated region
    $region45: #{double_conv.3} parent=5 // pred_check
      _
    $region46: #{double_conv.3} parent=5 // pred_check_branch
      %357 = sbr.rel (%p354) target = $region48
    $region47: #{double_conv.3} parent=5 // pred_region
      %s358 = ssub.s32 %s15, 1
      %s359 = smul.u32 16, %s25
      %p360 = scmp.lt.s32.totalorder %s24, 1
      %s361 = scalar_select %p360, %s24, 1
      %p362 = scmp.lt.s32.totalorder %s359, 15
      %s363 = scalar_select %p362, %s359, 15
      %s364 = smul.addr %s363, 2
      %s365 = smul.addr %s361, 32
      %s366 = sadd.s32 %s364, %s365
      %s367 = smul.addr %s366, 8
      %s368 = scalar_lea.vmem %s0, %s367
      %p369 = pneg %p55
      %p370 = pneg %p52
      %s371 = smul.u32 %s25, 16
      %s372 = ssub.s32 %s371, 1
      %p373 = scmp.gt.s32.totalorder %s372, 0
      %s374 = scalar_select %p373, %s372, 0
      %p375 = scmp.lt.s32.totalorder %s24, 1
      %s376 = scalar_select %p375, %s24, 1
      %p377 = scmp.lt.s32.totalorder %s374, 15
      %s378 = scalar_select %p377, %s374, 15
      %s379 = smul.addr %s378, 2
      %s380 = smul.addr %s376, 32
      %s381 = sadd.s32 %s379, %s380
      %s382 = smul.addr %s381, 8
      %s383 = scalar_lea.vmem %s1, %s382
      %p384 = pneg %p91
      %p385 = pneg %p88
      %s386 = smul.u32 %s25, 16
      %s387 = sadd.s32 %s386, 16
      %p388 = scmp.lt.s32.totalorder %s387, 15
      %s389 = scalar_select %p388, %s387, 15
      %p390 = scmp.lt.s32.totalorder %s24, 1
      %s391 = scalar_select %p390, %s24, 1
      %p392 = scmp.lt.s32.totalorder %s389, 15
      %s393 = scalar_select %p392, %s389, 15
      %s394 = smul.addr %s393, 2
      %s395 = smul.addr %s391, 32
      %s396 = sadd.s32 %s394, %s395
      %s397 = smul.addr %s396, 8
      %s398 = scalar_lea.vmem %s2, %s397
      %p399 = pneg %p127
      %p400 = pneg %p124
      %p401 = pneg %p148
      %p402 = pneg %p145
      %p403 = pneg %p169
      %p404 = pneg %p166
      %p405 = pneg %p190
      %p406 = pneg %p187
      %p407 = pneg %p211
      %p408 = pneg %p208
      %p409 = pneg %p239
      %p410 = pneg %p236
      %s411 = smul.u32 16, %s25
      %p412 = scmp.lt.s32.totalorder %s24, 1
      %s413 = scalar_select %p412, %s24, 1
      %p414 = scmp.lt.s32.totalorder %s411, 15
      %s415 = scalar_select %p414, %s411, 15
      %s416 = smul.addr %s415, 2
      %s417 = smul.addr %s413, 32
      %s418 = sadd.s32 %s416, %s417
      %s419 = smul.addr %s418, 8
      %s420 = scalar_lea.vmem %s7, %s419
      %p421 = pneg %p267
      %p422 = pneg %p264
      %p423 = scmp.lt.s32.totalorder %s24, 1
      %s424 = scalar_select %p423, %s24, 1
      %p425 = scmp.lt.s32.totalorder %s25, 0
      %s426 = scalar_select %p425, %s25, 0
      %s427 = sadd.s32 %s426, %s424
      %s428 = smul.addr %s427, 2
      %s429 = scalar_lea.vmem %s8, %s428
      %s430 = smul.u32 16, %s25
      %p431 = scmp.lt.s32.totalorder %s24, 1
      %s432 = scalar_select %p431, %s24, 1
      %p433 = scmp.lt.s32.totalorder %s430, 15
      %s434 = scalar_select %p433, %s430, 15
      %s435 = smul.addr %s434, 2
      %s436 = smul.addr %s432, 32
      %s437 = sadd.s32 %s435, %s436
      %s438 = smul.addr %s437, 8
      %s439 = scalar_lea.vmem %s0, %s438
      %s440 = smul.u32 16, %s25
      %s441 = smul.u32 %s25, 16
      %s442 = ssub.s32 %s441, 1
      %p443 = scmp.gt.s32.totalorder %s442, 0
      %s444 = scalar_select %p443, %s442, 0
      %p445 = scmp.lt.s32.totalorder %s24, 1
      %s446 = scalar_select %p445, %s24, 1
      %p447 = scmp.lt.s32.totalorder %s444, 15
      %s448 = scalar_select %p447, %s444, 15
      %s449 = smul.addr %s448, 2
      %s450 = smul.addr %s446, 32
      %s451 = sadd.s32 %s449, %s450
      %s452 = smul.addr %s451, 8
      %s453 = scalar_lea.vmem %s1, %s452
      %s454 = smul.u32 %s25, 16
      %s455 = ssub.s32 %s454, 1
      %p456 = scmp.gt.s32.totalorder %s455, 0
      %s457 = scalar_select %p456, %s455, 0
      %s458 = smul.u32 %s25, 16
      %s459 = sadd.s32 %s458, 16
      %p460 = scmp.lt.s32.totalorder %s459, 15
      %s461 = scalar_select %p460, %s459, 15
      %p462 = scmp.lt.s32.totalorder %s24, 1
      %s463 = scalar_select %p462, %s24, 1
      %p464 = scmp.lt.s32.totalorder %s461, 15
      %s465 = scalar_select %p464, %s461, 15
      %s466 = smul.addr %s465, 2
      %s467 = smul.addr %s463, 32
      %s468 = sadd.s32 %s466, %s467
      %s469 = smul.addr %s468, 8
      %s470 = scalar_lea.vmem %s2, %s469
      %s471 = smul.u32 %s25, 16
      %s472 = sadd.s32 %s471, 16
      %p473 = scmp.lt.s32.totalorder %s472, 15
      %s474 = scalar_select %p473, %s472, 15
      %s475 = smul.u32 16, %s25
      %p476 = scmp.lt.s32.totalorder %s24, 1
      %s477 = scalar_select %p476, %s24, 1
      %p478 = scmp.lt.s32.totalorder %s475, 15
      %s479 = scalar_select %p478, %s475, 15
      %s480 = smul.addr %s479, 2
      %s481 = smul.addr %s477, 32
      %s482 = sadd.s32 %s480, %s481
      %s483 = smul.addr %s482, 8
      %s484 = scalar_lea.vmem %s7, %s483
      %s485 = smul.u32 16, %s25
      %p486 = scmp.lt.s32.totalorder %s24, 1
      %s487 = scalar_select %p486, %s24, 1
      %p488 = scmp.lt.s32.totalorder %s25, 0
      %s489 = scalar_select %p488, %s25, 0
      %s490 = sadd.s32 %s489, %s487
      %s491 = smul.addr %s490, 2
      %s492 = scalar_lea.vmem %s8, %s491
      %v493 = vld [vmem:[%s3] sm:$0x1]
      %v494 = vld [vmem:[%s4] sm:$0x1]
      %v495 = vld [vmem:[%s439] sm:$0xff]
      %v496 = vld [vmem:[%s439 + $0x8] sm:$0xff]
      %v497 = vld [vmem:[%s439 + $0x10] sm:$0xff]
      %v498 = vld [vmem:[%s439 + $0x18] sm:$0xff]
      %v499 = vld [vmem:[%s439 + $0x20] sm:$0xff]
      %v500 = vld [vmem:[%s439 + $0x28] sm:$0xff]
      %v501 = vld [vmem:[%s439 + $0x30] sm:$0xff]
      %v502 = vld [vmem:[%s439 + $0x38] sm:$0xff]
      %v503 = vld [vmem:[%s439 + $0x40] sm:$0xff]
      %v504 = vld [vmem:[%s439 + $0x48] sm:$0xff]
      %v505 = vld [vmem:[%s439 + $0x50] sm:$0xff]
      %v506 = vld [vmem:[%s439 + $0x58] sm:$0xff]
      %v507 = vld [vmem:[%s439 + $0x60] sm:$0xff]
      %v508 = vld [vmem:[%s439 + $0x68] sm:$0xff]
      %v509 = vld [vmem:[%s439 + $0x70] sm:$0xff]
      %v510 = vld [vmem:[%s439 + $0x78] sm:$0xff]
      %v511 = vld [vmem:[%s439 + $0x80] sm:$0xff]
      %v512 = vld [vmem:[%s439 + $0x88] sm:$0xff]
      %v513 = vld [vmem:[%s439 + $0x90] sm:$0xff]
      %v514 = vld [vmem:[%s439 + $0x98] sm:$0xff]
      %v515 = vld [vmem:[%s439 + $0xa0] sm:$0xff]
      %v516 = vld [vmem:[%s439 + $0xa8] sm:$0xff]
      %v517 = vld [vmem:[%s439 + $0xb0] sm:$0xff]
      %v518 = vld [vmem:[%s439 + $0xb8] sm:$0xff]
      %v519 = vld [vmem:[%s439 + $0xc0] sm:$0xff]
      %v520 = vld [vmem:[%s439 + $0xc8] sm:$0xff]
      %v521 = vld [vmem:[%s439 + $0xd0] sm:$0xff]
      %v522 = vld [vmem:[%s439 + $0xd8] sm:$0xff]
      %v523 = vld [vmem:[%s439 + $0xe0] sm:$0xff]
      %v524 = vld [vmem:[%s439 + $0xe8] sm:$0xff]
      %v525 = vld [vmem:[%s439 + $0xf0] sm:$0xff]
      %v526 = vld [vmem:[%s439 + $0xf8] sm:$0xff]
      %v528 = vlaneseq
      %v529 = vshrl.u32 %v528, 7
      %v530 = vsub.s32 0, %v529
      %v531 = vrot.slane %v493, %v530
      %v533 = vmul.f32 %v495, %v531
      %v534 = vmul.f32 %v496, %v531
      %v535 = vmul.f32 %v497, %v531
      %v536 = vmul.f32 %v498, %v531
      %v537 = vmul.f32 %v499, %v531
      %v538 = vmul.f32 %v500, %v531
      %v539 = vmul.f32 %v501, %v531
      %v540 = vmul.f32 %v502, %v531
      %v541 = vmul.f32 %v503, %v531
      %v542 = vmul.f32 %v504, %v531
      %v543 = vmul.f32 %v505, %v531
      %v544 = vmul.f32 %v506, %v531
      %v545 = vmul.f32 %v507, %v531
      %v546 = vmul.f32 %v508, %v531
      %v547 = vmul.f32 %v509, %v531
      %v548 = vmul.f32 %v510, %v531
      %v549 = vmul.f32 %v511, %v531
      %v550 = vmul.f32 %v512, %v531
      %v551 = vmul.f32 %v513, %v531
      %v552 = vmul.f32 %v514, %v531
      %v553 = vmul.f32 %v515, %v531
      %v554 = vmul.f32 %v516, %v531
      %v555 = vmul.f32 %v517, %v531
      %v556 = vmul.f32 %v518, %v531
      %v557 = vmul.f32 %v519, %v531
      %v558 = vmul.f32 %v520, %v531
      %v559 = vmul.f32 %v521, %v531
      %v560 = vmul.f32 %v522, %v531
      %v561 = vmul.f32 %v523, %v531
      %v562 = vmul.f32 %v524, %v531
      %v563 = vmul.f32 %v525, %v531
      %v564 = vmul.f32 %v526, %v531
      %v566 = vlaneseq
      %v567 = vshrl.u32 %v566, 7
      %v568 = vsub.s32 0, %v567
      %v569 = vrot.slane %v494, %v568
      %v571 = vadd.f32 %v533, %v569
      %v572 = vadd.f32 %v534, %v569
      %v573 = vadd.f32 %v535, %v569
      %v574 = vadd.f32 %v536, %v569
      %v575 = vadd.f32 %v537, %v569
      %v576 = vadd.f32 %v538, %v569
      %v577 = vadd.f32 %v539, %v569
      %v578 = vadd.f32 %v540, %v569
      %v579 = vadd.f32 %v541, %v569
      %v580 = vadd.f32 %v542, %v569
      %v581 = vadd.f32 %v543, %v569
      %v582 = vadd.f32 %v544, %v569
      %v583 = vadd.f32 %v545, %v569
      %v584 = vadd.f32 %v546, %v569
      %v585 = vadd.f32 %v547, %v569
      %v586 = vadd.f32 %v548, %v569
      %v587 = vadd.f32 %v549, %v569
      %v588 = vadd.f32 %v550, %v569
      %v589 = vadd.f32 %v551, %v569
      %v590 = vadd.f32 %v552, %v569
      %v591 = vadd.f32 %v553, %v569
      %v592 = vadd.f32 %v554, %v569
      %v593 = vadd.f32 %v555, %v569
      %v594 = vadd.f32 %v556, %v569
      %v595 = vadd.f32 %v557, %v569
      %v596 = vadd.f32 %v558, %v569
      %v597 = vadd.f32 %v559, %v569
      %v598 = vadd.f32 %v560, %v569
      %v599 = vadd.f32 %v561, %v569
      %v600 = vadd.f32 %v562, %v569
      %v601 = vadd.f32 %v563, %v569
      %v602 = vadd.f32 %v564, %v569
      %v603 = vmax.f32 %v571, 0.0
      %v604 = vmax.f32 %v572, 0.0
      %v605 = vmax.f32 %v573, 0.0
      %v606 = vmax.f32 %v574, 0.0
      %v607 = vmax.f32 %v575, 0.0
      %v608 = vmax.f32 %v576, 0.0
      %v609 = vmax.f32 %v577, 0.0
      %v610 = vmax.f32 %v578, 0.0
      %v611 = vmax.f32 %v579, 0.0
      %v612 = vmax.f32 %v580, 0.0
      %v613 = vmax.f32 %v581, 0.0
      %v614 = vmax.f32 %v582, 0.0
      %v615 = vmax.f32 %v583, 0.0
      %v616 = vmax.f32 %v584, 0.0
      %v617 = vmax.f32 %v585, 0.0
      %v618 = vmax.f32 %v586, 0.0
      %v619 = vmax.f32 %v587, 0.0
      %v620 = vmax.f32 %v588, 0.0
      %v621 = vmax.f32 %v589, 0.0
      %v622 = vmax.f32 %v590, 0.0
      %v623 = vmax.f32 %v591, 0.0
      %v624 = vmax.f32 %v592, 0.0
      %v625 = vmax.f32 %v593, 0.0
      %v626 = vmax.f32 %v594, 0.0
      %v627 = vmax.f32 %v595, 0.0
      %v628 = vmax.f32 %v596, 0.0
      %v629 = vmax.f32 %v597, 0.0
      %v630 = vmax.f32 %v598, 0.0
      %v631 = vmax.f32 %v599, 0.0
      %v632 = vmax.f32 %v600, 0.0
      %v633 = vmax.f32 %v601, 0.0
      %v634 = vmax.f32 %v602, 0.0
      %s635 = scalar_lea.vmem [#allocation2], 24
      %636 = vst [vmem:[%s635 + $0x1] sm:$0xff] %v603
      %637 = vst [vmem:[%s635 + $0x9] sm:$0xff] %v604
      %638 = vst [vmem:[%s635 + $0x19] sm:$0xff] %v605
      %639 = vst [vmem:[%s635 + $0x21] sm:$0xff] %v606
      %640 = vst [vmem:[%s635 + $0x31] sm:$0xff] %v607
      %641 = vst [vmem:[%s635 + $0x39] sm:$0xff] %v608
      %642 = vst [vmem:[%s635 + $0x49] sm:$0xff] %v609
      %643 = vst [vmem:[%s635 + $0x51] sm:$0xff] %v610
      %644 = vst [vmem:[%s635 + $0x61] sm:$0xff] %v611
      %645 = vst [vmem:[%s635 + $0x69] sm:$0xff] %v612
      %646 = vst [vmem:[%s635 + $0x79] sm:$0xff] %v613
      %647 = vst [vmem:[%s635 + $0x81] sm:$0xff] %v614
      %648 = vst [vmem:[%s635 + $0x91] sm:$0xff] %v615
      %649 = vst [vmem:[%s635 + $0x99] sm:$0xff] %v616
      %650 = vst [vmem:[%s635 + $0xa9] sm:$0xff] %v617
      %651 = vst [vmem:[%s635 + $0xb1] sm:$0xff] %v618
      %652 = vst [vmem:[%s635 + $0xc1] sm:$0xff] %v619
      %653 = vst [vmem:[%s635 + $0xc9] sm:$0xff] %v620
      %654 = vst [vmem:[%s635 + $0xd9] sm:$0xff] %v621
      %655 = vst [vmem:[%s635 + $0xe1] sm:$0xff] %v622
      %656 = vst [vmem:[%s635 + $0xf1] sm:$0xff] %v623
      %657 = vst [vmem:[%s635 + $0xf9] sm:$0xff] %v624
      %658 = vst [vmem:[%s635 + $0x109] sm:$0xff] %v625
      %659 = vst [vmem:[%s635 + $0x111] sm:$0xff] %v626
      %660 = vst [vmem:[%s635 + $0x121] sm:$0xff] %v627
      %661 = vst [vmem:[%s635 + $0x129] sm:$0xff] %v628
      %662 = vst [vmem:[%s635 + $0x139] sm:$0xff] %v629
      %663 = vst [vmem:[%s635 + $0x141] sm:$0xff] %v630
      %664 = vst [vmem:[%s635 + $0x151] sm:$0xff] %v631
      %665 = vst [vmem:[%s635 + $0x159] sm:$0xff] %v632
      %666 = vst [vmem:[%s635 + $0x169] sm:$0xff] %v633
      %667 = vst [vmem:[%s635 + $0x171] sm:$0xff] %v634
      %p668 = scmp.gt.s32.totalorder %s25, 0
      %s669 = scalar_select %p668, 1, 0
      %s670 = scvt.s32.f32 %s669
      %p671 = scmp.lt.s32.totalorder %s25, 0
      %s672 = scalar_select %p671, 1, 0
      %s673 = scvt.s32.f32 %s672
      %v674 = vld [vmem:[%s453] sm:$0xff]
      %v675 = vld [vmem:[%s453 + $0x8] sm:$0xff]
      %v676 = vmul.f32 %v674, %v531
      %v677 = vmul.f32 %v675, %v531
      %v678 = vadd.f32 %v676, %v569
      %v679 = vadd.f32 %v677, %v569
      %v680 = vmax.f32 %v678, 0.0
      %v681 = vmax.f32 %v679, 0.0
      %v682 = vstv %s670
      %v683 = vmul.f32 %v680, %v682
      %v684 = vmul.f32 %v681, %v682
      %685 = vst [vmem:[#allocation2 + $0x1] sm:$0xff] %v683
      %686 = vst [vmem:[#allocation2 + $0x9] sm:$0xff] %v684
      %v687 = vld [vmem:[%s470] sm:$0xff]
      %v688 = vld [vmem:[%s470 + $0x8] sm:$0xff]
      %v689 = vmul.f32 %v687, %v531
      %v690 = vmul.f32 %v688, %v531
      %v691 = vadd.f32 %v689, %v569
      %v692 = vadd.f32 %v690, %v569
      %v693 = vmax.f32 %v691, 0.0
      %v694 = vmax.f32 %v692, 0.0
      %v695 = vstv %s673
      %v696 = vmul.f32 %v693, %v695
      %v697 = vmul.f32 %v694, %v695
      %s698 = scalar_lea.vmem [#allocation2], 408
      %699 = vst [vmem:[%s698 + $0x1] sm:$0xff] %v696
      %700 = vst [vmem:[%s698 + $0x9] sm:$0xff] %v697
      %701 = vst [vmem:[#allocation2] sm:$0x1] 0.0
      %702 = vst [vmem:[#allocation2 + $0x18] sm:$0x1] 0.0
      %703 = vst [vmem:[#allocation2 + $0x30] sm:$0x1] 0.0
      %704 = vst [vmem:[#allocation2 + $0x48] sm:$0x1] 0.0
      %705 = vst [vmem:[#allocation2 + $0x60] sm:$0x1] 0.0
      %706 = vst [vmem:[#allocation2 + $0x78] sm:$0x1] 0.0
      %707 = vst [vmem:[#allocation2 + $0x90] sm:$0x1] 0.0
      %708 = vst [vmem:[#allocation2 + $0xa8] sm:$0x1] 0.0
      %709 = vst [vmem:[#allocation2 + $0xc0] sm:$0x1] 0.0
      %710 = vst [vmem:[#allocation2 + $0xd8] sm:$0x1] 0.0
      %711 = vst [vmem:[#allocation2 + $0xf0] sm:$0x1] 0.0
      %712 = vst [vmem:[#allocation2 + $0x108] sm:$0x1] 0.0
      %713 = vst [vmem:[#allocation2 + $0x120] sm:$0x1] 0.0
      %714 = vst [vmem:[#allocation2 + $0x138] sm:$0x1] 0.0
      %715 = vst [vmem:[#allocation2 + $0x150] sm:$0x1] 0.0
      %716 = vst [vmem:[#allocation2 + $0x168] sm:$0x1] 0.0
      %717 = vst [vmem:[#allocation2 + $0x180] sm:$0x1] 0.0
      %718 = vst [vmem:[#allocation2 + $0x198] sm:$0x1] 0.0
      %719 = vst [vmem:[#allocation2 + $0x11] sm:$0x1] 0.0
      %720 = vst [vmem:[#allocation2 + $0x29] sm:$0x1] 0.0
      %721 = vst [vmem:[#allocation2 + $0x41] sm:$0x1] 0.0
      %722 = vst [vmem:[#allocation2 + $0x59] sm:$0x1] 0.0
      %723 = vst [vmem:[#allocation2 + $0x71] sm:$0x1] 0.0
      %724 = vst [vmem:[#allocation2 + $0x89] sm:$0x1] 0.0
      %725 = vst [vmem:[#allocation2 + $0xa1] sm:$0x1] 0.0
      %726 = vst [vmem:[#allocation2 + $0xb9] sm:$0x1] 0.0
      %727 = vst [vmem:[#allocation2 + $0xd1] sm:$0x1] 0.0
      %728 = vst [vmem:[#allocation2 + $0xe9] sm:$0x1] 0.0
      %729 = vst [vmem:[#allocation2 + $0x101] sm:$0x1] 0.0
      %730 = vst [vmem:[#allocation2 + $0x119] sm:$0x1] 0.0
      %731 = vst [vmem:[#allocation2 + $0x131] sm:$0x1] 0.0
      %732 = vst [vmem:[#allocation2 + $0x149] sm:$0x1] 0.0
      %733 = vst [vmem:[#allocation2 + $0x161] sm:$0x1] 0.0
      %734 = vst [vmem:[#allocation2 + $0x179] sm:$0x1] 0.0
      %735 = vst [vmem:[#allocation2 + $0x191] sm:$0x1] 0.0
      %736 = vst [vmem:[#allocation2 + $0x1a9] sm:$0x1] 0.0
      %v737 = vld [vmem:[#allocation2] sm:$0xff]
      %v738 = vld [vmem:[#allocation2 + $0x8] sm:$0xff]
      %v739 = vld [vmem:[#allocation2 + $0x18] sm:$0xff]
      %v740 = vld [vmem:[#allocation2 + $0x20] sm:$0xff]
      %v741 = vld [vmem:[#allocation2 + $0x30] sm:$0xff]
      %v742 = vld [vmem:[#allocation2 + $0x38] sm:$0xff]
      %v743 = vld [vmem:[#allocation2 + $0x48] sm:$0xff]
      %v744 = vld [vmem:[#allocation2 + $0x50] sm:$0xff]
      %v745 = vld [vmem:[#allocation2 + $0x60] sm:$0xff]
      %v746 = vld [vmem:[#allocation2 + $0x68] sm:$0xff]
      %v747 = vld [vmem:[#allocation2 + $0x78] sm:$0xff]
      %v748 = vld [vmem:[#allocation2 + $0x80] sm:$0xff]
      %v749 = vld [vmem:[#allocation2 + $0x90] sm:$0xff]
      %v750 = vld [vmem:[#allocation2 + $0x98] sm:$0xff]
      %v751 = vld [vmem:[#allocation2 + $0xa8] sm:$0xff]
      %v752 = vld [vmem:[#allocation2 + $0xb0] sm:$0xff]
      %v753 = vld [vmem:[#allocation2 + $0xc0] sm:$0xff]
      %v754 = vld [vmem:[#allocation2 + $0xc8] sm:$0xff]
      %v755 = vld [vmem:[#allocation2 + $0xd8] sm:$0xff]
      %v756 = vld [vmem:[#allocation2 + $0xe0] sm:$0xff]
      %v757 = vld [vmem:[#allocation2 + $0xf0] sm:$0xff]
      %v758 = vld [vmem:[#allocation2 + $0xf8] sm:$0xff]
      %v759 = vld [vmem:[#allocation2 + $0x108] sm:$0xff]
      %v760 = vld [vmem:[#allocation2 + $0x110] sm:$0xff]
      %v761 = vld [vmem:[#allocation2 + $0x120] sm:$0xff]
      %v762 = vld [vmem:[#allocation2 + $0x128] sm:$0xff]
      %v763 = vld [vmem:[#allocation2 + $0x138] sm:$0xff]
      %v764 = vld [vmem:[#allocation2 + $0x140] sm:$0xff]
      %v765 = vld [vmem:[#allocation2 + $0x150] sm:$0xff]
      %v766 = vld [vmem:[#allocation2 + $0x158] sm:$0xff]
      %v767 = vld [vmem:[#allocation2 + $0x168] sm:$0xff]
      %v768 = vld [vmem:[#allocation2 + $0x170] sm:$0xff]
      %v769 = vld [vmem:[#allocation2 + $0x180] sm:$0xff]
      %v770 = vld [vmem:[#allocation2 + $0x188] sm:$0xff]
      %v771 = vld [vmem:[#allocation2 + $0x198] sm:$0xff]
      %v772 = vld [vmem:[#allocation2 + $0x1a0] sm:$0xff]
      %v773 = vld [vmem:[%s5] sm:$0xff]
      %v774 = vld [vmem:[%s5 + $0x8] sm:$0xff]
      %v775 = vld [vmem:[%s5 + $0x10] sm:$0xff]
      %v776 = vld [vmem:[%s5 + $0x18] sm:$0xff]
      %v777 = vld [vmem:[%s5 + $0x20] sm:$0xff]
      %v778 = vld [vmem:[%s5 + $0x28] sm:$0xff]
      %v779 = vld [vmem:[%s5 + $0x30] sm:$0xff]
      %v780 = vld [vmem:[%s5 + $0x38] sm:$0xff]
      %v781 = vld [vmem:[%s5 + $0x40] sm:$0xff]
      %v782 = vld [vmem:[%s5 + $0x48] sm:$0xff]
      %v783 = vld [vmem:[%s5 + $0x50] sm:$0xff]
      %v784 = vld [vmem:[%s5 + $0x58] sm:$0xff]
      %v785 = vld [vmem:[%s5 + $0x60] sm:$0xff]
      %v786 = vld [vmem:[%s5 + $0x68] sm:$0xff]
      %v787 = vld [vmem:[%s5 + $0x70] sm:$0xff]
      %v788 = vld [vmem:[%s5 + $0x78] sm:$0xff]
      %v789 = vld [vmem:[%s5 + $0x80] sm:$0xff]
      %v790 = vld [vmem:[%s5 + $0x88] sm:$0xff]
      %v791 = vld [vmem:[%s5 + $0x90] sm:$0xff]
      %v792 = vld [vmem:[%s5 + $0x98] sm:$0xff]
      %v793 = vld [vmem:[%s5 + $0xa0] sm:$0xff]
      %v794 = vld [vmem:[%s5 + $0xa8] sm:$0xff]
      %v795 = vld [vmem:[%s5 + $0xb0] sm:$0xff]
      %v796 = vld [vmem:[%s5 + $0xb8] sm:$0xff]
      %v797 = vld [vmem:[%s5 + $0xc0] sm:$0xff]
      %v798 = vld [vmem:[%s5 + $0xc8] sm:$0xff]
      %v799 = vld [vmem:[%s5 + $0xd0] sm:$0xff]
      %v800 = vld [vmem:[%s5 + $0xd8] sm:$0xff]
      %v801 = vld [vmem:[%s5 + $0xe0] sm:$0xff]
      %v802 = vld [vmem:[%s5 + $0xe8] sm:$0xff]
      %v803 = vld [vmem:[%s5 + $0xf0] sm:$0xff]
      %v804 = vld [vmem:[%s5 + $0xf8] sm:$0xff]
      %v805 = vld [vmem:[%s5 + $0x100] sm:$0xff]
      %v806 = vld [vmem:[%s5 + $0x108] sm:$0xff]
      %v807 = vld [vmem:[%s5 + $0x110] sm:$0xff]
      %v808 = vld [vmem:[%s5 + $0x118] sm:$0xff]
      %v809 = vld [vmem:[%s5 + $0x120] sm:$0xff]
      %v810 = vld [vmem:[%s5 + $0x128] sm:$0xff]
      %v811 = vld [vmem:[%s5 + $0x130] sm:$0xff]
      %v812 = vld [vmem:[%s5 + $0x138] sm:$0xff]
      %v813 = vld [vmem:[%s5 + $0x140] sm:$0xff]
      %v814 = vld [vmem:[%s5 + $0x148] sm:$0xff]
      %v815 = vld [vmem:[%s5 + $0x150] sm:$0xff]
      %v816 = vld [vmem:[%s5 + $0x158] sm:$0xff]
      %v817 = vld [vmem:[%s5 + $0x160] sm:$0xff]
      %v818 = vld [vmem:[%s5 + $0x168] sm:$0xff]
      %v819 = vld [vmem:[%s5 + $0x170] sm:$0xff]
      %v820 = vld [vmem:[%s5 + $0x178] sm:$0xff]
      %v821 = vld [vmem:[#allocation2 + $0x1] sm:$0xff]
      %v822 = vld [vmem:[#allocation2 + $0x9] sm:$0xff]
      %v823 = vld [vmem:[#allocation2 + $0x19] sm:$0xff]
      %v824 = vld [vmem:[#allocation2 + $0x21] sm:$0xff]
      %v825 = vld [vmem:[#allocation2 + $0x31] sm:$0xff]
      %v826 = vld [vmem:[#allocation2 + $0x39] sm:$0xff]
      %v827 = vld [vmem:[#allocation2 + $0x49] sm:$0xff]
      %v828 = vld [vmem:[#allocation2 + $0x51] sm:$0xff]
      %v829 = vld [vmem:[#allocation2 + $0x61] sm:$0xff]
      %v830 = vld [vmem:[#allocation2 + $0x69] sm:$0xff]
      %v831 = vld [vmem:[#allocation2 + $0x79] sm:$0xff]
      %v832 = vld [vmem:[#allocation2 + $0x81] sm:$0xff]
      %v833 = vld [vmem:[#allocation2 + $0x91] sm:$0xff]
      %v834 = vld [vmem:[#allocation2 + $0x99] sm:$0xff]
      %v835 = vld [vmem:[#allocation2 + $0xa9] sm:$0xff]
      %v836 = vld [vmem:[#allocation2 + $0xb1] sm:$0xff]
      %v837 = vld [vmem:[#allocation2 + $0xc1] sm:$0xff]
      %v838 = vld [vmem:[#allocation2 + $0xc9] sm:$0xff]
      %v839 = vld [vmem:[#allocation2 + $0xd9] sm:$0xff]
      %v840 = vld [vmem:[#allocation2 + $0xe1] sm:$0xff]
      %v841 = vld [vmem:[#allocation2 + $0xf1] sm:$0xff]
      %v842 = vld [vmem:[#allocation2 + $0xf9] sm:$0xff]
      %v843 = vld [vmem:[#allocation2 + $0x109] sm:$0xff]
      %v844 = vld [vmem:[#allocation2 + $0x111] sm:$0xff]
      %v845 = vld [vmem:[#allocation2 + $0x121] sm:$0xff]
      %v846 = vld [vmem:[#allocation2 + $0x129] sm:$0xff]
      %v847 = vld [vmem:[#allocation2 + $0x139] sm:$0xff]
      %v848 = vld [vmem:[#allocation2 + $0x141] sm:$0xff]
      %v849 = vld [vmem:[#allocation2 + $0x151] sm:$0xff]
      %v850 = vld [vmem:[#allocation2 + $0x159] sm:$0xff]
      %v851 = vld [vmem:[#allocation2 + $0x169] sm:$0xff]
      %v852 = vld [vmem:[#allocation2 + $0x171] sm:$0xff]
      %v853 = vld [vmem:[#allocation2 + $0x181] sm:$0xff]
      %v854 = vld [vmem:[#allocation2 + $0x189] sm:$0xff]
      %v855 = vld [vmem:[#allocation2 + $0x199] sm:$0xff]
      %v856 = vld [vmem:[#allocation2 + $0x1a1] sm:$0xff]
      %s857 = scalar_lea.vmem %s5, 384
      %v858 = vld [vmem:[%s857] sm:$0xff]
      %v859 = vld [vmem:[%s857 + $0x8] sm:$0xff]
      %v860 = vld [vmem:[%s857 + $0x10] sm:$0xff]
      %v861 = vld [vmem:[%s857 + $0x18] sm:$0xff]
      %v862 = vld [vmem:[%s857 + $0x20] sm:$0xff]
      %v863 = vld [vmem:[%s857 + $0x28] sm:$0xff]
      %v864 = vld [vmem:[%s857 + $0x30] sm:$0xff]
      %v865 = vld [vmem:[%s857 + $0x38] sm:$0xff]
      %v866 = vld [vmem:[%s857 + $0x40] sm:$0xff]
      %v867 = vld [vmem:[%s857 + $0x48] sm:$0xff]
      %v868 = vld [vmem:[%s857 + $0x50] sm:$0xff]
      %v869 = vld [vmem:[%s857 + $0x58] sm:$0xff]
      %v870 = vld [vmem:[%s857 + $0x60] sm:$0xff]
      %v871 = vld [vmem:[%s857 + $0x68] sm:$0xff]
      %v872 = vld [vmem:[%s857 + $0x70] sm:$0xff]
      %v873 = vld [vmem:[%s857 + $0x78] sm:$0xff]
      %v874 = vld [vmem:[%s857 + $0x80] sm:$0xff]
      %v875 = vld [vmem:[%s857 + $0x88] sm:$0xff]
      %v876 = vld [vmem:[%s857 + $0x90] sm:$0xff]
      %v877 = vld [vmem:[%s857 + $0x98] sm:$0xff]
      %v878 = vld [vmem:[%s857 + $0xa0] sm:$0xff]
      %v879 = vld [vmem:[%s857 + $0xa8] sm:$0xff]
      %v880 = vld [vmem:[%s857 + $0xb0] sm:$0xff]
      %v881 = vld [vmem:[%s857 + $0xb8] sm:$0xff]
      %v882 = vld [vmem:[%s857 + $0xc0] sm:$0xff]
      %v883 = vld [vmem:[%s857 + $0xc8] sm:$0xff]
      %v884 = vld [vmem:[%s857 + $0xd0] sm:$0xff]
      %v885 = vld [vmem:[%s857 + $0xd8] sm:$0xff]
      %v886 = vld [vmem:[%s857 + $0xe0] sm:$0xff]
      %v887 = vld [vmem:[%s857 + $0xe8] sm:$0xff]
      %v888 = vld [vmem:[%s857 + $0xf0] sm:$0xff]
      %v889 = vld [vmem:[%s857 + $0xf8] sm:$0xff]
      %v890 = vld [vmem:[%s857 + $0x100] sm:$0xff]
      %v891 = vld [vmem:[%s857 + $0x108] sm:$0xff]
      %v892 = vld [vmem:[%s857 + $0x110] sm:$0xff]
      %v893 = vld [vmem:[%s857 + $0x118] sm:$0xff]
      %v894 = vld [vmem:[%s857 + $0x120] sm:$0xff]
      %v895 = vld [vmem:[%s857 + $0x128] sm:$0xff]
      %v896 = vld [vmem:[%s857 + $0x130] sm:$0xff]
      %v897 = vld [vmem:[%s857 + $0x138] sm:$0xff]
      %v898 = vld [vmem:[%s857 + $0x140] sm:$0xff]
      %v899 = vld [vmem:[%s857 + $0x148] sm:$0xff]
      %v900 = vld [vmem:[%s857 + $0x150] sm:$0xff]
      %v901 = vld [vmem:[%s857 + $0x158] sm:$0xff]
      %v902 = vld [vmem:[%s857 + $0x160] sm:$0xff]
      %v903 = vld [vmem:[%s857 + $0x168] sm:$0xff]
      %v904 = vld [vmem:[%s857 + $0x170] sm:$0xff]
      %v905 = vld [vmem:[%s857 + $0x178] sm:$0xff]
      %906 = vmatprep.subr.mxu0 0.0
      %907 = vmatpush1.msra.mxu0 %v858
      %908 = vmatprep.subr.mxu0 0.0
      %909 = vmatpush1.msra.mxu0 %v859
      %910 = vmatprep.subr.mxu0 0.0
      %911 = vmatpush1.msra.mxu0 %v860
      %912 = vmatprep.subr.mxu0 0.0
      %913 = vmatpush1.msra.mxu0 %v861
      %914 = vmatprep.subr.mxu0 0.0
      %915 = vmatpush1.msra.mxu0 %v862
      %916 = vmatprep.subr.mxu0 0.0
      %917 = vmatpush1.msra.mxu0 %v863
      %918 = vmatprep.subr.mxu0 0.0
      %919 = vmatpush1.msra.mxu0 %v864
      %920 = vmatprep.subr.mxu0 0.0
      %921 = vmatpush1.msra.mxu0 %v865
      %922 = vmatprep.subr.mxu0 0.0
      %923 = vmatpush1.msra.mxu0 %v866
      %924 = vmatprep.subr.mxu0 0.0
      %925 = vmatpush1.msra.mxu0 %v867
      %926 = vmatprep.subr.mxu0 0.0
      %927 = vmatpush1.msra.mxu0 %v868
      %928 = vmatprep.subr.mxu0 0.0
      %929 = vmatpush1.msra.mxu0 %v869
      %930 = vmatprep.subr.mxu0 0.0
      %931 = vmatpush1.msra.mxu0 %v870
      %932 = vmatprep.subr.mxu0 0.0
      %933 = vmatpush1.msra.mxu0 %v871
      %934 = vmatprep.subr.mxu0 0.0
      %935 = vmatpush1.msra.mxu0 %v872
      %936 = vmatprep.subr.mxu0 0.0
      %937 = vmatpush1.msra.mxu0 %v873
      %938 = vmatprep.subr.mxu0 0.0
      %939 = vmatpush1.msra.mxu0 %v874
      %940 = vmatprep.subr.mxu0 0.0
      %941 = vmatpush1.msra.mxu0 %v875
      %942 = vmatprep.subr.mxu0 0.0
      %943 = vmatpush1.msra.mxu0 %v876
      %944 = vmatprep.subr.mxu0 0.0
      %945 = vmatpush1.msra.mxu0 %v877
      %946 = vmatprep.subr.mxu0 0.0
      %947 = vmatpush1.msra.mxu0 %v878
      %948 = vmatprep.subr.mxu0 0.0
      %949 = vmatpush1.msra.mxu0 %v879
      %950 = vmatprep.subr.mxu0 0.0
      %951 = vmatpush1.msra.mxu0 %v880
      %952 = vmatprep.subr.mxu0 0.0
      %953 = vmatpush1.msra.mxu0 %v881
      %954 = vmatprep.subr.mxu0 0.0
      %955 = vmatpush1.msra.mxu0 %v882
      %956 = vmatprep.subr.mxu0 0.0
      %957 = vmatpush1.msra.mxu0 %v883
      %958 = vmatprep.subr.mxu0 0.0
      %959 = vmatpush1.msra.mxu0 %v884
      %960 = vmatprep.subr.mxu0 0.0
      %961 = vmatpush1.msra.mxu0 %v885
      %962 = vmatprep.subr.mxu0 0.0
      %963 = vmatpush1.msra.mxu0 %v886
      %964 = vmatprep.subr.mxu0 0.0
      %965 = vmatpush1.msra.mxu0 %v887
      %966 = vmatprep.subr.mxu0 0.0
      %967 = vmatpush1.msra.mxu0 %v888
      %968 = vmatprep.subr.mxu0 0.0
      %969 = vmatpush1.msra.mxu0 %v889
      %970 = vmatprep.mubr.f32.mxu0 %v823
      %971 = vmatmul.mubr.f32.gmra.mrb[0].mxu0 %v821
      %v972 = vpop.f32.mrb[0].mxu0
      %v973 = vadd.f32 0.0, %v972
      %v974 = vpop.f32.mrb[0].mxu0
      %975 = vmatprep.mubr.f32.mxu0 %v824
      %976 = vmatmul.mubr.f32.gmra.mrb[0].mxu0 %v822
      %v977 = vpop.f32.mrb[0].mxu0
      %v978 = vadd.f32 0.0, %v977
      %v979 = vpop.f32.mrb[0].mxu0
      %980 = vmatprep.mubr.f32.mxu0 %v825
      %981 = vmatmul.mubr.f32.gmra.mrb[0].mxu0 %v823
      %v982 = vpop.f32.mrb[0].mxu0
      %v983 = vadd.f32 0.0, %v982
      %v984 = vpop.f32.mrb[0].mxu0
      %985 = vmatprep.mubr.f32.mxu0 %v826
      %986 = vmatmul.mubr.f32.gmra.mrb[0].mxu0 %v824
      %v987 = vpop.f32.mrb[0].mxu0
      %v988 = vadd.f32 0.0, %v987
      %v989 = vpop.f32.mrb[0].mxu0
      %990 = vmatprep.mubr.f32.mxu0 %v827
      %991 = vmatmul.mubr.f32.gmra.mrb[0].mxu0 %v825
      %v992 = vpop.f32.mrb[0].mxu0
      %v993 = vadd.f32 0.0, %v992
      %v994 = vpop.f32.mrb[0].mxu0
      %995 = vmatprep.mubr.f32.mxu0 %v828
      %996 = vmatmul.mubr.f32.gmra.mrb[0].mxu0 %v826
      %v997 = vpop.f32.mrb[0].mxu0
      %v998 = vadd.f32 0.0, %v997
      %v999 = vpop.f32.mrb[0].mxu0
      %1000 = vmatprep.mubr.f32.mxu0 %v829
      %1001 = vmatmul.mubr.f32.gmra.mrb[0].mxu0 %v827
      %v1002 = vpop.f32.mrb[0].mxu0
      %v1003 = vadd.f32 0.0, %v1002
      %v1004 = vpop.f32.mrb[0].mxu0
      %1005 = vmatprep.mubr.f32.mxu0 %v830
      %1006 = vmatmul.mubr.f32.gmra.mrb[0].mxu0 %v828
      %v1007 = vpop.f32.mrb[0].mxu0
      %v1008 = vadd.f32 0.0, %v1007
      %v1009 = vpop.f32.mrb[0].mxu0
      %1010 = vmatprep.mubr.f32.mxu0 %v831
      %1011 = vmatmul.mubr.f32.gmra.mrb[0].mxu0 %v829
      %v1012 = vpop.f32.mrb[0].mxu0
      %v1013 = vadd.f32 0.0, %v1012
      %v1014 = vpop.f32.mrb[0].mxu0
      %1015 = vmatprep.mubr.f32.mxu0 %v832
      %1016 = vmatmul.mubr.f32.gmra.mrb[0].mxu0 %v830
      %v1017 = vpop.f32.mrb[0].mxu0
      %v1018 = vadd.f32 0.0, %v1017
      %v1019 = vpop.f32.mrb[0].mxu0
      %1020 = vmatprep.mubr.f32.mxu0 %v833
      %1021 = vmatmul.mubr.f32.gmra.mrb[0].mxu0 %v831
      %v1022 = vpop.f32.mrb[0].mxu0
      %v1023 = vadd.f32 0.0, %v1022
      %v1024 = vpop.f32.mrb[0].mxu0
      %1025 = vmatprep.mubr.f32.mxu0 %v834
      %1026 = vmatmul.mubr.f32.gmra.mrb[0].mxu0 %v832
      %v1027 = vpop.f32.mrb[0].mxu0
      %v1028 = vadd.f32 0.0, %v1027
      %v1029 = vpop.f32.mrb[0].mxu0
      %1030 = vmatprep.mubr.f32.mxu0 %v835
      %1031 = vmatmul.mubr.f32.gmra.mrb[0].mxu0 %v833
      %v1032 = vpop.f32.mrb[0].mxu0
      %v1033 = vadd.f32 0.0, %v1032
      %v1034 = vpop.f32.mrb[0].mxu0
      %1035 = vmatprep.mubr.f32.mxu0 %v836
      %1036 = vmatmul.mubr.f32.gmra.mrb[0].mxu0 %v834
      %v1037 = vpop.f32.mrb[0].mxu0
      %v1038 = vadd.f32 0.0, %v1037
      %v1039 = vpop.f32.mrb[0].mxu0
      %1040 = vmatprep.mubr.f32.mxu0 %v837
      %1041 = vmatmul.mubr.f32.gmra.mrb[0].mxu0 %v835
      %v1042 = vpop.f32.mrb[0].mxu0
      %v1043 = vadd.f32 0.0, %v1042
      %v1044 = vpop.f32.mrb[0].mxu0
      %1045 = vmatprep.mubr.f32.mxu0 %v838
      %1046 = vmatmul.mubr.f32.gmra.mrb[0].mxu0 %v836
      %v1047 = vpop.f32.mrb[0].mxu0
      %v1048 = vadd.f32 0.0, %v1047
      %v1049 = vpop.f32.mrb[0].mxu0
      %1050 = vmatprep.mubr.f32.mxu0 %v839
      %1051 = vmatmul.mubr.f32.gmra.mrb[0].mxu0 %v837
      %v1052 = vpop.f32.mrb[0].mxu0
      %v1053 = vadd.f32 0.0, %v1052
      %v1054 = vpop.f32.mrb[0].mxu0
      %1055 = vmatprep.mubr.f32.mxu0 %v840
      %1056 = vmatmul.mubr.f32.gmra.mrb[0].mxu0 %v838
      %v1057 = vpop.f32.mrb[0].mxu0
      %v1058 = vadd.f32 0.0, %v1057
      %v1059 = vpop.f32.mrb[0].mxu0
      %1060 = vmatprep.mubr.f32.mxu0 %v841
      %1061 = vmatmul.mubr.f32.gmra.mrb[0].mxu0 %v839
      %v1062 = vpop.f32.mrb[0].mxu0
      %v1063 = vadd.f32 0.0, %v1062
      %v1064 = vpop.f32.mrb[0].mxu0
      %1065 = vmatprep.mubr.f32.mxu0 %v842
      %1066 = vmatmul.mubr.f32.gmra.mrb[0].mxu0 %v840
      %v1067 = vpop.f32.mrb[0].mxu0
      %v1068 = vadd.f32 0.0, %v1067
      %v1069 = vpop.f32.mrb[0].mxu0
      %1070 = vmatprep.mubr.f32.mxu0 %v843
      %1071 = vmatmul.mubr.f32.gmra.mrb[0].mxu0 %v841
      %v1072 = vpop.f32.mrb[0].mxu0
      %v1073 = vadd.f32 0.0, %v1072
      %v1074 = vpop.f32.mrb[0].mxu0
      %1075 = vmatprep.mubr.f32.mxu0 %v844
      %1076 = vmatmul.mubr.f32.gmra.mrb[0].mxu0 %v842
      %v1077 = vpop.f32.mrb[0].mxu0
      %v1078 = vadd.f32 0.0, %v1077
      %v1079 = vpop.f32.mrb[0].mxu0
      %1080 = vmatprep.mubr.f32.mxu0 %v845
      %1081 = vmatmul.mubr.f32.gmra.mrb[0].mxu0 %v843
      %v1082 = vpop.f32.mrb[0].mxu0
      %v1083 = vadd.f32 0.0, %v1082
      %v1084 = vpop.f32.mrb[0].mxu0
      %1085 = vmatprep.mubr.f32.mxu0 %v846
      %1086 = vmatmul.mubr.f32.gmra.mrb[0].mxu0 %v844
      %v1087 = vpop.f32.mrb[0].mxu0
      %v1088 = vadd.f32 0.0, %v1087
      %v1089 = vpop.f32.mrb[0].mxu0
      %1090 = vmatprep.mubr.f32.mxu0 %v847
      %1091 = vmatmul.mubr.f32.gmra.mrb[0].mxu0 %v845
      %v1092 = vpop.f32.mrb[0].mxu0
      %v1093 = vadd.f32 0.0, %v1092
      %v1094 = vpop.f32.mrb[0].mxu0
      %1095 = vmatprep.mubr.f32.mxu0 %v848
      %1096 = vmatmul.mubr.f32.gmra.mrb[0].mxu0 %v846
      %v1097 = vpop.f32.mrb[0].mxu0
      %v1098 = vadd.f32 0.0, %v1097
      %v1099 = vpop.f32.mrb[0].mxu0
      %1100 = vmatprep.mubr.f32.mxu0 %v849
      %1101 = vmatmul.mubr.f32.gmra.mrb[0].mxu0 %v847
      %v1102 = vpop.f32.mrb[0].mxu0
      %v1103 = vadd.f32 0.0, %v1102
      %v1104 = vpop.f32.mrb[0].mxu0
      %1105 = vmatprep.mubr.f32.mxu0 %v850
      %1106 = vmatmul.mubr.f32.gmra.mrb[0].mxu0 %v848
      %v1107 = vpop.f32.mrb[0].mxu0
      %v1108 = vadd.f32 0.0, %v1107
      %v1109 = vpop.f32.mrb[0].mxu0
      %1110 = vmatprep.mubr.f32.mxu0 %v851
      %1111 = vmatmul.mubr.f32.gmra.mrb[0].mxu0 %v849
      %v1112 = vpop.f32.mrb[0].mxu0
      %v1113 = vadd.f32 0.0, %v1112
      %v1114 = vpop.f32.mrb[0].mxu0
      %1115 = vmatprep.mubr.f32.mxu0 %v852
      %1116 = vmatmul.mubr.f32.gmra.mrb[0].mxu0 %v850
      %v1117 = vpop.f32.mrb[0].mxu0
      %v1118 = vadd.f32 0.0, %v1117
      %v1119 = vpop.f32.mrb[0].mxu0
      %1120 = vmatprep.mubr.f32.mxu0 %v853
      %1121 = vmatmul.mubr.f32.gmra.mrb[0].mxu0 %v851
      %v1122 = vpop.f32.mrb[0].mxu0
      %v1123 = vadd.f32 0.0, %v1122
      %v1124 = vpop.f32.mrb[0].mxu0
      %1125 = vmatprep.mubr.f32.mxu0 %v854
      %1126 = vmatmul.mubr.f32.gmra.mrb[0].mxu0 %v852
      %v1127 = vpop.f32.mrb[0].mxu0
      %v1128 = vadd.f32 0.0, %v1127
      %v1129 = vpop.f32.mrb[0].mxu0
      %1130 = vdwg.mxu0
      %1131 = vmatprep.subr.mxu0 0.0
      %1132 = vmatpush1.msra.mxu0 %v890
      %1133 = vmatprep.subr.mxu0 0.0
      %1134 = vmatpush1.msra.mxu0 %v891
      %1135 = vmatprep.subr.mxu0 0.0
      %1136 = vmatpush1.msra.mxu0 %v892
      %1137 = vmatprep.subr.mxu0 0.0
      %1138 = vmatpush1.msra.mxu0 %v893
      %1139 = vmatprep.subr.mxu0 0.0
      %1140 = vmatpush1.msra.mxu0 %v894
      %1141 = vmatprep.subr.mxu0 0.0
      %1142 = vmatpush1.msra.mxu0 %v895
      %1143 = vmatprep.subr.mxu0 0.0
      %1144 = vmatpush1.msra.mxu0 %v896
      %1145 = vmatprep.subr.mxu0 0.0
      %1146 = vmatpush1.msra.mxu0 %v897
      %1147 = vmatprep.subr.mxu0 0.0
      %1148 = vmatpush1.msra.mxu0 %v898
      %1149 = vmatprep.subr.mxu0 0.0
      %1150 = vmatpush1.msra.mxu0 %v899
      %1151 = vmatprep.subr.mxu0 0.0
      %1152 = vmatpush1.msra.mxu0 %v900
      %1153 = vmatprep.subr.mxu0 0.0
      %1154 = vmatpush1.msra.mxu0 %v901
      %1155 = vmatprep.subr.mxu0 0.0
      %1156 = vmatpush1.msra.mxu0 %v902
      %1157 = vmatprep.subr.mxu0 0.0
      %1158 = vmatpush1.msra.mxu0 %v903
      %1159 = vmatprep.subr.mxu0 0.0
      %1160 = vmatpush1.msra.mxu0 %v904
      %1161 = vmatprep.subr.mxu0 0.0
      %1162 = vmatpush1.msra.mxu0 %v905
      %1163 = vmatprep.subr.mxu0 0.0
      %1164 = vmatpush1.msra.mxu0 0.0
      %1165 = vmatprep.subr.mxu0 0.0
      %1166 = vmatpush1.msra.mxu0 0.0
      %1167 = vmatprep.subr.mxu0 0.0
      %1168 = vmatpush1.msra.mxu0 0.0
      %1169 = vmatprep.subr.mxu0 0.0
      %1170 = vmatpush1.msra.mxu0 0.0
      %1171 = vmatprep.subr.mxu0 0.0
      %1172 = vmatpush1.msra.mxu0 0.0
      %1173 = vmatprep.subr.mxu0 0.0
      %1174 = vmatpush1.msra.mxu0 0.0
      %1175 = vmatprep.subr.mxu0 0.0
      %1176 = vmatpush1.msra.mxu0 0.0
      %1177 = vmatprep.subr.mxu0 0.0
      %1178 = vmatpush1.msra.mxu0 0.0
      %1179 = vmatprep.subr.mxu0 0.0
      %1180 = vmatpush1.msra.mxu0 0.0
      %1181 = vmatprep.subr.mxu0 0.0
      %1182 = vmatpush1.msra.mxu0 0.0
      %1183 = vmatprep.subr.mxu0 0.0
      %1184 = vmatpush1.msra.mxu0 0.0
      %1185 = vmatprep.subr.mxu0 0.0
      %1186 = vmatpush1.msra.mxu0 0.0
      %1187 = vmatprep.subr.mxu0 0.0
      %1188 = vmatpush1.msra.mxu0 0.0
      %1189 = vmatprep.subr.mxu0 0.0
      %1190 = vmatpush1.msra.mxu0 0.0
      %1191 = vmatprep.subr.mxu0 0.0
      %1192 = vmatpush1.msra.mxu0 0.0
      %1193 = vmatprep.subr.mxu0 0.0
      %1194 = vmatpush1.msra.mxu0 0.0
      %1195 = vmatprep.mubr.f32.mxu0 0.0
      %1196 = vmatmul.mubr.f32.gmra.mrb[0].mxu0 %v825
      %v1197 = vpop.f32.mrb[0].mxu0
      %v1198 = vadd.f32 %v973, %v1197
      %v1199 = vpop.f32.mrb[0].mxu0
      %1200 = vmatprep.mubr.f32.mxu0 0.0
      %1201 = vmatmul.mubr.f32.gmra.mrb[0].mxu0 %v826
      %v1202 = vpop.f32.mrb[0].mxu0
      %v1203 = vadd.f32 %v978, %v1202
      %v1204 = vpop.f32.mrb[0].mxu0
      %1205 = vmatprep.mubr.f32.mxu0 0.0
      %1206 = vmatmul.mubr.f32.gmra.mrb[0].mxu0 %v827
      %v1207 = vpop.f32.mrb[0].mxu0
      %v1208 = vadd.f32 %v983, %v1207
      %v1209 = vpop.f32.mrb[0].mxu0
      %1210 = vmatprep.mubr.f32.mxu0 0.0
      %1211 = vmatmul.mubr.f32.gmra.mrb[0].mxu0 %v828
      %v1212 = vpop.f32.mrb[0].mxu0
      %v1213 = vadd.f32 %v988, %v1212
      %v1214 = vpop.f32.mrb[0].mxu0
      %1215 = vmatprep.mubr.f32.mxu0 0.0
      %1216 = vmatmul.mubr.f32.gmra.mrb[0].mxu0 %v829
      %v1217 = vpop.f32.mrb[0].mxu0
      %v1218 = vadd.f32 %v993, %v1217
      %v1219 = vpop.f32.mrb[0].mxu0
      %1220 = vmatprep.mubr.f32.mxu0 0.0
      %1221 = vmatmul.mubr.f32.gmra.mrb[0].mxu0 %v830
      %v1222 = vpop.f32.mrb[0].mxu0
      %v1223 = vadd.f32 %v998, %v1222
      %v1224 = vpop.f32.mrb[0].mxu0
      %1225 = vmatprep.mubr.f32.mxu0 0.0
      %1226 = vmatmul.mubr.f32.gmra.mrb[0].mxu0 %v831
      %v1227 = vpop.f32.mrb[0].mxu0
      %v1228 = vadd.f32 %v1003, %v1227
      %v1229 = vpop.f32.mrb[0].mxu0
      %1230 = vmatprep.mubr.f32.mxu0 0.0
      %1231 = vmatmul.mubr.f32.gmra.mrb[0].mxu0 %v832
      %v1232 = vpop.f32.mrb[0].mxu0
      %v1233 = vadd.f32 %v1008, %v1232
      %v1234 = vpop.f32.mrb[0].mxu0
      %1235 = vmatprep.mubr.f32.mxu0 0.0
      %1236 = vmatmul.mubr.f32.gmra.mrb[0].mxu0 %v833
      %v1237 = vpop.f32.mrb[0].mxu0
      %v1238 = vadd.f32 %v1013, %v1237
      %v1239 = vpop.f32.mrb[0].mxu0
      %1240 = vmatprep.mubr.f32.mxu0 0.0
      %1241 = vmatmul.mubr.f32.gmra.mrb[0].mxu0 %v834
      %v1242 = vpop.f32.mrb[0].mxu0
      %v1243 = vadd.f32 %v1018, %v1242
      %v1244 = vpop.f32.mrb[0].mxu0
      %1245 = vmatprep.mubr.f32.mxu0 0.0
      %1246 = vmatmul.mubr.f32.gmra.mrb[0].mxu0 %v835
      %v1247 = vpop.f32.mrb[0].mxu0
      %v1248 = vadd.f32 %v1023, %v1247
      %v1249 = vpop.f32.mrb[0].mxu0
      %1250 = vmatprep.mubr.f32.mxu0 0.0
      %1251 = vmatmul.mubr.f32.gmra.mrb[0].mxu0 %v836
      %v1252 = vpop.f32.mrb[0].mxu0
      %v1253 = vadd.f32 %v1028, %v1252
      %v1254 = vpop.f32.mrb[0].mxu0
      %1255 = vmatprep.mubr.f32.mxu0 0.0
      %1256 = vmatmul.mubr.f32.gmra.mrb[0].mxu0 %v837
      %v1257 = vpop.f32.mrb[0].mxu0
      %v1258 = vadd.f32 %v1033, %v1257
      %v1259 = vpop.f32.mrb[0].mxu0
      %1260 = vmatprep.mubr.f32.mxu0 0.0
      %1261 = vmatmul.mubr.f32.gmra.mrb[0].mxu0 %v838
      %v1262 = vpop.f32.mrb[0].mxu0
      %v1263 = vadd.f32 %v1038, %v1262
      %v1264 = vpop.f32.mrb[0].mxu0
      %1265 = vmatprep.mubr.f32.mxu0 0.0
      %1266 = vmatmul.mubr.f32.gmra.mrb[0].mxu0 %v839
      %v1267 = vpop.f32.mrb[0].mxu0
      %v1268 = vadd.f32 %v1043, %v1267
      %v1269 = vpop.f32.mrb[0].mxu0
      %1270 = vmatprep.mubr.f32.mxu0 0.0
      %1271 = vmatmul.mubr.f32.gmra.mrb[0].mxu0 %v840
      %v1272 = vpop.f32.mrb[0].mxu0
      %v1273 = vadd.f32 %v1048, %v1272
      %v1274 = vpop.f32.mrb[0].mxu0
      %1275 = vmatprep.mubr.f32.mxu0 0.0
      %1276 = vmatmul.mubr.f32.gmra.mrb[0].mxu0 %v841
      %v1277 = vpop.f32.mrb[0].mxu0
      %v1278 = vadd.f32 %v1053, %v1277
      %v1279 = vpop.f32.mrb[0].mxu0
      %1280 = vmatprep.mubr.f32.mxu0 0.0
      %1281 = vmatmul.mubr.f32.gmra.mrb[0].mxu0 %v842
      %v1282 = vpop.f32.mrb[0].mxu0
      %v1283 = vadd.f32 %v1058, %v1282
      %v1284 = vpop.f32.mrb[0].mxu0
      %1285 = vmatprep.mubr.f32.mxu0 0.0
      %1286 = vmatmul.mubr.f32.gmra.mrb[0].mxu0 %v843
      %v1287 = vpop.f32.mrb[0].mxu0
      %v1288 = vadd.f32 %v1063, %v1287
      %v1289 = vpop.f32.mrb[0].mxu0
      %1290 = vmatprep.mubr.f32.mxu0 0.0
      %1291 = vmatmul.mubr.f32.gmra.mrb[0].mxu0 %v844
      %v1292 = vpop.f32.mrb[0].mxu0
      %v1293 = vadd.f32 %v1068, %v1292
      %v1294 = vpop.f32.mrb[0].mxu0
      %1295 = vmatprep.mubr.f32.mxu0 0.0
      %1296 = vmatmul.mubr.f32.gmra.mrb[0].mxu0 %v845
      %v1297 = vpop.f32.mrb[0].mxu0
      %v1298 = vadd.f32 %v1073, %v1297
      %v1299 = vpop.f32.mrb[0].mxu0
      %1300 = vmatprep.mubr.f32.mxu0 0.0
      %1301 = vmatmul.mubr.f32.gmra.mrb[0].mxu0 %v846
      %v1302 = vpop.f32.mrb[0].mxu0
      %v1303 = vadd.f32 %v1078, %v1302
      %v1304 = vpop.f32.mrb[0].mxu0
      %1305 = vmatprep.mubr.f32.mxu0 0.0
      %1306 = vmatmul.mubr.f32.gmra.mrb[0].mxu0 %v847
      %v1307 = vpop.f32.mrb[0].mxu0
      %v1308 = vadd.f32 %v1083, %v1307
      %v1309 = vpop.f32.mrb[0].mxu0
      %1310 = vmatprep.mubr.f32.mxu0 0.0
      %1311 = vmatmul.mubr.f32.gmra.mrb[0].mxu0 %v848
      %v1312 = vpop.f32.mrb[0].mxu0
      %v1313 = vadd.f32 %v1088, %v1312
      %v1314 = vpop.f32.mrb[0].mxu0
      %1315 = vmatprep.mubr.f32.mxu0 0.0
      %1316 = vmatmul.mubr.f32.gmra.mrb[0].mxu0 %v849
      %v1317 = vpop.f32.mrb[0].mxu0
      %v1318 = vadd.f32 %v1093, %v1317
      %v1319 = vpop.f32.mrb[0].mxu0
      %1320 = vmatprep.mubr.f32.mxu0 0.0
      %1321 = vmatmul.mubr.f32.gmra.mrb[0].mxu0 %v850
      %v1322 = vpop.f32.mrb[0].mxu0
      %v1323 = vadd.f32 %v1098, %v1322
      %v1324 = vpop.f32.mrb[0].mxu0
      %1325 = vmatprep.mubr.f32.mxu0 0.0
      %1326 = vmatmul.mubr.f32.gmra.mrb[0].mxu0 %v851
      %v1327 = vpop.f32.mrb[0].mxu0
      %v1328 = vadd.f32 %v1103, %v1327
      %v1329 = vpop.f32.mrb[0].mxu0
      %1330 = vmatprep.mubr.f32.mxu0 0.0
      %1331 = vmatmul.mubr.f32.gmra.mrb[0].mxu0 %v852
      %v1332 = vpop.f32.mrb[0].mxu0
      %v1333 = vadd.f32 %v1108, %v1332
      %v1334 = vpop.f32.mrb[0].mxu0
      %1335 = vmatprep.mubr.f32.mxu0 0.0
      %1336 = vmatmul.mubr.f32.gmra.mrb[0].mxu0 %v853
      %v1337 = vpop.f32.mrb[0].mxu0
      %v1338 = vadd.f32 %v1113, %v1337
      %v1339 = vpop.f32.mrb[0].mxu0
      %1340 = vmatprep.mubr.f32.mxu0 0.0
      %1341 = vmatmul.mubr.f32.gmra.mrb[0].mxu0 %v854
      %v1342 = vpop.f32.mrb[0].mxu0
      %v1343 = vadd.f32 %v1118, %v1342
      %v1344 = vpop.f32.mrb[0].mxu0
      %1345 = vmatprep.mubr.f32.mxu0 0.0
      %1346 = vmatmul.mubr.f32.gmra.mrb[0].mxu0 %v855
      %v1347 = vpop.f32.mrb[0].mxu0
      %v1348 = vadd.f32 %v1123, %v1347
      %v1349 = vpop.f32.mrb[0].mxu0
      %1350 = vmatprep.mubr.f32.mxu0 0.0
      %1351 = vmatmul.mubr.f32.gmra.mrb[0].mxu0 %v856
      %v1352 = vpop.f32.mrb[0].mxu0
      %v1353 = vadd.f32 %v1128, %v1352
      %v1354 = vpop.f32.mrb[0].mxu0
      %1355 = vdwg.mxu0
      %1356 = vmatprep.subr.mxu0 0.0
      %1357 = vmatpush1.msra.mxu0 %v773
      %1358 = vmatprep.subr.mxu0 0.0
      %1359 = vmatpush1.msra.mxu0 %v774
      %1360 = vmatprep.subr.mxu0 0.0
      %1361 = vmatpush1.msra.mxu0 %v775
      %1362 = vmatprep.subr.mxu0 0.0
      %1363 = vmatpush1.msra.mxu0 %v776
      %1364 = vmatprep.subr.mxu0 0.0
      %1365 = vmatpush1.msra.mxu0 %v777
      %1366 = vmatprep.subr.mxu0 0.0
      %1367 = vmatpush1.msra.mxu0 %v778
      %1368 = vmatprep.subr.mxu0 0.0
      %1369 = vmatpush1.msra.mxu0 %v779
      %1370 = vmatprep.subr.mxu0 0.0
      %1371 = vmatpush1.msra.mxu0 %v780
      %1372 = vmatprep.subr.mxu0 0.0
      %1373 = vmatpush1.msra.mxu0 %v781
      %1374 = vmatprep.subr.mxu0 0.0
      %1375 = vmatpush1.msra.mxu0 %v782
      %1376 = vmatprep.subr.mxu0 0.0
      %1377 = vmatpush1.msra.mxu0 %v783
      %1378 = vmatprep.subr.mxu0 0.0
      %1379 = vmatpush1.msra.mxu0 %v784
      %1380 = vmatprep.subr.mxu0 0.0
      %1381 = vmatpush1.msra.mxu0 %v785
      %1382 = vmatprep.subr.mxu0 0.0
      %1383 = vmatpush1.msra.mxu0 %v786
      %1384 = vmatprep.subr.mxu0 0.0
      %1385 = vmatpush1.msra.mxu0 %v787
      %1386 = vmatprep.subr.mxu0 0.0
      %1387 = vmatpush1.msra.mxu0 %v788
      %1388 = vmatprep.subr.mxu0 0.0
      %1389 = vmatpush1.msra.mxu0 %v789
      %1390 = vmatprep.subr.mxu0 0.0
      %1391 = vmatpush1.msra.mxu0 %v790
      %1392 = vmatprep.subr.mxu0 0.0
      %1393 = vmatpush1.msra.mxu0 %v791
      %1394 = vmatprep.subr.mxu0 0.0
      %1395 = vmatpush1.msra.mxu0 %v792
      %1396 = vmatprep.subr.mxu0 0.0
      %1397 = vmatpush1.msra.mxu0 %v793
      %1398 = vmatprep.subr.mxu0 0.0
      %1399 = vmatpush1.msra.mxu0 %v794
      %1400 = vmatprep.subr.mxu0 0.0
      %1401 = vmatpush1.msra.mxu0 %v795
      %1402 = vmatprep.subr.mxu0 0.0
      %1403 = vmatpush1.msra.mxu0 %v796
      %1404 = vmatprep.subr.mxu0 0.0
      %1405 = vmatpush1.msra.mxu0 %v797
      %1406 = vmatprep.subr.mxu0 0.0
      %1407 = vmatpush1.msra.mxu0 %v798
      %1408 = vmatprep.subr.mxu0 0.0
      %1409 = vmatpush1.msra.mxu0 %v799
      %1410 = vmatprep.subr.mxu0 0.0
      %1411 = vmatpush1.msra.mxu0 %v800
      %1412 = vmatprep.subr.mxu0 0.0
      %1413 = vmatpush1.msra.mxu0 %v801
      %1414 = vmatprep.subr.mxu0 0.0
      %1415 = vmatpush1.msra.mxu0 %v802
      %1416 = vmatprep.subr.mxu0 0.0
      %1417 = vmatpush1.msra.mxu0 %v803
      %1418 = vmatprep.subr.mxu0 0.0
      %1419 = vmatpush1.msra.mxu0 %v804
      %1420 = vmatprep.mubr.f32.mxu0 %v739
      %1421 = vmatmul.mubr.f32.gmra.mrb[0].mxu0 %v737
      %v1422 = vpop.f32.mrb[0].mxu0
      %v1423 = vadd.f32 %v1198, %v1422
      %v1424 = vpop.f32.mrb[0].mxu0
      %1425 = vmatprep.mubr.f32.mxu0 %v740
      %1426 = vmatmul.mubr.f32.gmra.mrb[0].mxu0 %v738
      %v1427 = vpop.f32.mrb[0].mxu0
      %v1428 = vadd.f32 %v1203, %v1427
      %v1429 = vpop.f32.mrb[0].mxu0
      %1430 = vmatprep.mubr.f32.mxu0 %v741
      %1431 = vmatmul.mubr.f32.gmra.mrb[0].mxu0 %v739
      %v1432 = vpop.f32.mrb[0].mxu0
      %v1433 = vadd.f32 %v1208, %v1432
      %v1434 = vpop.f32.mrb[0].mxu0
      %1435 = vmatprep.mubr.f32.mxu0 %v742
      %1436 = vmatmul.mubr.f32.gmra.mrb[0].mxu0 %v740
      %v1437 = vpop.f32.mrb[0].mxu0
      %v1438 = vadd.f32 %v1213, %v1437
      %v1439 = vpop.f32.mrb[0].mxu0
      %1440 = vmatprep.mubr.f32.mxu0 %v743
      %1441 = vmatmul.mubr.f32.gmra.mrb[0].mxu0 %v741
      %v1442 = vpop.f32.mrb[0].mxu0
      %v1443 = vadd.f32 %v1218, %v1442
      %v1444 = vpop.f32.mrb[0].mxu0
      %1445 = vmatprep.mubr.f32.mxu0 %v744
      %1446 = vmatmul.mubr.f32.gmra.mrb[0].mxu0 %v742
      %v1447 = vpop.f32.mrb[0].mxu0
      %v1448 = vadd.f32 %v1223, %v1447
      %v1449 = vpop.f32.mrb[0].mxu0
      %1450 = vmatprep.mubr.f32.mxu0 %v745
      %1451 = vmatmul.mubr.f32.gmra.mrb[0].mxu0 %v743
      %v1452 = vpop.f32.mrb[0].mxu0
      %v1453 = vadd.f32 %v1228, %v1452
      %v1454 = vpop.f32.mrb[0].mxu0
      %1455 = vmatprep.mubr.f32.mxu0 %v746
      %1456 = vmatmul.mubr.f32.gmra.mrb[0].mxu0 %v744
      %v1457 = vpop.f32.mrb[0].mxu0
      %v1458 = vadd.f32 %v1233, %v1457
      %v1459 = vpop.f32.mrb[0].mxu0
      %1460 = vmatprep.mubr.f32.mxu0 %v747
      %1461 = vmatmul.mubr.f32.gmra.mrb[0].mxu0 %v745
      %v1462 = vpop.f32.mrb[0].mxu0
      %v1463 = vadd.f32 %v1238, %v1462
      %v1464 = vpop.f32.mrb[0].mxu0
      %1465 = vmatprep.mubr.f32.mxu0 %v748
      %1466 = vmatmul.mubr.f32.gmra.mrb[0].mxu0 %v746
      %v1467 = vpop.f32.mrb[0].mxu0
      %v1468 = vadd.f32 %v1243, %v1467
      %v1469 = vpop.f32.mrb[0].mxu0
      %1470 = vmatprep.mubr.f32.mxu0 %v749
      %1471 = vmatmul.mubr.f32.gmra.mrb[0].mxu0 %v747
      %v1472 = vpop.f32.mrb[0].mxu0
      %v1473 = vadd.f32 %v1248, %v1472
      %v1474 = vpop.f32.mrb[0].mxu0
      %1475 = vmatprep.mubr.f32.mxu0 %v750
      %1476 = vmatmul.mubr.f32.gmra.mrb[0].mxu0 %v748
      %v1477 = vpop.f32.mrb[0].mxu0
      %v1478 = vadd.f32 %v1253, %v1477
      %v1479 = vpop.f32.mrb[0].mxu0
      %1480 = vmatprep.mubr.f32.mxu0 %v751
      %1481 = vmatmul.mubr.f32.gmra.mrb[0].mxu0 %v749
      %v1482 = vpop.f32.mrb[0].mxu0
      %v1483 = vadd.f32 %v1258, %v1482
      %v1484 = vpop.f32.mrb[0].mxu0
      %1485 = vmatprep.mubr.f32.mxu0 %v752
      %1486 = vmatmul.mubr.f32.gmra.mrb[0].mxu0 %v750
      %v1487 = vpop.f32.mrb[0].mxu0
      %v1488 = vadd.f32 %v1263, %v1487
      %v1489 = vpop.f32.mrb[0].mxu0
      %1490 = vmatprep.mubr.f32.mxu0 %v753
      %1491 = vmatmul.mubr.f32.gmra.mrb[0].mxu0 %v751
      %v1492 = vpop.f32.mrb[0].mxu0
      %v1493 = vadd.f32 %v1268, %v1492
      %v1494 = vpop.f32.mrb[0].mxu0
      %1495 = vmatprep.mubr.f32.mxu0 %v754
      %1496 = vmatmul.mubr.f32.gmra.mrb[0].mxu0 %v752
      %v1497 = vpop.f32.mrb[0].mxu0
      %v1498 = vadd.f32 %v1273, %v1497
      %v1499 = vpop.f32.mrb[0].mxu0
      %1500 = vmatprep.mubr.f32.mxu0 %v755
      %1501 = vmatmul.mubr.f32.gmra.mrb[0].mxu0 %v753
      %v1502 = vpop.f32.mrb[0].mxu0
      %v1503 = vadd.f32 %v1278, %v1502
      %v1504 = vpop.f32.mrb[0].mxu0
      %1505 = vmatprep.mubr.f32.mxu0 %v756
      %1506 = vmatmul.mubr.f32.gmra.mrb[0].mxu0 %v754
      %v1507 = vpop.f32.mrb[0].mxu0
      %v1508 = vadd.f32 %v1283, %v1507
      %v1509 = vpop.f32.mrb[0].mxu0
      %1510 = vmatprep.mubr.f32.mxu0 %v757
      %1511 = vmatmul.mubr.f32.gmra.mrb[0].mxu0 %v755
      %v1512 = vpop.f32.mrb[0].mxu0
      %v1513 = vadd.f32 %v1288, %v1512
      %v1514 = vpop.f32.mrb[0].mxu0
      %1515 = vmatprep.mubr.f32.mxu0 %v758
      %1516 = vmatmul.mubr.f32.gmra.mrb[0].mxu0 %v756
      %v1517 = vpop.f32.mrb[0].mxu0
      %v1518 = vadd.f32 %v1293, %v1517
      %v1519 = vpop.f32.mrb[0].mxu0
      %1520 = vmatprep.mubr.f32.mxu0 %v759
      %1521 = vmatmul.mubr.f32.gmra.mrb[0].mxu0 %v757
      %v1522 = vpop.f32.mrb[0].mxu0
      %v1523 = vadd.f32 %v1298, %v1522
      %v1524 = vpop.f32.mrb[0].mxu0
      %1525 = vmatprep.mubr.f32.mxu0 %v760
      %1526 = vmatmul.mubr.f32.gmra.mrb[0].mxu0 %v758
      %v1527 = vpop.f32.mrb[0].mxu0
      %v1528 = vadd.f32 %v1303, %v1527
      %v1529 = vpop.f32.mrb[0].mxu0
      %1530 = vmatprep.mubr.f32.mxu0 %v761
      %1531 = vmatmul.mubr.f32.gmra.mrb[0].mxu0 %v759
      %v1532 = vpop.f32.mrb[0].mxu0
      %v1533 = vadd.f32 %v1308, %v1532
      %v1534 = vpop.f32.mrb[0].mxu0
      %1535 = vmatprep.mubr.f32.mxu0 %v762
      %1536 = vmatmul.mubr.f32.gmra.mrb[0].mxu0 %v760
      %v1537 = vpop.f32.mrb[0].mxu0
      %v1538 = vadd.f32 %v1313, %v1537
      %v1539 = vpop.f32.mrb[0].mxu0
      %1540 = vmatprep.mubr.f32.mxu0 %v763
      %1541 = vmatmul.mubr.f32.gmra.mrb[0].mxu0 %v761
      %v1542 = vpop.f32.mrb[0].mxu0
      %v1543 = vadd.f32 %v1318, %v1542
      %v1544 = vpop.f32.mrb[0].mxu0
      %1545 = vmatprep.mubr.f32.mxu0 %v764
      %1546 = vmatmul.mubr.f32.gmra.mrb[0].mxu0 %v762
      %v1547 = vpop.f32.mrb[0].mxu0
      %v1548 = vadd.f32 %v1323, %v1547
      %v1549 = vpop.f32.mrb[0].mxu0
      %1550 = vmatprep.mubr.f32.mxu0 %v765
      %1551 = vmatmul.mubr.f32.gmra.mrb[0].mxu0 %v763
      %v1552 = vpop.f32.mrb[0].mxu0
      %v1553 = vadd.f32 %v1328, %v1552
      %v1554 = vpop.f32.mrb[0].mxu0
      %1555 = vmatprep.mubr.f32.mxu0 %v766
      %1556 = vmatmul.mubr.f32.gmra.mrb[0].mxu0 %v764
      %v1557 = vpop.f32.mrb[0].mxu0
      %v1558 = vadd.f32 %v1333, %v1557
      %v1559 = vpop.f32.mrb[0].mxu0
      %1560 = vmatprep.mubr.f32.mxu0 %v767
      %1561 = vmatmul.mubr.f32.gmra.mrb[0].mxu0 %v765
      %v1562 = vpop.f32.mrb[0].mxu0
      %v1563 = vadd.f32 %v1338, %v1562
      %v1564 = vpop.f32.mrb[0].mxu0
      %1565 = vmatprep.mubr.f32.mxu0 %v768
      %1566 = vmatmul.mubr.f32.gmra.mrb[0].mxu0 %v766
      %v1567 = vpop.f32.mrb[0].mxu0
      %v1568 = vadd.f32 %v1343, %v1567
      %v1569 = vpop.f32.mrb[0].mxu0
      %1570 = vmatprep.mubr.f32.mxu0 %v769
      %1571 = vmatmul.mubr.f32.gmra.mrb[0].mxu0 %v767
      %v1572 = vpop.f32.mrb[0].mxu0
      %v1573 = vadd.f32 %v1348, %v1572
      %v1574 = vpop.f32.mrb[0].mxu0
      %1575 = vmatprep.mubr.f32.mxu0 %v770
      %1576 = vmatmul.mubr.f32.gmra.mrb[0].mxu0 %v768
      %v1577 = vpop.f32.mrb[0].mxu0
      %v1578 = vadd.f32 %v1353, %v1577
      %v1579 = vpop.f32.mrb[0].mxu0
      %1580 = vdwg.mxu0
      %1581 = vmatprep.subr.mxu0 0.0
      %1582 = vmatpush1.msra.mxu0 %v805
      %1583 = vmatprep.subr.mxu0 0.0
      %1584 = vmatpush1.msra.mxu0 %v806
      %1585 = vmatprep.subr.mxu0 0.0
      %1586 = vmatpush1.msra.mxu0 %v807
      %1587 = vmatprep.subr.mxu0 0.0
      %1588 = vmatpush1.msra.mxu0 %v808
      %1589 = vmatprep.subr.mxu0 0.0
      %1590 = vmatpush1.msra.mxu0 %v809
      %1591 = vmatprep.subr.mxu0 0.0
      %1592 = vmatpush1.msra.mxu0 %v810
      %1593 = vmatprep.subr.mxu0 0.0
      %1594 = vmatpush1.msra.mxu0 %v811
      %1595 = vmatprep.subr.mxu0 0.0
      %1596 = vmatpush1.msra.mxu0 %v812
      %1597 = vmatprep.subr.mxu0 0.0
      %1598 = vmatpush1.msra.mxu0 %v813
      %1599 = vmatprep.subr.mxu0 0.0
      %1600 = vmatpush1.msra.mxu0 %v814
      %1601 = vmatprep.subr.mxu0 0.0
      %1602 = vmatpush1.msra.mxu0 %v815
      %1603 = vmatprep.subr.mxu0 0.0
      %1604 = vmatpush1.msra.mxu0 %v816
      %1605 = vmatprep.subr.mxu0 0.0
      %1606 = vmatpush1.msra.mxu0 %v817
      %1607 = vmatprep.subr.mxu0 0.0
      %1608 = vmatpush1.msra.mxu0 %v818
      %1609 = vmatprep.subr.mxu0 0.0
      %1610 = vmatpush1.msra.mxu0 %v819
      %1611 = vmatprep.subr.mxu0 0.0
      %1612 = vmatpush1.msra.mxu0 %v820
      %1613 = vmatprep.subr.mxu0 0.0
      %1614 = vmatpush1.msra.mxu0 0.0
      %1615 = vmatprep.subr.mxu0 0.0
      %1616 = vmatpush1.msra.mxu0 0.0
      %1617 = vmatprep.subr.mxu0 0.0
      %1618 = vmatpush1.msra.mxu0 0.0
      %1619 = vmatprep.subr.mxu0 0.0
      %1620 = vmatpush1.msra.mxu0 0.0
      %1621 = vmatprep.subr.mxu0 0.0
      %1622 = vmatpush1.msra.mxu0 0.0
      %1623 = vmatprep.subr.mxu0 0.0
      %1624 = vmatpush1.msra.mxu0 0.0
      %1625 = vmatprep.subr.mxu0 0.0
      %1626 = vmatpush1.msra.mxu0 0.0
      %1627 = vmatprep.subr.mxu0 0.0
      %1628 = vmatpush1.msra.mxu0 0.0
      %1629 = vmatprep.subr.mxu0 0.0
      %1630 = vmatpush1.msra.mxu0 0.0
      %1631 = vmatprep.subr.mxu0 0.0
      %1632 = vmatpush1.msra.mxu0 0.0
      %1633 = vmatprep.subr.mxu0 0.0
      %1634 = vmatpush1.msra.mxu0 0.0
      %1635 = vmatprep.subr.mxu0 0.0
      %1636 = vmatpush1.msra.mxu0 0.0
      %1637 = vmatprep.subr.mxu0 0.0
      %1638 = vmatpush1.msra.mxu0 0.0
      %1639 = vmatprep.subr.mxu0 0.0
      %1640 = vmatpush1.msra.mxu0 0.0
      %1641 = vmatprep.subr.mxu0 0.0
      %1642 = vmatpush1.msra.mxu0 0.0
      %1643 = vmatprep.subr.mxu0 0.0
      %1644 = vmatpush1.msra.mxu0 0.0
      %1645 = vmatprep.mubr.f32.mxu0 0.0
      %1646 = vmatmul.mubr.f32.gmra.mrb[0].mxu0 %v741
      %v1647 = vpop.f32.mrb[0].mxu0
      %v1648 = vadd.f32 %v1423, %v1647
      %v1649 = vpop.f32.mrb[0].mxu0
      %1650 = vmatprep.mubr.f32.mxu0 0.0
      %1651 = vmatmul.mubr.f32.gmra.mrb[0].mxu0 %v742
      %v1652 = vpop.f32.mrb[0].mxu0
      %v1653 = vadd.f32 %v1428, %v1652
      %v1654 = vpop.f32.mrb[0].mxu0
      %1655 = vmatprep.mubr.f32.mxu0 0.0
      %1656 = vmatmul.mubr.f32.gmra.mrb[0].mxu0 %v743
      %v1657 = vpop.f32.mrb[0].mxu0
      %v1658 = vadd.f32 %v1433, %v1657
      %v1659 = vpop.f32.mrb[0].mxu0
      %1660 = vmatprep.mubr.f32.mxu0 0.0
      %1661 = vmatmul.mubr.f32.gmra.mrb[0].mxu0 %v744
      %v1662 = vpop.f32.mrb[0].mxu0
      %v1663 = vadd.f32 %v1438, %v1662
      %v1664 = vpop.f32.mrb[0].mxu0
      %1665 = vmatprep.mubr.f32.mxu0 0.0
      %1666 = vmatmul.mubr.f32.gmra.mrb[0].mxu0 %v745
      %v1667 = vpop.f32.mrb[0].mxu0
      %v1668 = vadd.f32 %v1443, %v1667
      %v1669 = vpop.f32.mrb[0].mxu0
      %1670 = vmatprep.mubr.f32.mxu0 0.0
      %1671 = vmatmul.mubr.f32.gmra.mrb[0].mxu0 %v746
      %v1672 = vpop.f32.mrb[0].mxu0
      %v1673 = vadd.f32 %v1448, %v1672
      %v1674 = vpop.f32.mrb[0].mxu0
      %1675 = vmatprep.mubr.f32.mxu0 0.0
      %1676 = vmatmul.mubr.f32.gmra.mrb[0].mxu0 %v747
      %v1677 = vpop.f32.mrb[0].mxu0
      %v1678 = vadd.f32 %v1453, %v1677
      %v1679 = vpop.f32.mrb[0].mxu0
      %1680 = vmatprep.mubr.f32.mxu0 0.0
      %1681 = vmatmul.mubr.f32.gmra.mrb[0].mxu0 %v748
      %v1682 = vpop.f32.mrb[0].mxu0
      %v1683 = vadd.f32 %v1458, %v1682
      %v1684 = vpop.f32.mrb[0].mxu0
      %1685 = vmatprep.mubr.f32.mxu0 0.0
      %1686 = vmatmul.mubr.f32.gmra.mrb[0].mxu0 %v749
      %v1687 = vpop.f32.mrb[0].mxu0
      %v1688 = vadd.f32 %v1463, %v1687
      %v1689 = vpop.f32.mrb[0].mxu0
      %1690 = vmatprep.mubr.f32.mxu0 0.0
      %1691 = vmatmul.mubr.f32.gmra.mrb[0].mxu0 %v750
      %v1692 = vpop.f32.mrb[0].mxu0
      %v1693 = vadd.f32 %v1468, %v1692
      %v1694 = vpop.f32.mrb[0].mxu0
      %1695 = vmatprep.mubr.f32.mxu0 0.0
      %1696 = vmatmul.mubr.f32.gmra.mrb[0].mxu0 %v751
      %v1697 = vpop.f32.mrb[0].mxu0
      %v1698 = vadd.f32 %v1473, %v1697
      %v1699 = vpop.f32.mrb[0].mxu0
      %1700 = vmatprep.mubr.f32.mxu0 0.0
      %1701 = vmatmul.mubr.f32.gmra.mrb[0].mxu0 %v752
      %v1702 = vpop.f32.mrb[0].mxu0
      %v1703 = vadd.f32 %v1478, %v1702
      %v1704 = vpop.f32.mrb[0].mxu0
      %1705 = vmatprep.mubr.f32.mxu0 0.0
      %1706 = vmatmul.mubr.f32.gmra.mrb[0].mxu0 %v753
      %v1707 = vpop.f32.mrb[0].mxu0
      %v1708 = vadd.f32 %v1483, %v1707
      %v1709 = vpop.f32.mrb[0].mxu0
      %1710 = vmatprep.mubr.f32.mxu0 0.0
      %1711 = vmatmul.mubr.f32.gmra.mrb[0].mxu0 %v754
      %v1712 = vpop.f32.mrb[0].mxu0
      %v1713 = vadd.f32 %v1488, %v1712
      %v1714 = vpop.f32.mrb[0].mxu0
      %1715 = vmatprep.mubr.f32.mxu0 0.0
      %1716 = vmatmul.mubr.f32.gmra.mrb[0].mxu0 %v755
      %v1717 = vpop.f32.mrb[0].mxu0
      %v1718 = vadd.f32 %v1493, %v1717
      %v1719 = vpop.f32.mrb[0].mxu0
      %1720 = vmatprep.mubr.f32.mxu0 0.0
      %1721 = vmatmul.mubr.f32.gmra.mrb[0].mxu0 %v756
      %v1722 = vpop.f32.mrb[0].mxu0
      %v1723 = vadd.f32 %v1498, %v1722
      %v1724 = vpop.f32.mrb[0].mxu0
      %1725 = vmatprep.mubr.f32.mxu0 0.0
      %1726 = vmatmul.mubr.f32.gmra.mrb[0].mxu0 %v757
      %v1727 = vpop.f32.mrb[0].mxu0
      %v1728 = vadd.f32 %v1503, %v1727
      %v1729 = vpop.f32.mrb[0].mxu0
      %1730 = vmatprep.mubr.f32.mxu0 0.0
      %1731 = vmatmul.mubr.f32.gmra.mrb[0].mxu0 %v758
      %v1732 = vpop.f32.mrb[0].mxu0
      %v1733 = vadd.f32 %v1508, %v1732
      %v1734 = vpop.f32.mrb[0].mxu0
      %1735 = vmatprep.mubr.f32.mxu0 0.0
      %1736 = vmatmul.mubr.f32.gmra.mrb[0].mxu0 %v759
      %v1737 = vpop.f32.mrb[0].mxu0
      %v1738 = vadd.f32 %v1513, %v1737
      %v1739 = vpop.f32.mrb[0].mxu0
      %1740 = vmatprep.mubr.f32.mxu0 0.0
      %1741 = vmatmul.mubr.f32.gmra.mrb[0].mxu0 %v760
      %v1742 = vpop.f32.mrb[0].mxu0
      %v1743 = vadd.f32 %v1518, %v1742
      %v1744 = vpop.f32.mrb[0].mxu0
      %1745 = vmatprep.mubr.f32.mxu0 0.0
      %1746 = vmatmul.mubr.f32.gmra.mrb[0].mxu0 %v761
      %v1747 = vpop.f32.mrb[0].mxu0
      %v1748 = vadd.f32 %v1523, %v1747
      %v1749 = vpop.f32.mrb[0].mxu0
      %1750 = vmatprep.mubr.f32.mxu0 0.0
      %1751 = vmatmul.mubr.f32.gmra.mrb[0].mxu0 %v762
      %v1752 = vpop.f32.mrb[0].mxu0
      %v1753 = vadd.f32 %v1528, %v1752
      %v1754 = vpop.f32.mrb[0].mxu0
      %1755 = vmatprep.mubr.f32.mxu0 0.0
      %1756 = vmatmul.mubr.f32.gmra.mrb[0].mxu0 %v763
      %v1757 = vpop.f32.mrb[0].mxu0
      %v1758 = vadd.f32 %v1533, %v1757
      %v1759 = vpop.f32.mrb[0].mxu0
      %1760 = vmatprep.mubr.f32.mxu0 0.0
      %1761 = vmatmul.mubr.f32.gmra.mrb[0].mxu0 %v764
      %v1762 = vpop.f32.mrb[0].mxu0
      %v1763 = vadd.f32 %v1538, %v1762
      %v1764 = vpop.f32.mrb[0].mxu0
      %1765 = vmatprep.mubr.f32.mxu0 0.0
      %1766 = vmatmul.mubr.f32.gmra.mrb[0].mxu0 %v765
      %v1767 = vpop.f32.mrb[0].mxu0
      %v1768 = vadd.f32 %v1543, %v1767
      %v1769 = vpop.f32.mrb[0].mxu0
      %1770 = vmatprep.mubr.f32.mxu0 0.0
      %1771 = vmatmul.mubr.f32.gmra.mrb[0].mxu0 %v766
      %v1772 = vpop.f32.mrb[0].mxu0
      %v1773 = vadd.f32 %v1548, %v1772
      %v1774 = vpop.f32.mrb[0].mxu0
      %1775 = vmatprep.mubr.f32.mxu0 0.0
      %1776 = vmatmul.mubr.f32.gmra.mrb[0].mxu0 %v767
      %v1777 = vpop.f32.mrb[0].mxu0
      %v1778 = vadd.f32 %v1553, %v1777
      %v1779 = vpop.f32.mrb[0].mxu0
      %1780 = vmatprep.mubr.f32.mxu0 0.0
      %1781 = vmatmul.mubr.f32.gmra.mrb[0].mxu0 %v768
      %v1782 = vpop.f32.mrb[0].mxu0
      %v1783 = vadd.f32 %v1558, %v1782
      %v1784 = vpop.f32.mrb[0].mxu0
      %1785 = vmatprep.mubr.f32.mxu0 0.0
      %1786 = vmatmul.mubr.f32.gmra.mrb[0].mxu0 %v769
      %v1787 = vpop.f32.mrb[0].mxu0
      %v1788 = vadd.f32 %v1563, %v1787
      %v1789 = vpop.f32.mrb[0].mxu0
      %1790 = vmatprep.mubr.f32.mxu0 0.0
      %1791 = vmatmul.mubr.f32.gmra.mrb[0].mxu0 %v770
      %v1792 = vpop.f32.mrb[0].mxu0
      %v1793 = vadd.f32 %v1568, %v1792
      %v1794 = vpop.f32.mrb[0].mxu0
      %1795 = vmatprep.mubr.f32.mxu0 0.0
      %1796 = vmatmul.mubr.f32.gmra.mrb[0].mxu0 %v771
      %v1797 = vpop.f32.mrb[0].mxu0
      %v1798 = vadd.f32 %v1573, %v1797
      %v1799 = vpop.f32.mrb[0].mxu0
      %1800 = vmatprep.mubr.f32.mxu0 0.0
      %1801 = vmatmul.mubr.f32.gmra.mrb[0].mxu0 %v772
      %v1802 = vpop.f32.mrb[0].mxu0
      %v1803 = vadd.f32 %v1578, %v1802
      %v1804 = vpop.f32.mrb[0].mxu0
      %1805 = vdwg.mxu0
      %v1806 = vld [vmem:[#allocation2 + $0x2] sm:$0xff]
      %v1807 = vld [vmem:[#allocation2 + $0xa] sm:$0xff]
      %v1808 = vld [vmem:[#allocation2 + $0x1a] sm:$0xff]
      %v1809 = vld [vmem:[#allocation2 + $0x22] sm:$0xff]
      %v1810 = vld [vmem:[#allocation2 + $0x32] sm:$0xff]
      %v1811 = vld [vmem:[#allocation2 + $0x3a] sm:$0xff]
      %v1812 = vld [vmem:[#allocation2 + $0x4a] sm:$0xff]
      %v1813 = vld [vmem:[#allocation2 + $0x52] sm:$0xff]
      %v1814 = vld [vmem:[#allocation2 + $0x62] sm:$0xff]
      %v1815 = vld [vmem:[#allocation2 + $0x6a] sm:$0xff]
      %v1816 = vld [vmem:[#allocation2 + $0x7a] sm:$0xff]
      %v1817 = vld [vmem:[#allocation2 + $0x82] sm:$0xff]
      %v1818 = vld [vmem:[#allocation2 + $0x92] sm:$0xff]
      %v1819 = vld [vmem:[#allocation2 + $0x9a] sm:$0xff]
      %v1820 = vld [vmem:[#allocation2 + $0xaa] sm:$0xff]
      %v1821 = vld [vmem:[#allocation2 + $0xb2] sm:$0xff]
      %v1822 = vld [vmem:[#allocation2 + $0xc2] sm:$0xff]
      %v1823 = vld [vmem:[#allocation2 + $0xca] sm:$0xff]
      %v1824 = vld [vmem:[#allocation2 + $0xda] sm:$0xff]
      %v1825 = vld [vmem:[#allocation2 + $0xe2] sm:$0xff]
      %v1826 = vld [vmem:[#allocation2 + $0xf2] sm:$0xff]
      %v1827 = vld [vmem:[#allocation2 + $0xfa] sm:$0xff]
      %v1828 = vld [vmem:[#allocation2 + $0x10a] sm:$0xff]
      %v1829 = vld [vmem:[#allocation2 + $0x112] sm:$0xff]
      %v1830 = vld [vmem:[#allocation2 + $0x122] sm:$0xff]
      %v1831 = vld [vmem:[#allocation2 + $0x12a] sm:$0xff]
      %v1832 = vld [vmem:[#allocation2 + $0x13a] sm:$0xff]
      %v1833 = vld [vmem:[#allocation2 + $0x142] sm:$0xff]
      %v1834 = vld [vmem:[#allocation2 + $0x152] sm:$0xff]
      %v1835 = vld [vmem:[#allocation2 + $0x15a] sm:$0xff]
      %v1836 = vld [vmem:[#allocation2 + $0x16a] sm:$0xff]
      %v1837 = vld [vmem:[#allocation2 + $0x172] sm:$0xff]
      %v1838 = vld [vmem:[#allocation2 + $0x182] sm:$0xff]
      %v1839 = vld [vmem:[#allocation2 + $0x18a] sm:$0xff]
      %v1840 = vld [vmem:[#allocation2 + $0x19a] sm:$0xff]
      %v1841 = vld [vmem:[#allocation2 + $0x1a2] sm:$0xff]
      %s1842 = scalar_lea.vmem %s5, 768
      %v1843 = vld [vmem:[%s1842] sm:$0xff]
      %v1844 = vld [vmem:[%s1842 + $0x8] sm:$0xff]
      %v1845 = vld [vmem:[%s1842 + $0x10] sm:$0xff]
      %v1846 = vld [vmem:[%s1842 + $0x18] sm:$0xff]
      %v1847 = vld [vmem:[%s1842 + $0x20] sm:$0xff]
      %v1848 = vld [vmem:[%s1842 + $0x28] sm:$0xff]
      %v1849 = vld [vmem:[%s1842 + $0x30] sm:$0xff]
      %v1850 = vld [vmem:[%s1842 + $0x38] sm:$0xff]
      %v1851 = vld [vmem:[%s1842 + $0x40] sm:$0xff]
      %v1852 = vld [vmem:[%s1842 + $0x48] sm:$0xff]
      %v1853 = vld [vmem:[%s1842 + $0x50] sm:$0xff]
      %v1854 = vld [vmem:[%s1842 + $0x58] sm:$0xff]
      %v1855 = vld [vmem:[%s1842 + $0x60] sm:$0xff]
      %v1856 = vld [vmem:[%s1842 + $0x68] sm:$0xff]
      %v1857 = vld [vmem:[%s1842 + $0x70] sm:$0xff]
      %v1858 = vld [vmem:[%s1842 + $0x78] sm:$0xff]
      %v1859 = vld [vmem:[%s1842 + $0x80] sm:$0xff]
      %v1860 = vld [vmem:[%s1842 + $0x88] sm:$0xff]
      %v1861 = vld [vmem:[%s1842 + $0x90] sm:$0xff]
      %v1862 = vld [vmem:[%s1842 + $0x98] sm:$0xff]
      %v1863 = vld [vmem:[%s1842 + $0xa0] sm:$0xff]
      %v1864 = vld [vmem:[%s1842 + $0xa8] sm:$0xff]
      %v1865 = vld [vmem:[%s1842 + $0xb0] sm:$0xff]
      %v1866 = vld [vmem:[%s1842 + $0xb8] sm:$0xff]
      %v1867 = vld [vmem:[%s1842 + $0xc0] sm:$0xff]
      %v1868 = vld [vmem:[%s1842 + $0xc8] sm:$0xff]
      %v1869 = vld [vmem:[%s1842 + $0xd0] sm:$0xff]
      %v1870 = vld [vmem:[%s1842 + $0xd8] sm:$0xff]
      %v1871 = vld [vmem:[%s1842 + $0xe0] sm:$0xff]
      %v1872 = vld [vmem:[%s1842 + $0xe8] sm:$0xff]
      %v1873 = vld [vmem:[%s1842 + $0xf0] sm:$0xff]
      %v1874 = vld [vmem:[%s1842 + $0xf8] sm:$0xff]
      %v1875 = vld [vmem:[%s1842 + $0x100] sm:$0xff]
      %v1876 = vld [vmem:[%s1842 + $0x108] sm:$0xff]
      %v1877 = vld [vmem:[%s1842 + $0x110] sm:$0xff]
      %v1878 = vld [vmem:[%s1842 + $0x118] sm:$0xff]
      %v1879 = vld [vmem:[%s1842 + $0x120] sm:$0xff]
      %v1880 = vld [vmem:[%s1842 + $0x128] sm:$0xff]
      %v1881 = vld [vmem:[%s1842 + $0x130] sm:$0xff]
      %v1882 = vld [vmem:[%s1842 + $0x138] sm:$0xff]
      %v1883 = vld [vmem:[%s1842 + $0x140] sm:$0xff]
      %v1884 = vld [vmem:[%s1842 + $0x148] sm:$0xff]
      %v1885 = vld [vmem:[%s1842 + $0x150] sm:$0xff]
      %v1886 = vld [vmem:[%s1842 + $0x158] sm:$0xff]
      %v1887 = vld [vmem:[%s1842 + $0x160] sm:$0xff]
      %v1888 = vld [vmem:[%s1842 + $0x168] sm:$0xff]
      %v1889 = vld [vmem:[%s1842 + $0x170] sm:$0xff]
      %v1890 = vld [vmem:[%s1842 + $0x178] sm:$0xff]
      %1891 = vmatprep.subr.mxu0 0.0
      %1892 = vmatpush1.msra.mxu0 %v1843
      %1893 = vmatprep.subr.mxu0 0.0
      %1894 = vmatpush1.msra.mxu0 %v1844
      %1895 = vmatprep.subr.mxu0 0.0
      %1896 = vmatpush1.msra.mxu0 %v1845
      %1897 = vmatprep.subr.mxu0 0.0
      %1898 = vmatpush1.msra.mxu0 %v1846
      %1899 = vmatprep.subr.mxu0 0.0
      %1900 = vmatpush1.msra.mxu0 %v1847
      %1901 = vmatprep.subr.mxu0 0.0
      %1902 = vmatpush1.msra.mxu0 %v1848
      %1903 = vmatprep.subr.mxu0 0.0
      %1904 = vmatpush1.msra.mxu0 %v1849
      %1905 = vmatprep.subr.mxu0 0.0
      %1906 = vmatpush1.msra.mxu0 %v1850
      %1907 = vmatprep.subr.mxu0 0.0
      %1908 = vmatpush1.msra.mxu0 %v1851
      %1909 = vmatprep.subr.mxu0 0.0
      %1910 = vmatpush1.msra.mxu0 %v1852
      %1911 = vmatprep.subr.mxu0 0.0
      %1912 = vmatpush1.msra.mxu0 %v1853
      %1913 = vmatprep.subr.mxu0 0.0
      %1914 = vmatpush1.msra.mxu0 %v1854
      %1915 = vmatprep.subr.mxu0 0.0
      %1916 = vmatpush1.msra.mxu0 %v1855
      %1917 = vmatprep.subr.mxu0 0.0
      %1918 = vmatpush1.msra.mxu0 %v1856
      %1919 = vmatprep.subr.mxu0 0.0
      %1920 = vmatpush1.msra.mxu0 %v1857
      %1921 = vmatprep.subr.mxu0 0.0
      %1922 = vmatpush1.msra.mxu0 %v1858
      %1923 = vmatprep.subr.mxu0 0.0
      %1924 = vmatpush1.msra.mxu0 %v1859
      %1925 = vmatprep.subr.mxu0 0.0
      %1926 = vmatpush1.msra.mxu0 %v1860
      %1927 = vmatprep.subr.mxu0 0.0
      %1928 = vmatpush1.msra.mxu0 %v1861
      %1929 = vmatprep.subr.mxu0 0.0
      %1930 = vmatpush1.msra.mxu0 %v1862
      %1931 = vmatprep.subr.mxu0 0.0
      %1932 = vmatpush1.msra.mxu0 %v1863
      %1933 = vmatprep.subr.mxu0 0.0
      %1934 = vmatpush1.msra.mxu0 %v1864
      %1935 = vmatprep.subr.mxu0 0.0
      %1936 = vmatpush1.msra.mxu0 %v1865
      %1937 = vmatprep.subr.mxu0 0.0
      %1938 = vmatpush1.msra.mxu0 %v1866
      %1939 = vmatprep.subr.mxu0 0.0
      %1940 = vmatpush1.msra.mxu0 %v1867
      %1941 = vmatprep.subr.mxu0 0.0
      %1942 = vmatpush1.msra.mxu0 %v1868
      %1943 = vmatprep.subr.mxu0 0.0
      %1944 = vmatpush1.msra.mxu0 %v1869
      %1945 = vmatprep.subr.mxu0 0.0
      %1946 = vmatpush1.msra.mxu0 %v1870
      %1947 = vmatprep.subr.mxu0 0.0
      %1948 = vmatpush1.msra.mxu0 %v1871
      %1949 = vmatprep.subr.mxu0 0.0
      %1950 = vmatpush1.msra.mxu0 %v1872
      %1951 = vmatprep.subr.mxu0 0.0
      %1952 = vmatpush1.msra.mxu0 %v1873
      %1953 = vmatprep.subr.mxu0 0.0
      %1954 = vmatpush1.msra.mxu0 %v1874
      %1955 = vmatprep.mubr.f32.mxu0 %v1808
      %1956 = vmatmul.mubr.f32.gmra.mrb[0].mxu0 %v1806
      %v1957 = vpop.f32.mrb[0].mxu0
      %v1958 = vadd.f32 0.0, %v1957
      %v1959 = vpop.f32.mrb[0].mxu0
      %1960 = vmatprep.mubr.f32.mxu0 %v1809
      %1961 = vmatmul.mubr.f32.gmra.mrb[0].mxu0 %v1807
      %v1962 = vpop.f32.mrb[0].mxu0
      %v1963 = vadd.f32 0.0, %v1962
      %v1964 = vpop.f32.mrb[0].mxu0
      %1965 = vmatprep.mubr.f32.mxu0 %v1810
      %1966 = vmatmul.mubr.f32.gmra.mrb[0].mxu0 %v1808
      %v1967 = vpop.f32.mrb[0].mxu0
      %v1968 = vadd.f32 0.0, %v1967
      %v1969 = vpop.f32.mrb[0].mxu0
      %1970 = vmatprep.mubr.f32.mxu0 %v1811
      %1971 = vmatmul.mubr.f32.gmra.mrb[0].mxu0 %v1809
      %v1972 = vpop.f32.mrb[0].mxu0
      %v1973 = vadd.f32 0.0, %v1972
      %v1974 = vpop.f32.mrb[0].mxu0
      %1975 = vmatprep.mubr.f32.mxu0 %v1812
      %1976 = vmatmul.mubr.f32.gmra.mrb[0].mxu0 %v1810
      %v1977 = vpop.f32.mrb[0].mxu0
      %v1978 = vadd.f32 0.0, %v1977
      %v1979 = vpop.f32.mrb[0].mxu0
      %1980 = vmatprep.mubr.f32.mxu0 %v1813
      %1981 = vmatmul.mubr.f32.gmra.mrb[0].mxu0 %v1811
      %v1982 = vpop.f32.mrb[0].mxu0
      %v1983 = vadd.f32 0.0, %v1982
      %v1984 = vpop.f32.mrb[0].mxu0
      %1985 = vmatprep.mubr.f32.mxu0 %v1814
      %1986 = vmatmul.mubr.f32.gmra.mrb[0].mxu0 %v1812
      %v1987 = vpop.f32.mrb[0].mxu0
      %v1988 = vadd.f32 0.0, %v1987
      %v1989 = vpop.f32.mrb[0].mxu0
      %1990 = vmatprep.mubr.f32.mxu0 %v1815
      %1991 = vmatmul.mubr.f32.gmra.mrb[0].mxu0 %v1813
      %v1992 = vpop.f32.mrb[0].mxu0
      %v1993 = vadd.f32 0.0, %v1992
      %v1994 = vpop.f32.mrb[0].mxu0
      %1995 = vmatprep.mubr.f32.mxu0 %v1816
      %1996 = vmatmul.mubr.f32.gmra.mrb[0].mxu0 %v1814
      %v1997 = vpop.f32.mrb[0].mxu0
      %v1998 = vadd.f32 0.0, %v1997
      %v1999 = vpop.f32.mrb[0].mxu0
      %2000 = vmatprep.mubr.f32.mxu0 %v1817
      %2001 = vmatmul.mubr.f32.gmra.mrb[0].mxu0 %v1815
      %v2002 = vpop.f32.mrb[0].mxu0
      %v2003 = vadd.f32 0.0, %v2002
      %v2004 = vpop.f32.mrb[0].mxu0
      %2005 = vmatprep.mubr.f32.mxu0 %v1818
      %2006 = vmatmul.mubr.f32.gmra.mrb[0].mxu0 %v1816
      %v2007 = vpop.f32.mrb[0].mxu0
      %v2008 = vadd.f32 0.0, %v2007
      %v2009 = vpop.f32.mrb[0].mxu0
      %2010 = vmatprep.mubr.f32.mxu0 %v1819
      %2011 = vmatmul.mubr.f32.gmra.mrb[0].mxu0 %v1817
      %v2012 = vpop.f32.mrb[0].mxu0
      %v2013 = vadd.f32 0.0, %v2012
      %v2014 = vpop.f32.mrb[0].mxu0
      %2015 = vmatprep.mubr.f32.mxu0 %v1820
      %2016 = vmatmul.mubr.f32.gmra.mrb[0].mxu0 %v1818
      %v2017 = vpop.f32.mrb[0].mxu0
      %v2018 = vadd.f32 0.0, %v2017
      %v2019 = vpop.f32.mrb[0].mxu0
      %2020 = vmatprep.mubr.f32.mxu0 %v1821
      %2021 = vmatmul.mubr.f32.gmra.mrb[0].mxu0 %v1819
      %v2022 = vpop.f32.mrb[0].mxu0
      %v2023 = vadd.f32 0.0, %v2022
      %v2024 = vpop.f32.mrb[0].mxu0
      %2025 = vmatprep.mubr.f32.mxu0 %v1822
      %2026 = vmatmul.mubr.f32.gmra.mrb[0].mxu0 %v1820
      %v2027 = vpop.f32.mrb[0].mxu0
      %v2028 = vadd.f32 0.0, %v2027
      %v2029 = vpop.f32.mrb[0].mxu0
      %2030 = vmatprep.mubr.f32.mxu0 %v1823
      %2031 = vmatmul.mubr.f32.gmra.mrb[0].mxu0 %v1821
      %v2032 = vpop.f32.mrb[0].mxu0
      %v2033 = vadd.f32 0.0, %v2032
      %v2034 = vpop.f32.mrb[0].mxu0
      %2035 = vmatprep.mubr.f32.mxu0 %v1824
      %2036 = vmatmul.mubr.f32.gmra.mrb[0].mxu0 %v1822
      %v2037 = vpop.f32.mrb[0].mxu0
      %v2038 = vadd.f32 0.0, %v2037
      %v2039 = vpop.f32.mrb[0].mxu0
      %2040 = vmatprep.mubr.f32.mxu0 %v1825
      %2041 = vmatmul.mubr.f32.gmra.mrb[0].mxu0 %v1823
      %v2042 = vpop.f32.mrb[0].mxu0
      %v2043 = vadd.f32 0.0, %v2042
      %v2044 = vpop.f32.mrb[0].mxu0
      %2045 = vmatprep.mubr.f32.mxu0 %v1826
      %2046 = vmatmul.mubr.f32.gmra.mrb[0].mxu0 %v1824
      %v2047 = vpop.f32.mrb[0].mxu0
      %v2048 = vadd.f32 0.0, %v2047
      %v2049 = vpop.f32.mrb[0].mxu0
      %2050 = vmatprep.mubr.f32.mxu0 %v1827
      %2051 = vmatmul.mubr.f32.gmra.mrb[0].mxu0 %v1825
      %v2052 = vpop.f32.mrb[0].mxu0
      %v2053 = vadd.f32 0.0, %v2052
      %v2054 = vpop.f32.mrb[0].mxu0
      %2055 = vmatprep.mubr.f32.mxu0 %v1828
      %2056 = vmatmul.mubr.f32.gmra.mrb[0].mxu0 %v1826
      %v2057 = vpop.f32.mrb[0].mxu0
      %v2058 = vadd.f32 0.0, %v2057
      %v2059 = vpop.f32.mrb[0].mxu0
      %2060 = vmatprep.mubr.f32.mxu0 %v1829
      %2061 = vmatmul.mubr.f32.gmra.mrb[0].mxu0 %v1827
      %v2062 = vpop.f32.mrb[0].mxu0
      %v2063 = vadd.f32 0.0, %v2062
      %v2064 = vpop.f32.mrb[0].mxu0
      %2065 = vmatprep.mubr.f32.mxu0 %v1830
      %2066 = vmatmul.mubr.f32.gmra.mrb[0].mxu0 %v1828
      %v2067 = vpop.f32.mrb[0].mxu0
      %v2068 = vadd.f32 0.0, %v2067
      %v2069 = vpop.f32.mrb[0].mxu0
      %2070 = vmatprep.mubr.f32.mxu0 %v1831
      %2071 = vmatmul.mubr.f32.gmra.mrb[0].mxu0 %v1829
      %v2072 = vpop.f32.mrb[0].mxu0
      %v2073 = vadd.f32 0.0, %v2072
      %v2074 = vpop.f32.mrb[0].mxu0
      %2075 = vmatprep.mubr.f32.mxu0 %v1832
      %2076 = vmatmul.mubr.f32.gmra.mrb[0].mxu0 %v1830
      %v2077 = vpop.f32.mrb[0].mxu0
      %v2078 = vadd.f32 0.0, %v2077
      %v2079 = vpop.f32.mrb[0].mxu0
      %2080 = vmatprep.mubr.f32.mxu0 %v1833
      %2081 = vmatmul.mubr.f32.gmra.mrb[0].mxu0 %v1831
      %v2082 = vpop.f32.mrb[0].mxu0
      %v2083 = vadd.f32 0.0, %v2082
      %v2084 = vpop.f32.mrb[0].mxu0
      %2085 = vmatprep.mubr.f32.mxu0 %v1834
      %2086 = vmatmul.mubr.f32.gmra.mrb[0].mxu0 %v1832
      %v2087 = vpop.f32.mrb[0].mxu0
      %v2088 = vadd.f32 0.0, %v2087
      %v2089 = vpop.f32.mrb[0].mxu0
      %2090 = vmatprep.mubr.f32.mxu0 %v1835
      %2091 = vmatmul.mubr.f32.gmra.mrb[0].mxu0 %v1833
      %v2092 = vpop.f32.mrb[0].mxu0
      %v2093 = vadd.f32 0.0, %v2092
      %v2094 = vpop.f32.mrb[0].mxu0
      %2095 = vmatprep.mubr.f32.mxu0 %v1836
      %2096 = vmatmul.mubr.f32.gmra.mrb[0].mxu0 %v1834
      %v2097 = vpop.f32.mrb[0].mxu0
      %v2098 = vadd.f32 0.0, %v2097
      %v2099 = vpop.f32.mrb[0].mxu0
      %2100 = vmatprep.mubr.f32.mxu0 %v1837
      %2101 = vmatmul.mubr.f32.gmra.mrb[0].mxu0 %v1835
      %v2102 = vpop.f32.mrb[0].mxu0
      %v2103 = vadd.f32 0.0, %v2102
      %v2104 = vpop.f32.mrb[0].mxu0
      %2105 = vmatprep.mubr.f32.mxu0 %v1838
      %2106 = vmatmul.mubr.f32.gmra.mrb[0].mxu0 %v1836
      %v2107 = vpop.f32.mrb[0].mxu0
      %v2108 = vadd.f32 0.0, %v2107
      %v2109 = vpop.f32.mrb[0].mxu0
      %2110 = vmatprep.mubr.f32.mxu0 %v1839
      %2111 = vmatmul.mubr.f32.gmra.mrb[0].mxu0 %v1837
      %v2112 = vpop.f32.mrb[0].mxu0
      %v2113 = vadd.f32 0.0, %v2112
      %v2114 = vpop.f32.mrb[0].mxu0
      %2115 = vdwg.mxu0
      %2116 = vmatprep.subr.mxu0 0.0
      %2117 = vmatpush1.msra.mxu0 %v1875
      %2118 = vmatprep.subr.mxu0 0.0
      %2119 = vmatpush1.msra.mxu0 %v1876
      %2120 = vmatprep.subr.mxu0 0.0
      %2121 = vmatpush1.msra.mxu0 %v1877
      %2122 = vmatprep.subr.mxu0 0.0
      %2123 = vmatpush1.msra.mxu0 %v1878
      %2124 = vmatprep.subr.mxu0 0.0
      %2125 = vmatpush1.msra.mxu0 %v1879
      %2126 = vmatprep.subr.mxu0 0.0
      %2127 = vmatpush1.msra.mxu0 %v1880
      %2128 = vmatprep.subr.mxu0 0.0
      %2129 = vmatpush1.msra.mxu0 %v1881
      %2130 = vmatprep.subr.mxu0 0.0
      %2131 = vmatpush1.msra.mxu0 %v1882
      %2132 = vmatprep.subr.mxu0 0.0
      %2133 = vmatpush1.msra.mxu0 %v1883
      %2134 = vmatprep.subr.mxu0 0.0
      %2135 = vmatpush1.msra.mxu0 %v1884
      %2136 = vmatprep.subr.mxu0 0.0
      %2137 = vmatpush1.msra.mxu0 %v1885
      %2138 = vmatprep.subr.mxu0 0.0
      %2139 = vmatpush1.msra.mxu0 %v1886
      %2140 = vmatprep.subr.mxu0 0.0
      %2141 = vmatpush1.msra.mxu0 %v1887
      %2142 = vmatprep.subr.mxu0 0.0
      %2143 = vmatpush1.msra.mxu0 %v1888
      %2144 = vmatprep.subr.mxu0 0.0
      %2145 = vmatpush1.msra.mxu0 %v1889
      %2146 = vmatprep.subr.mxu0 0.0
      %2147 = vmatpush1.msra.mxu0 %v1890
      %2148 = vmatprep.subr.mxu0 0.0
      %2149 = vmatpush1.msra.mxu0 0.0
      %2150 = vmatprep.subr.mxu0 0.0
      %2151 = vmatpush1.msra.mxu0 0.0
      %2152 = vmatprep.subr.mxu0 0.0
      %2153 = vmatpush1.msra.mxu0 0.0
      %2154 = vmatprep.subr.mxu0 0.0
      %2155 = vmatpush1.msra.mxu0 0.0
      %2156 = vmatprep.subr.mxu0 0.0
      %2157 = vmatpush1.msra.mxu0 0.0
      %2158 = vmatprep.subr.mxu0 0.0
      %2159 = vmatpush1.msra.mxu0 0.0
      %2160 = vmatprep.subr.mxu0 0.0
      %2161 = vmatpush1.msra.mxu0 0.0
      %2162 = vmatprep.subr.mxu0 0.0
      %2163 = vmatpush1.msra.mxu0 0.0
      %2164 = vmatprep.subr.mxu0 0.0
      %2165 = vmatpush1.msra.mxu0 0.0
      %2166 = vmatprep.subr.mxu0 0.0
      %2167 = vmatpush1.msra.mxu0 0.0
      %2168 = vmatprep.subr.mxu0 0.0
      %2169 = vmatpush1.msra.mxu0 0.0
      %2170 = vmatprep.subr.mxu0 0.0
      %2171 = vmatpush1.msra.mxu0 0.0
      %2172 = vmatprep.subr.mxu0 0.0
      %2173 = vmatpush1.msra.mxu0 0.0
      %2174 = vmatprep.subr.mxu0 0.0
      %2175 = vmatpush1.msra.mxu0 0.0
      %2176 = vmatprep.subr.mxu0 0.0
      %2177 = vmatpush1.msra.mxu0 0.0
      %2178 = vmatprep.subr.mxu0 0.0
      %2179 = vmatpush1.msra.mxu0 0.0
      %2180 = vmatprep.mubr.f32.mxu0 0.0
      %2181 = vmatmul.mubr.f32.gmra.mrb[0].mxu0 %v1810
      %v2182 = vpop.f32.mrb[0].mxu0
      %v2183 = vadd.f32 %v1958, %v2182
      %v2184 = vpop.f32.mrb[0].mxu0
      %2185 = vmatprep.mubr.f32.mxu0 0.0
      %2186 = vmatmul.mubr.f32.gmra.mrb[0].mxu0 %v1811
      %v2187 = vpop.f32.mrb[0].mxu0
      %v2188 = vadd.f32 %v1963, %v2187
      %v2189 = vpop.f32.mrb[0].mxu0
      %2190 = vmatprep.mubr.f32.mxu0 0.0
      %2191 = vmatmul.mubr.f32.gmra.mrb[0].mxu0 %v1812
      %v2192 = vpop.f32.mrb[0].mxu0
      %v2193 = vadd.f32 %v1968, %v2192
      %v2194 = vpop.f32.mrb[0].mxu0
      %2195 = vmatprep.mubr.f32.mxu0 0.0
      %2196 = vmatmul.mubr.f32.gmra.mrb[0].mxu0 %v1813
      %v2197 = vpop.f32.mrb[0].mxu0
      %v2198 = vadd.f32 %v1973, %v2197
      %v2199 = vpop.f32.mrb[0].mxu0
      %2200 = vmatprep.mubr.f32.mxu0 0.0
      %2201 = vmatmul.mubr.f32.gmra.mrb[0].mxu0 %v1814
      %v2202 = vpop.f32.mrb[0].mxu0
      %v2203 = vadd.f32 %v1978, %v2202
      %v2204 = vpop.f32.mrb[0].mxu0
      %2205 = vmatprep.mubr.f32.mxu0 0.0
      %2206 = vmatmul.mubr.f32.gmra.mrb[0].mxu0 %v1815
      %v2207 = vpop.f32.mrb[0].mxu0
      %v2208 = vadd.f32 %v1983, %v2207
      %v2209 = vpop.f32.mrb[0].mxu0
      %2210 = vmatprep.mubr.f32.mxu0 0.0
      %2211 = vmatmul.mubr.f32.gmra.mrb[0].mxu0 %v1816
      %v2212 = vpop.f32.mrb[0].mxu0
      %v2213 = vadd.f32 %v1988, %v2212
      %v2214 = vpop.f32.mrb[0].mxu0
      %2215 = vmatprep.mubr.f32.mxu0 0.0
      %2216 = vmatmul.mubr.f32.gmra.mrb[0].mxu0 %v1817
      %v2217 = vpop.f32.mrb[0].mxu0
      %v2218 = vadd.f32 %v1993, %v2217
      %v2219 = vpop.f32.mrb[0].mxu0
      %2220 = vmatprep.mubr.f32.mxu0 0.0
      %2221 = vmatmul.mubr.f32.gmra.mrb[0].mxu0 %v1818
      %v2222 = vpop.f32.mrb[0].mxu0
      %v2223 = vadd.f32 %v1998, %v2222
      %v2224 = vpop.f32.mrb[0].mxu0
      %2225 = vmatprep.mubr.f32.mxu0 0.0
      %2226 = vmatmul.mubr.f32.gmra.mrb[0].mxu0 %v1819
      %v2227 = vpop.f32.mrb[0].mxu0
      %v2228 = vadd.f32 %v2003, %v2227
      %v2229 = vpop.f32.mrb[0].mxu0
      %2230 = vmatprep.mubr.f32.mxu0 0.0
      %2231 = vmatmul.mubr.f32.gmra.mrb[0].mxu0 %v1820
      %v2232 = vpop.f32.mrb[0].mxu0
      %v2233 = vadd.f32 %v2008, %v2232
      %v2234 = vpop.f32.mrb[0].mxu0
      %2235 = vmatprep.mubr.f32.mxu0 0.0
      %2236 = vmatmul.mubr.f32.gmra.mrb[0].mxu0 %v1821
      %v2237 = vpop.f32.mrb[0].mxu0
      %v2238 = vadd.f32 %v2013, %v2237
      %v2239 = vpop.f32.mrb[0].mxu0
      %2240 = vmatprep.mubr.f32.mxu0 0.0
      %2241 = vmatmul.mubr.f32.gmra.mrb[0].mxu0 %v1822
      %v2242 = vpop.f32.mrb[0].mxu0
      %v2243 = vadd.f32 %v2018, %v2242
      %v2244 = vpop.f32.mrb[0].mxu0
      %2245 = vmatprep.mubr.f32.mxu0 0.0
      %2246 = vmatmul.mubr.f32.gmra.mrb[0].mxu0 %v1823
      %v2247 = vpop.f32.mrb[0].mxu0
      %v2248 = vadd.f32 %v2023, %v2247
      %v2249 = vpop.f32.mrb[0].mxu0
      %2250 = vmatprep.mubr.f32.mxu0 0.0
      %2251 = vmatmul.mubr.f32.gmra.mrb[0].mxu0 %v1824
      %v2252 = vpop.f32.mrb[0].mxu0
      %v2253 = vadd.f32 %v2028, %v2252
      %v2254 = vpop.f32.mrb[0].mxu0
      %2255 = vmatprep.mubr.f32.mxu0 0.0
      %2256 = vmatmul.mubr.f32.gmra.mrb[0].mxu0 %v1825
      %v2257 = vpop.f32.mrb[0].mxu0
      %v2258 = vadd.f32 %v2033, %v2257
      %v2259 = vpop.f32.mrb[0].mxu0
      %2260 = vmatprep.mubr.f32.mxu0 0.0
      %2261 = vmatmul.mubr.f32.gmra.mrb[0].mxu0 %v1826
      %v2262 = vpop.f32.mrb[0].mxu0
      %v2263 = vadd.f32 %v2038, %v2262
      %v2264 = vpop.f32.mrb[0].mxu0
      %2265 = vmatprep.mubr.f32.mxu0 0.0
      %2266 = vmatmul.mubr.f32.gmra.mrb[0].mxu0 %v1827
      %v2267 = vpop.f32.mrb[0].mxu0
      %v2268 = vadd.f32 %v2043, %v2267
      %v2269 = vpop.f32.mrb[0].mxu0
      %2270 = vmatprep.mubr.f32.mxu0 0.0
      %2271 = vmatmul.mubr.f32.gmra.mrb[0].mxu0 %v1828
      %v2272 = vpop.f32.mrb[0].mxu0
      %v2273 = vadd.f32 %v2048, %v2272
      %v2274 = vpop.f32.mrb[0].mxu0
      %2275 = vmatprep.mubr.f32.mxu0 0.0
      %2276 = vmatmul.mubr.f32.gmra.mrb[0].mxu0 %v1829
      %v2277 = vpop.f32.mrb[0].mxu0
      %v2278 = vadd.f32 %v2053, %v2277
      %v2279 = vpop.f32.mrb[0].mxu0
      %2280 = vmatprep.mubr.f32.mxu0 0.0
      %2281 = vmatmul.mubr.f32.gmra.mrb[0].mxu0 %v1830
      %v2282 = vpop.f32.mrb[0].mxu0
      %v2283 = vadd.f32 %v2058, %v2282
      %v2284 = vpop.f32.mrb[0].mxu0
      %2285 = vmatprep.mubr.f32.mxu0 0.0
      %2286 = vmatmul.mubr.f32.gmra.mrb[0].mxu0 %v1831
      %v2287 = vpop.f32.mrb[0].mxu0
      %v2288 = vadd.f32 %v2063, %v2287
      %v2289 = vpop.f32.mrb[0].mxu0
      %2290 = vmatprep.mubr.f32.mxu0 0.0
      %2291 = vmatmul.mubr.f32.gmra.mrb[0].mxu0 %v1832
      %v2292 = vpop.f32.mrb[0].mxu0
      %v2293 = vadd.f32 %v2068, %v2292
      %v2294 = vpop.f32.mrb[0].mxu0
      %2295 = vmatprep.mubr.f32.mxu0 0.0
      %2296 = vmatmul.mubr.f32.gmra.mrb[0].mxu0 %v1833
      %v2297 = vpop.f32.mrb[0].mxu0
      %v2298 = vadd.f32 %v2073, %v2297
      %v2299 = vpop.f32.mrb[0].mxu0
      %2300 = vmatprep.mubr.f32.mxu0 0.0
      %2301 = vmatmul.mubr.f32.gmra.mrb[0].mxu0 %v1834
      %v2302 = vpop.f32.mrb[0].mxu0
      %v2303 = vadd.f32 %v2078, %v2302
      %v2304 = vpop.f32.mrb[0].mxu0
      %2305 = vmatprep.mubr.f32.mxu0 0.0
      %2306 = vmatmul.mubr.f32.gmra.mrb[0].mxu0 %v1835
      %v2307 = vpop.f32.mrb[0].mxu0
      %v2308 = vadd.f32 %v2083, %v2307
      %v2309 = vpop.f32.mrb[0].mxu0
      %2310 = vmatprep.mubr.f32.mxu0 0.0
      %2311 = vmatmul.mubr.f32.gmra.mrb[0].mxu0 %v1836
      %v2312 = vpop.f32.mrb[0].mxu0
      %v2313 = vadd.f32 %v2088, %v2312
      %v2314 = vpop.f32.mrb[0].mxu0
      %2315 = vmatprep.mubr.f32.mxu0 0.0
      %2316 = vmatmul.mubr.f32.gmra.mrb[0].mxu0 %v1837
      %v2317 = vpop.f32.mrb[0].mxu0
      %v2318 = vadd.f32 %v2093, %v2317
      %v2319 = vpop.f32.mrb[0].mxu0
      %2320 = vmatprep.mubr.f32.mxu0 0.0
      %2321 = vmatmul.mubr.f32.gmra.mrb[0].mxu0 %v1838
      %v2322 = vpop.f32.mrb[0].mxu0
      %v2323 = vadd.f32 %v2098, %v2322
      %v2324 = vpop.f32.mrb[0].mxu0
      %2325 = vmatprep.mubr.f32.mxu0 0.0
      %2326 = vmatmul.mubr.f32.gmra.mrb[0].mxu0 %v1839
      %v2327 = vpop.f32.mrb[0].mxu0
      %v2328 = vadd.f32 %v2103, %v2327
      %v2329 = vpop.f32.mrb[0].mxu0
      %2330 = vmatprep.mubr.f32.mxu0 0.0
      %2331 = vmatmul.mubr.f32.gmra.mrb[0].mxu0 %v1840
      %v2332 = vpop.f32.mrb[0].mxu0
      %v2333 = vadd.f32 %v2108, %v2332
      %v2334 = vpop.f32.mrb[0].mxu0
      %2335 = vmatprep.mubr.f32.mxu0 0.0
      %2336 = vmatmul.mubr.f32.gmra.mrb[0].mxu0 %v1841
      %v2337 = vpop.f32.mrb[0].mxu0
      %v2338 = vadd.f32 %v2113, %v2337
      %v2339 = vpop.f32.mrb[0].mxu0
      %2340 = vdwg.mxu0
      %v2341 = vadd.f32 %v1648, %v2183
      %v2342 = vadd.f32 %v1653, %v2188
      %v2343 = vadd.f32 %v1658, %v2193
      %v2344 = vadd.f32 %v1663, %v2198
      %v2345 = vadd.f32 %v1668, %v2203
      %v2346 = vadd.f32 %v1673, %v2208
      %v2347 = vadd.f32 %v1678, %v2213
      %v2348 = vadd.f32 %v1683, %v2218
      %v2349 = vadd.f32 %v1688, %v2223
      %v2350 = vadd.f32 %v1693, %v2228
      %v2351 = vadd.f32 %v1698, %v2233
      %v2352 = vadd.f32 %v1703, %v2238
      %v2353 = vadd.f32 %v1708, %v2243
      %v2354 = vadd.f32 %v1713, %v2248
      %v2355 = vadd.f32 %v1718, %v2253
      %v2356 = vadd.f32 %v1723, %v2258
      %v2357 = vadd.f32 %v1728, %v2263
      %v2358 = vadd.f32 %v1733, %v2268
      %v2359 = vadd.f32 %v1738, %v2273
      %v2360 = vadd.f32 %v1743, %v2278
      %v2361 = vadd.f32 %v1748, %v2283
      %v2362 = vadd.f32 %v1753, %v2288
      %v2363 = vadd.f32 %v1758, %v2293
      %v2364 = vadd.f32 %v1763, %v2298
      %v2365 = vadd.f32 %v1768, %v2303
      %v2366 = vadd.f32 %v1773, %v2308
      %v2367 = vadd.f32 %v1778, %v2313
      %v2368 = vadd.f32 %v1783, %v2318
      %v2369 = vadd.f32 %v1788, %v2323
      %v2370 = vadd.f32 %v1793, %v2328
      %v2371 = vadd.f32 %v1798, %v2333
      %v2372 = vadd.f32 %v1803, %v2338
      %v2373 = vld [vmem:[%s6] sm:$0x1]
      %v2375 = vlaneseq
      %v2376 = vshrl.u32 %v2375, 7
      %v2377 = vsub.s32 0, %v2376
      %v2378 = vrot.slane %v2373, %v2377
      %v2380 = vadd.f32 %v2341, %v2378
      %v2381 = vadd.f32 %v2342, %v2378
      %v2382 = vadd.f32 %v2343, %v2378
      %v2383 = vadd.f32 %v2344, %v2378
      %v2384 = vadd.f32 %v2345, %v2378
      %v2385 = vadd.f32 %v2346, %v2378
      %v2386 = vadd.f32 %v2347, %v2378
      %v2387 = vadd.f32 %v2348, %v2378
      %v2388 = vadd.f32 %v2349, %v2378
      %v2389 = vadd.f32 %v2350, %v2378
      %v2390 = vadd.f32 %v2351, %v2378
      %v2391 = vadd.f32 %v2352, %v2378
      %v2392 = vadd.f32 %v2353, %v2378
      %v2393 = vadd.f32 %v2354, %v2378
      %v2394 = vadd.f32 %v2355, %v2378
      %v2395 = vadd.f32 %v2356, %v2378
      %v2396 = vadd.f32 %v2357, %v2378
      %v2397 = vadd.f32 %v2358, %v2378
      %v2398 = vadd.f32 %v2359, %v2378
      %v2399 = vadd.f32 %v2360, %v2378
      %v2400 = vadd.f32 %v2361, %v2378
      %v2401 = vadd.f32 %v2362, %v2378
      %v2402 = vadd.f32 %v2363, %v2378
      %v2403 = vadd.f32 %v2364, %v2378
      %v2404 = vadd.f32 %v2365, %v2378
      %v2405 = vadd.f32 %v2366, %v2378
      %v2406 = vadd.f32 %v2367, %v2378
      %v2407 = vadd.f32 %v2368, %v2378
      %v2408 = vadd.f32 %v2369, %v2378
      %v2409 = vadd.f32 %v2370, %v2378
      %v2410 = vadd.f32 %v2371, %v2378
      %v2411 = vadd.f32 %v2372, %v2378
      %2412 = vst [vmem:[%s484] sm:$0xff] %v2380
      %2413 = vst [vmem:[%s484 + $0x8] sm:$0xff] %v2381
      %2414 = vst [vmem:[%s484 + $0x10] sm:$0xff] %v2382
      %2415 = vst [vmem:[%s484 + $0x18] sm:$0xff] %v2383
      %2416 = vst [vmem:[%s484 + $0x20] sm:$0xff] %v2384
      %2417 = vst [vmem:[%s484 + $0x28] sm:$0xff] %v2385
      %2418 = vst [vmem:[%s484 + $0x30] sm:$0xff] %v2386
      %2419 = vst [vmem:[%s484 + $0x38] sm:$0xff] %v2387
      %2420 = vst [vmem:[%s484 + $0x40] sm:$0xff] %v2388
      %2421 = vst [vmem:[%s484 + $0x48] sm:$0xff] %v2389
      %2422 = vst [vmem:[%s484 + $0x50] sm:$0xff] %v2390
      %2423 = vst [vmem:[%s484 + $0x58] sm:$0xff] %v2391
      %2424 = vst [vmem:[%s484 + $0x60] sm:$0xff] %v2392
      %2425 = vst [vmem:[%s484 + $0x68] sm:$0xff] %v2393
      %2426 = vst [vmem:[%s484 + $0x70] sm:$0xff] %v2394
      %2427 = vst [vmem:[%s484 + $0x78] sm:$0xff] %v2395
      %2428 = vst [vmem:[%s484 + $0x80] sm:$0xff] %v2396
      %2429 = vst [vmem:[%s484 + $0x88] sm:$0xff] %v2397
      %2430 = vst [vmem:[%s484 + $0x90] sm:$0xff] %v2398
      %2431 = vst [vmem:[%s484 + $0x98] sm:$0xff] %v2399
      %2432 = vst [vmem:[%s484 + $0xa0] sm:$0xff] %v2400
      %2433 = vst [vmem:[%s484 + $0xa8] sm:$0xff] %v2401
      %2434 = vst [vmem:[%s484 + $0xb0] sm:$0xff] %v2402
      %2435 = vst [vmem:[%s484 + $0xb8] sm:$0xff] %v2403
      %2436 = vst [vmem:[%s484 + $0xc0] sm:$0xff] %v2404
      %2437 = vst [vmem:[%s484 + $0xc8] sm:$0xff] %v2405
      %2438 = vst [vmem:[%s484 + $0xd0] sm:$0xff] %v2406
      %2439 = vst [vmem:[%s484 + $0xd8] sm:$0xff] %v2407
      %2440 = vst [vmem:[%s484 + $0xe0] sm:$0xff] %v2408
      %2441 = vst [vmem:[%s484 + $0xe8] sm:$0xff] %v2409
      %2442 = vst [vmem:[%s484 + $0xf0] sm:$0xff] %v2410
      %2443 = vst [vmem:[%s484 + $0xf8] sm:$0xff] %v2411
      %v2444 = vadd.f32 %v2380, %v2381
      %v2445 = vadd.f32 %v2444, %v2382
      %v2446 = vadd.f32 %v2445, %v2383
      %v2447 = vadd.f32 %v2446, %v2384
      %v2448 = vadd.f32 %v2447, %v2385
      %v2449 = vadd.f32 %v2448, %v2386
      %v2450 = vadd.f32 %v2449, %v2387
      %v2451 = vadd.f32 %v2450, %v2388
      %v2452 = vadd.f32 %v2451, %v2389
      %v2453 = vadd.f32 %v2452, %v2390
      %v2454 = vadd.f32 %v2453, %v2391
      %v2455 = vadd.f32 %v2454, %v2392
      %v2456 = vadd.f32 %v2455, %v2393
      %v2457 = vadd.f32 %v2456, %v2394
      %v2458 = vadd.f32 %v2457, %v2395
      %v2459 = vadd.f32 %v2458, %v2396
      %v2460 = vadd.f32 %v2459, %v2397
      %v2461 = vadd.f32 %v2460, %v2398
      %v2462 = vadd.f32 %v2461, %v2399
      %v2463 = vadd.f32 %v2462, %v2400
      %v2464 = vadd.f32 %v2463, %v2401
      %v2465 = vadd.f32 %v2464, %v2402
      %v2466 = vadd.f32 %v2465, %v2403
      %v2467 = vadd.f32 %v2466, %v2404
      %v2468 = vadd.f32 %v2467, %v2405
      %v2469 = vadd.f32 %v2468, %v2406
      %v2470 = vadd.f32 %v2469, %v2407
      %v2471 = vadd.f32 %v2470, %v2408
      %v2472 = vadd.f32 %v2471, %v2409
      %v2473 = vadd.f32 %v2472, %v2410
      %v2474 = vadd.f32 %v2473, %v2411
      %v2475 = vrot.slane %v2474, 4
      %v2476 = vadd.f32 %v2474, %v2475
      %v2477 = vrot.slane %v2476, 2
      %v2478 = vadd.f32 %v2476, %v2477
      %v2479 = vrot.slane %v2478, 1
      %v2480 = vadd.f32 %v2478, %v2479
      %2481 = vst [vmem:[%s492] sm:$0x1] %v2480
      %v2482 = vmul.f32 %v2380, %v2380
      %v2483 = vmul.f32 %v2381, %v2381
      %v2484 = vmul.f32 %v2382, %v2382
      %v2485 = vmul.f32 %v2383, %v2383
      %v2486 = vmul.f32 %v2384, %v2384
      %v2487 = vmul.f32 %v2385, %v2385
      %v2488 = vmul.f32 %v2386, %v2386
      %v2489 = vmul.f32 %v2387, %v2387
      %v2490 = vmul.f32 %v2388, %v2388
      %v2491 = vmul.f32 %v2389, %v2389
      %v2492 = vmul.f32 %v2390, %v2390
      %v2493 = vmul.f32 %v2391, %v2391
      %v2494 = vmul.f32 %v2392, %v2392
      %v2495 = vmul.f32 %v2393, %v2393
      %v2496 = vmul.f32 %v2394, %v2394
      %v2497 = vmul.f32 %v2395, %v2395
      %v2498 = vmul.f32 %v2396, %v2396
      %v2499 = vmul.f32 %v2397, %v2397
      %v2500 = vmul.f32 %v2398, %v2398
      %v2501 = vmul.f32 %v2399, %v2399
      %v2502 = vmul.f32 %v2400, %v2400
      %v2503 = vmul.f32 %v2401, %v2401
      %v2504 = vmul.f32 %v2402, %v2402
      %v2505 = vmul.f32 %v2403, %v2403
      %v2506 = vmul.f32 %v2404, %v2404
      %v2507 = vmul.f32 %v2405, %v2405
      %v2508 = vmul.f32 %v2406, %v2406
      %v2509 = vmul.f32 %v2407, %v2407
      %v2510 = vmul.f32 %v2408, %v2408
      %v2511 = vmul.f32 %v2409, %v2409
      %v2512 = vmul.f32 %v2410, %v2410
      %v2513 = vmul.f32 %v2411, %v2411
      %v2514 = vadd.f32 %v2482, %v2483
      %v2515 = vadd.f32 %v2514, %v2484
      %v2516 = vadd.f32 %v2515, %v2485
      %v2517 = vadd.f32 %v2516, %v2486
      %v2518 = vadd.f32 %v2517, %v2487
      %v2519 = vadd.f32 %v2518, %v2488
      %v2520 = vadd.f32 %v2519, %v2489
      %v2521 = vadd.f32 %v2520, %v2490
      %v2522 = vadd.f32 %v2521, %v2491
      %v2523 = vadd.f32 %v2522, %v2492
      %v2524 = vadd.f32 %v2523, %v2493
      %v2525 = vadd.f32 %v2524, %v2494
      %v2526 = vadd.f32 %v2525, %v2495
      %v2527 = vadd.f32 %v2526, %v2496
      %v2528 = vadd.f32 %v2527, %v2497
      %v2529 = vadd.f32 %v2528, %v2498
      %v2530 = vadd.f32 %v2529, %v2499
      %v2531 = vadd.f32 %v2530, %v2500
      %v2532 = vadd.f32 %v2531, %v2501
      %v2533 = vadd.f32 %v2532, %v2502
      %v2534 = vadd.f32 %v2533, %v2503
      %v2535 = vadd.f32 %v2534, %v2504
      %v2536 = vadd.f32 %v2535, %v2505
      %v2537 = vadd.f32 %v2536, %v2506
      %v2538 = vadd.f32 %v2537, %v2507
      %v2539 = vadd.f32 %v2538, %v2508
      %v2540 = vadd.f32 %v2539, %v2509
      %v2541 = vadd.f32 %v2540, %v2510
      %v2542 = vadd.f32 %v2541, %v2511
      %v2543 = vadd.f32 %v2542, %v2512
      %v2544 = vadd.f32 %v2543, %v2513
      %v2545 = vrot.slane %v2544, 4
      %v2546 = vadd.f32 %v2544, %v2545
      %v2547 = vrot.slane %v2546, 2
      %v2548 = vadd.f32 %v2546, %v2547
      %v2549 = vrot.slane %v2548, 1
      %v2550 = vadd.f32 %v2548, %v2549
      %2551 = vst [vmem:[%s492 + $0x1] sm:$0x1] %v2550
      %s2552 = smul.u32 16, %s25
      %p2553 = scmp.lt.s32.totalorder %s24, 1
      %s2554 = scalar_select %p2553, %s24, 1
      %p2555 = scmp.lt.s32.totalorder %s2552, 15
      %s2556 = scalar_select %p2555, %s2552, 15
      %s2557 = smul.addr %s2556, 2
      %s2558 = smul.addr %s2554, 32
      %s2559 = sadd.s32 %s2557, %s2558
      %s2560 = smul.addr %s2559, 8
      %s2561 = scalar_lea.vmem %s7, %s2560
      %p2562 = scmp.lt.s32.totalorder %s24, 1
      %s2563 = scalar_select %p2562, %s24, 1
      %p2564 = scmp.lt.s32.totalorder %s25, 0
      %s2565 = scalar_select %p2564, %s25, 0
      %s2566 = sadd.s32 %s2565, %s2563
      %s2567 = smul.addr %s2566, 2
      %s2568 = scalar_lea.vmem %s8, %s2567
      // Predicated region
      $region49: #{double_conv.3} parent=47 // pred_check
        %p2569 = pneg %p236
      $region50: #{double_conv.3} parent=47 // pred_check_branch
        %2571 = sbr.rel (%p2569) target = $region52
      $region51: #{double_conv.3} parent=47 // pred_region
        %s2572 = smul.u32 16, %s25
      $region52: #{double_conv.3} parent=47 // pred_fallthru
        _
      // Predicated region
      $region53: #{double_conv.3} parent=47 // pred_check
        %p2573 = pneg %p264
      $region54: #{double_conv.3} parent=47 // pred_check_branch
        %2575 = sbr.rel (%p2573) target = $region56
      $region55: #{double_conv.3} parent=47 // pred_region
        _
      $region56: #{double_conv.3} parent=47 // pred_fallthru
        _
    $region48: #{double_conv.3} parent=5 // pred_fallthru
      _
    %p2576 = scmp.le.s32.totalorder 2, %s15
    // Predicated region
    $region57: #{double_conv.3} parent=5 // pred_check
      %p2577 = pneg %p2576
    $region58: #{double_conv.3} parent=5 // pred_check_branch
      %2579 = sbr.rel (%p2577) target = $region60
    $region59: #{double_conv.3} parent=5 // pred_region
      %s2580 = ssub.s32 %s15, 2
      // Predicated region
      $region61: #{double_conv.3} parent=59 // pred_check
        %p2581 = pneg %p242
      $region62: #{double_conv.3} parent=59 // pred_check_branch
        %2583 = sbr.rel (%p2581) target = $region64
      $region63: #{double_conv.3} parent=59 // pred_region
        %s2584 = smul.u32 16, %s27
        %p2585 = scmp.lt.s32.totalorder %s26, 1
        %s2586 = scalar_select %p2585, %s26, 1
        %p2587 = scmp.lt.s32.totalorder %s2584, 15
        %s2588 = scalar_select %p2587, %s2584, 15
        %s2589 = smul.addr %s2588, 2
        %s2590 = smul.addr %s2586, 32
        %s2591 = sadd.s32 %s2589, %s2590
        %s2592 = smul.addr %s2591, 8
        %s2593 = scalar_lea.vmem %s7, %s2592
      $region64: #{double_conv.3} parent=59 // pred_fallthru
        _
      // Predicated region
      $region65: #{double_conv.3} parent=59 // pred_check
        %p2594 = pneg %p270
      $region66: #{double_conv.3} parent=59 // pred_check_branch
        %2596 = sbr.rel (%p2594) target = $region68
      $region67: #{double_conv.3} parent=59 // pred_region
        %p2597 = scmp.lt.s32.totalorder %s26, 1
        %s2598 = scalar_select %p2597, %s26, 1
        %p2599 = scmp.lt.s32.totalorder %s27, 0
        %s2600 = scalar_select %p2599, %s27, 0
        %s2601 = sadd.s32 %s2600, %s2598
        %s2602 = smul.addr %s2601, 2
        %s2603 = scalar_lea.vmem %s8, %s2602
      $region68: #{double_conv.3} parent=59 // pred_fallthru
        _
    $region60: #{double_conv.3} parent=5 // pred_fallthru
      _
  $region6: #{double_conv.3} parent=0 // loop_footer
    %s19 = sadd.s32 1, %s15
  $region7: #{double_conv.3} parent=0 // loop_footer_branch
    %14 = sbr.rel target = $region3
  $region8: #{double_conv.3} parent=0 // loop_exit
    _

</llo_original>
